<compile_context>
chip_gen: v7x
topology: tpu7x:2x2x1
jax: 0.10.0
libtpu: 0.0.40
codegen_flags: <defaults>
</compile_context>

<pallas_src>
import jax
import jax.numpy as jnp
from jax.experimental import pallas as pl
from jax.experimental.pallas import tpu as pltpu

# ---------------- small synthetic config ----------------
B, S, H = 2, 16, 32          # batch, seq len, bert hidden_size
N, WMAX = 16, 4              # spans per example, max span width
HH, WD, C = 32, 8, 4         # head_hidden_size, width_embed_dim, ent_cls_num
VOCAB, NTYPE, NWIDTH = 50, 2, 8
M = B * N                    # 32 span rows
TM = M // 2                  # 2 grid steps -> both v7x TensorCores busy;
                             # TM=16 keeps bf16 blocks on native (16,128) tiles
CLANE = 128                  # lane-dense output / parameter-slab width
KPAD = 128                   # padded K for the fused (start|end|width) operand
IGNORE = -100
LN_EPS = 1e-5
NEG = -100000.0
# Explicit scoped-VMEM budget (> v5e's 16 MiB default, = v6e/v7x default).
# Raise on v6e for larger TM at realistic sizes; keep well under 64 MiB on v7x.
VMEM_LIMIT_BYTES = 32 * 1024 * 1024


def _layernorm(x, g, b):
  mu = jnp.mean(x, axis=-1, keepdims=True)
  var = jnp.mean((x - mu) ** 2, axis=-1, keepdims=True)
  return (x - mu) * jax.lax.rsqrt(var + LN_EPS) * g + b


# ---------------- Pallas kernel ----------------
def entity_span_kernel(
    sw_ref,     # [WMAX, TM, H] bf16  width-major span window (single stream)
    mask_ref,   # [TM, WMAX]    f32   span mask
    sew_ref,    # [TM, KPAD]    bf16  [start | end | width-embed | 0 pad]
    lab_ref,    # [TM, 1]       int32 labels (-100 = ignore)
    w1_ref, w2_ref, d1c_ref, d1a_ref, d2_ref, d3p_ref,   # bf16 matrices
    prm_ref,    # [16, CLANE]   f32   packed bias/gamma/beta/CE-weight slab
    logit_ref,  # [TM, CLANE]   bf16  out: logits in lanes 0..C-1
    loss_ref,   # [8, CLANE]    f32   out: per-tile CE partials at [0,0]/[0,1]
):
  wmax, tm, h = sw_ref.shape

  # static views into the packed parameter slab (zero-cost slices)
  b1, g1, be1 = prm_ref[0:1, :HH], prm_ref[1:2, :HH], prm_ref[2:3, :HH]
  b2 = prm_ref[3:4, 0:1]
  db1, dg1, dbe1 = prm_ref[4:5, :HH], prm_ref[5:6, :HH], prm_ref[6:7, :HH]
  db2, dg2, dbe2 = prm_ref[7:8, :HH], prm_ref[8:9, :HH], prm_ref[9:10, :HH]
  db3p = prm_ref[10:11, :]
  cew = prm_ref[11:12, :]

  sw = sw_ref[...]                              # [WMAX, TM, H] bf16
  flat = sw.reshape(wmax * tm, h)               # free regroup (TM % 8 == 0)

  # hidden_scorer: Linear -> LayerNorm -> GELU(tanh, EUP) -> Linear(->1)
  hid = jnp.dot(flat, w1_ref[...], preferred_element_type=jnp.float32) + b1
  hid = jax.nn.gelu(_layernorm(hid, g1, be1), approximate=True)
  score = jnp.dot(hid.astype(jnp.bfloat16), w2_ref[...],
                  preferred_element_type=jnp.float32) + b2   # [WMAX*TM, 1]
  score = score.reshape(wmax, tm, 1)            # free regroup

  # masked softmax over the width axis + weighted aggregation, statically
  # unrolled over WMAX on lane-dense [TM,1]/[TM,H] slices (no relayout);
  # divide goes to the EUP via approx reciprocal.
  mask = mask_ref[...]
  s_w = [jnp.where(mask[:, w:w + 1] > 0.5, score[w], NEG) for w in range(WMAX)]
  m_max = s_w[0]
  for w in range(1, WMAX):
    m_max = jnp.maximum(m_max, s_w[w])
  e_w = [jnp.exp(s - m_max) for s in s_w]
  denom = e_w[0]
  for w in range(1, WMAX):
    denom = denom + e_w[w]
  inv = pl.reciprocal(denom, approx=True)                      # EUP, ~free
  aggr = (e_w[0] * inv) * sw[0].astype(jnp.float32)
  for w in range(1, WMAX):
    aggr = aggr + (e_w[w] * inv) * sw[w].astype(jnp.float32)   # [TM, H] f32

  # span_detector layer 1: two MXU matmuls (fused concat operand + aggr)
  x = (jnp.dot(sew_ref[...], d1c_ref[...], preferred_element_type=jnp.float32)
       + jnp.dot(aggr.astype(jnp.bfloat16), d1a_ref[...],
                 preferred_element_type=jnp.float32)
       + db1)
  x = jax.nn.gelu(_layernorm(x, dg1, dbe1), approximate=True)
  x = jnp.dot(x.astype(jnp.bfloat16), d2_ref[...],
              preferred_element_type=jnp.float32) + db2
  x = jax.nn.gelu(_layernorm(x, dg2, dbe2), approximate=True)

  # classifier head (lane-padded to CLANE) -> lane-dense slab, bf16 store
  slab = jnp.dot(x.astype(jnp.bfloat16), d3p_ref[...],
                 preferred_element_type=jnp.float32) + db3p    # [TM, CLANE]
  logit_ref[...] = slab.astype(jnp.bfloat16)

  # weighted cross-entropy, reduced to per-tile partials in-kernel
  lane = jax.lax.broadcasted_iota(jnp.int32, slab.shape, 1)
  onehot = (lane == lab_ref[...]).astype(jnp.float32)    # all-zero if ignored
  masked = jnp.where(lane < C, slab, -1e30)
  mx = jnp.max(masked, axis=-1, keepdims=True)
  lse = mx + jnp.log(jnp.sum(jnp.exp(masked - mx), axis=-1, keepdims=True))
  nll = lse - jnp.sum(onehot * slab, axis=-1, keepdims=True)   # [TM, 1]
  wy = jnp.sum(onehot * cew, axis=-1, keepdims=True)           # [TM, 1]
  num = jnp.sum(wy * nll, axis=0, keepdims=True)               # [1, 1]
  den = jnp.sum(wy, axis=0, keepdims=True)                     # [1, 1]
  rr = jax.lax.broadcasted_iota(jnp.int32, loss_ref.shape, 0)
  cc = jax.lax.broadcasted_iota(jnp.int32, loss_ref.shape, 1)
  loss_ref[...] = jnp.where((rr == 0) & (cc == 0), num,
                            jnp.where((rr == 0) & (cc == 1), den, 0.0))


# ---------------- pallas_call wrapper ----------------
def entity_span_pallas(sw, mk, sew, labels, mats, pslab, tm=TM):
  m = mk.shape[0]
  n_tiles = m // tm
  wts = list(mats) + [pslab]

  def build_and_run(single_buffer_weights):
    data_specs = [
        pl.BlockSpec((WMAX, tm, H), lambda i: (0, i, 0)),   # span window
        pl.BlockSpec((tm, WMAX), lambda i: (i, 0)),         # span mask
        pl.BlockSpec((tm, KPAD), lambda i: (i, 0)),         # fused st|en|we
        pl.BlockSpec((tm, 1), lambda i: (i, 0)),            # labels
    ]
    weight_specs = []
    for w in wts:
      # Grid-invariant weights: single-buffer them to free VMEM for larger
      # span tiles (matters on v7x's 64 MiB VMEM at realistic sizes).
      kw = ({"pipeline_mode": pl.Buffered(1)} if single_buffer_weights else {})
      weight_specs.append(
          pl.BlockSpec(w.shape, lambda i, n=w.ndim: (0,) * n, **kw))

    grid_spec = pltpu.PrefetchScalarGridSpec(
        num_scalar_prefetch=0,
        grid=(n_tiles,),
        in_specs=data_specs + weight_specs,
        out_specs=(pl.BlockSpec((tm, CLANE), lambda i: (i, 0)),
                   pl.BlockSpec((8, CLANE), lambda i: (i, 0))))

    fn = pl.pallas_call(
        entity_span_kernel,
        out_shape=(jax.ShapeDtypeStruct((m, CLANE), jnp.bfloat16),
                   jax.ShapeDtypeStruct((n_tiles * 8, CLANE), jnp.float32)),
        grid_spec=grid_spec,
        # Loss is emitted as per-tile partials, so the span axis is fully
        # parallel (megacore-safe on v7x; harmless on v5e/v6e).
        compiler_params=pltpu.CompilerParams(
            dimension_semantics=("parallel",),
            vmem_limit_bytes=VMEM_LIMIT_BYTES))
    return fn(sw, mk, sew, labels, *wts)

  try:
    return build_and_run(True)
  except Exception:
    # Fallback if this jax version's pallas_call path rejects pl.Buffered on
    # top-level BlockSpecs; double-buffered weights are still correct.
    return build_and_run(False)


def prep_weights(p):
  bf = jnp.bfloat16
  d1 = p['d1']                                         # [3H+WD, HH]
  # fused weight matching the wrapper-side concat [start | end | width_embed]
  d1c = jnp.concatenate([d1[:H], d1[2 * H:3 * H], d1[3 * H:]], axis=0)
  d1c = jnp.pad(d1c, ((0, KPAD - d1c.shape[0]), (0, 0)))
  d1a = d1[H:2 * H]                                    # aggregated-span weight
  d3p = jnp.pad(p['d3'], ((0, 0), (0, CLANE - C)))     # lane-padded classifier
  db3p = jnp.pad(p['db3'], ((0, 0), (0, CLANE - C)))
  cew = jnp.pad(p['cew'], ((0, 0), (0, CLANE - C)))
  mats = [p['w1'].astype(bf), p['w2'].T.astype(bf),
          d1c.astype(bf), d1a.astype(bf),
          p['d2'].astype(bf), d3p.astype(bf)]

  # pack every tiny vector into one lane-dense [16, 128] f32 parameter slab
  def row(v):
    v = v.reshape(1, -1).astype(jnp.float32)
    return jnp.pad(v, ((0, 0), (0, CLANE - v.shape[1])))
  pslab = jnp.concatenate(
      [row(p['b1']), row(p['g1']), row(p['be1']), row(p['b2']),
       row(p['db1']), row(p['dg1']), row(p['dbe1']),
       row(p['db2']), row(p['dg2']), row(p['dbe2']),
       row(db3p), row(cew),
       jnp.zeros((4, CLANE), jnp.float32)], axis=0)    # pad rows to 16
  return mats, pslab


# ---------------- pure-JAX reference (for correctness check) ----------------
def reference(se3, mk, st, en, we, labels, p):
  m = se3.shape[0]
  hid = se3.reshape(m * WMAX, H) @ p['w1'] + p['b1']
  hid = jax.nn.gelu(_layernorm(hid, p['g1'], p['be1']), approximate=False)
  score = (hid @ p['w2'].T + p['b2']).reshape(m, WMAX)
  score = jnp.where(mk > 0.5, score, NEG)
  pr = jax.nn.softmax(score, axis=-1)
  aggr = jnp.sum(pr[..., None] * se3, axis=1)
  reps = jnp.concatenate([st, aggr, en, we], axis=-1)
  x = jax.nn.gelu(_layernorm(reps @ p['d1'] + p['db1'], p['dg1'], p['dbe1']),
                  approximate=False)
  x = jax.nn.gelu(_layernorm(x @ p['d2'] + p['db2'], p['dg2'], p['dbe2']),
                  approximate=False)
  logits = x @ p['d3'] + p['db3']
  scr = jnp.concatenate([logits[:, :1], 1.0 - logits[:, :1]], axis=-1)
  lab = labels[:, 0]
  onehot = (lab[:, None] == jnp.arange(C)[None, :]).astype(jnp.float32)
  logp = jax.nn.log_softmax(logits, axis=-1)
  wy = jnp.sum(onehot * p['cew'], axis=-1)
  nll = -jnp.sum(onehot * logp, axis=-1)
  loss = jnp.sum(wy * nll) / jnp.sum(wy)
  return logits, scr, loss


# ---------------- forward (glue: embeddings + gathers, kernel: hot path) ----
def forward(input_ids, attn_mask, token_type_ids, ent_spans, ent_widths,
            ent_labels, loss_masks, params):
  # TODO(synk): the pretrained BertModel encoder cannot be reproduced here;
  # the contextual encoder is replaced by a deterministic embedding sum.
  bert_out = (params['word_emb'][input_ids]
              + params['type_emb'][token_type_ids]
              + params['pos_emb'][None, :, :]).astype(jnp.float32)
  del attn_mask  # embedding stand-in ignores the attention mask

  bidx = jnp.arange(B)[:, None, None]
  output_spans = bert_out[bidx, ent_spans]               # batched_index_select
  starts = ent_spans[..., 0]
  ends = ent_spans[..., 1]
  rng = jnp.arange(WMAX)[None, None, :]
  raw_idx = starts[..., None] + rng
  span_mask = (rng <= (ends - starts)[..., None]) & (raw_idx < S)
  idx = jnp.where(span_mask, raw_idx, 0)
  span_emb = bert_out[bidx, idx]                         # batched_span_select
  wemb = params['cls_embed'][ent_widths]                 # width embedding

  m = B * N
  se3 = span_emb.reshape(m, WMAX, H)                     # f32, for reference
  # single bf16 span-window stream, width-major: [WMAX, M, H]
  sw = jnp.transpose(se3, (1, 0, 2)).astype(jnp.bfloat16)
  mk = span_mask.reshape(m, WMAX).astype(jnp.float32)
  st32 = output_spans[:, :, 0, :].reshape(m, H)
  en32 = output_spans[:, :, 1, :].reshape(m, H)
  we32 = wemb.reshape(m, WD)
  # fused detector operand: [start | end | width_embed], lane-padded to 128
  sew = jnp.concatenate([st32, en32, we32], axis=-1)
  sew = jnp.pad(sew, ((0, 0), (0, KPAD - sew.shape[1]))).astype(jnp.bfloat16)
  labels = jnp.where(loss_masks, ent_labels,
                     IGNORE).reshape(m, 1).astype(jnp.int32)

  mats, pslab = prep_weights(params)
  logit_slab, loss_part = entity_span_pallas(sw, mk, sew, labels, mats, pslab)

  logits = logit_slab[:, :C].astype(jnp.float32)
  scr = jnp.concatenate([logits[:, :1], 1.0 - logits[:, :1]], axis=-1)
  num = jnp.sum(loss_part[:, 0])
  den = jnp.sum(loss_part[:, 1])
  # PyTorch CE yields NaN when every label is ignore_index; guard instead.
  loss = jnp.where(den > 0, num / jnp.maximum(den, 1e-12), 0.0)

  ref_inputs = (se3, mk, st32, en32, we32, labels)
  return ({'logits': logits.reshape(B, N, C),
           'scores': scr.reshape(B, N, 2),
           'loss': loss},
          ref_inputs, (logits, scr, loss))


if __name__ == "__main__":
  key = jax.random.PRNGKey(0)
  ks = jax.random.split(key, 16)
  nrm = lambda k, shp: (0.02 * jax.random.normal(k, shp)).astype(jnp.float32)

  params = dict(
      word_emb=nrm(ks[0], (VOCAB, H)),
      type_emb=nrm(ks[1], (NTYPE, H)),
      pos_emb=nrm(ks[2], (S, H)),
      cls_embed=nrm(ks[3], (NWIDTH, WD)),
      w1=nrm(ks[4], (H, HH)), b1=jnp.zeros((1, HH), jnp.float32),
      g1=jnp.ones((1, HH), jnp.float32), be1=jnp.zeros((1, HH), jnp.float32),
      w2=nrm(ks[5], (1, HH)), b2=jnp.zeros((1, 1), jnp.float32),
      d1=nrm(ks[6], (3 * H + WD, HH)), db1=jnp.zeros((1, HH), jnp.float32),
      dg1=jnp.ones((1, HH), jnp.float32), dbe1=jnp.zeros((1, HH), jnp.float32),
      d2=nrm(ks[7], (HH, HH)), db2=jnp.zeros((1, HH), jnp.float32),
      dg2=jnp.ones((1, HH), jnp.float32), dbe2=jnp.zeros((1, HH), jnp.float32),
      d3=nrm(ks[8], (HH, C)), db3=jnp.zeros((1, C), jnp.float32),
      cew=jnp.array([[0.1] + [1.0] * (C - 1)], jnp.float32),
  )

  input_ids = jax.random.randint(ks[9], (B, S), 0, VOCAB)
  token_type_ids = jax.random.randint(ks[10], (B, S), 0, NTYPE)
  attn_mask = jnp.ones((B, S), jnp.int32)
  starts = jax.random.randint(ks[11], (B, N), 0, S - WMAX + 1)
  widths = jax.random.randint(ks[12], (B, N), 0, WMAX)
  ent_spans = jnp.stack([starts, starts + widths], axis=-1)
  ent_widths = jnp.clip(widths, 0, NWIDTH - 1)
  ent_labels = jax.random.randint(ks[13], (B, N), 0, C)
  loss_masks = jax.random.bernoulli(ks[14], 0.7, (B, N))
  loss_masks = loss_masks.at[0, 0].set(True)   # ensure at least one valid label

  out, ref_inputs, (logits_flat, scr_flat, loss_val) = forward(
      input_ids, attn_mask, token_type_ids, ent_spans, ent_widths,
      ent_labels, loss_masks, params)
  jax.block_until_ready(out['loss'])

  ref_logits, ref_scr, ref_loss = reference(*ref_inputs, params)
  assert bool(jnp.all(jnp.isfinite(logits_flat)))
  # bf16 MXU operands + tanh-GELU + approx reciprocal in the kernel vs the
  # pure-f32 / erf-GELU reference -> loose tolerance
  assert bool(jnp.allclose(logits_flat, ref_logits, atol=2e-2, rtol=2e-2))
  assert bool(jnp.allclose(scr_flat, ref_scr, atol=2e-2, rtol=2e-2))
  assert bool(jnp.allclose(loss_val, ref_loss, atol=2e-2, rtol=2e-2))

  print("KERNEL_OK")
</pallas_src>

<mosaic_0001>
module attributes {stable_mosaic.version = 11 : i64} {
  func.func @entity_span_kernel(%arg0: i32, %arg1: memref<4x16x32xbf16, #tpu.memory_space<vmem>>, %arg2: memref<16x4xf32, #tpu.memory_space<vmem>>, %arg3: memref<16x128xbf16, #tpu.memory_space<vmem>>, %arg4: memref<16x1xi32, #tpu.memory_space<vmem>>, %arg5: memref<32x32xbf16, #tpu.memory_space<vmem>>, %arg6: memref<32x1xbf16, #tpu.memory_space<vmem>>, %arg7: memref<128x32xbf16, #tpu.memory_space<vmem>>, %arg8: memref<32x32xbf16, #tpu.memory_space<vmem>>, %arg9: memref<32x32xbf16, #tpu.memory_space<vmem>>, %arg10: memref<32x128xbf16, #tpu.memory_space<vmem>>, %arg11: memref<16x128xf32, #tpu.memory_space<vmem>>, %arg12: memref<16x128xbf16, #tpu.memory_space<vmem>>, %arg13: memref<8x128xf32, #tpu.memory_space<vmem>>) attributes {dimension_semantics = [#tpu.dimension_semantics<parallel>], iteration_bounds = array<i64: 2>, scalar_prefetch = 0 : i64, scratch_operands = 0 : i64, tpu.core_type = #tpu.core_type<tc>, window_params = [{transform_indices = @transform_0, window_bounds = array<i64: 4, 16, 32>}, {transform_indices = @transform_1, window_bounds = array<i64: 16, 4>}, {transform_indices = @transform_2, window_bounds = array<i64: 16, 128>}, {transform_indices = @transform_3, window_bounds = array<i64: 16, 1>}, {pipeline_mode = #tpu.pipeline_mode<synchronous>, transform_indices = @transform_4, window_bounds = array<i64: 32, 32>}, {pipeline_mode = #tpu.pipeline_mode<synchronous>, transform_indices = @transform_5, window_bounds = array<i64: 32, 1>}, {pipeline_mode = #tpu.pipeline_mode<synchronous>, transform_indices = @transform_6, window_bounds = array<i64: 128, 32>}, {pipeline_mode = #tpu.pipeline_mode<synchronous>, transform_indices = @transform_7, window_bounds = array<i64: 32, 32>}, {pipeline_mode = #tpu.pipeline_mode<synchronous>, transform_indices = @transform_8, window_bounds = array<i64: 32, 32>}, {pipeline_mode = #tpu.pipeline_mode<synchronous>, transform_indices = @transform_9, window_bounds = array<i64: 32, 128>}, {pipeline_mode = #tpu.pipeline_mode<synchronous>, transform_indices = @transform_10, window_bounds = array<i64: 16, 128>}, {transform_indices = @transform_11, window_bounds = array<i64: 16, 128>}, {transform_indices = @transform_12, window_bounds = array<i64: 8, 128>}]} {
    %c0 = arith.constant 0 : index
    %c0_0 = arith.constant 0 : index
    %0 = vector.load %arg11[%c0, %c0_0] : memref<16x128xf32, #tpu.memory_space<vmem>>, vector<1x32xf32>
    %c1 = arith.constant 1 : index
    %c0_1 = arith.constant 0 : index
    %1 = vector.load %arg11[%c1, %c0_1] : memref<16x128xf32, #tpu.memory_space<vmem>>, vector<1x32xf32>
    %c2 = arith.constant 2 : index
    %c0_2 = arith.constant 0 : index
    %2 = vector.load %arg11[%c2, %c0_2] : memref<16x128xf32, #tpu.memory_space<vmem>>, vector<1x32xf32>
    %c3 = arith.constant 3 : index
    %c0_3 = arith.constant 0 : index
    %3 = vector.load %arg11[%c3, %c0_3] : memref<16x128xf32, #tpu.memory_space<vmem>>, vector<1x1xf32>
    %c4 = arith.constant 4 : index
    %c0_4 = arith.constant 0 : index
    %4 = vector.load %arg11[%c4, %c0_4] : memref<16x128xf32, #tpu.memory_space<vmem>>, vector<1x32xf32>
    %c5 = arith.constant 5 : index
    %c0_5 = arith.constant 0 : index
    %5 = vector.load %arg11[%c5, %c0_5] : memref<16x128xf32, #tpu.memory_space<vmem>>, vector<1x32xf32>
    %c6 = arith.constant 6 : index
    %c0_6 = arith.constant 0 : index
    %6 = vector.load %arg11[%c6, %c0_6] : memref<16x128xf32, #tpu.memory_space<vmem>>, vector<1x32xf32>
    %c7 = arith.constant 7 : index
    %c0_7 = arith.constant 0 : index
    %7 = vector.load %arg11[%c7, %c0_7] : memref<16x128xf32, #tpu.memory_space<vmem>>, vector<1x32xf32>
    %c8 = arith.constant 8 : index
    %c0_8 = arith.constant 0 : index
    %8 = vector.load %arg11[%c8, %c0_8] : memref<16x128xf32, #tpu.memory_space<vmem>>, vector<1x32xf32>
    %c9 = arith.constant 9 : index
    %c0_9 = arith.constant 0 : index
    %9 = vector.load %arg11[%c9, %c0_9] : memref<16x128xf32, #tpu.memory_space<vmem>>, vector<1x32xf32>
    %c10 = arith.constant 10 : index
    %c0_10 = arith.constant 0 : index
    %10 = vector.load %arg11[%c10, %c0_10] : memref<16x128xf32, #tpu.memory_space<vmem>>, vector<1x128xf32>
    %c11 = arith.constant 11 : index
    %c0_11 = arith.constant 0 : index
    %11 = vector.load %arg11[%c11, %c0_11] : memref<16x128xf32, #tpu.memory_space<vmem>>, vector<1x128xf32>
    %c0_12 = arith.constant 0 : index
    %c0_13 = arith.constant 0 : index
    %c0_14 = arith.constant 0 : index
    %12 = vector.load %arg1[%c0_12, %c0_13, %c0_14] : memref<4x16x32xbf16, #tpu.memory_space<vmem>>, vector<4x16x32xbf16>
    %13 = vector.shape_cast %12 : vector<4x16x32xbf16> to vector<64x32xbf16>
    %c0_15 = arith.constant 0 : index
    %c0_16 = arith.constant 0 : index
    %14 = vector.load %arg5[%c0_15, %c0_16] : memref<32x32xbf16, #tpu.memory_space<vmem>>, vector<32x32xbf16>
    %cst = arith.constant dense<0.000000e+00> : vector<64x32xf32>
    %15 = tpu.matmul %13, %14, %cst {dimension_numbers = #tpu.dot_dimension_numbers<[1], [0], [0], [1], [0, 0, 1, 1], [], []>} : vector<64x32xbf16>, vector<32x32xbf16>, vector<64x32xf32> -> vector<64x32xf32>
    %16 = vector.broadcast %0 : vector<1x32xf32> to vector<64x32xf32>
    %17 = arith.addf %15, %16 : vector<64x32xf32>
    %cst_17 = arith.constant dense<0.000000e+00> : vector<64xf32>
    %18 = vector.multi_reduction <add>, %17, %cst_17 [1] : vector<64x32xf32> to vector<64xf32>
    %19 = vector.shape_cast %18 : vector<64xf32> to vector<64x1xf32>
    %cst_18 = arith.constant 3.200000e+01 : f32
    %20 = vector.broadcast %cst_18 : f32 to vector<64x1xf32>
    %21 = arith.divf %19, %20 : vector<64x1xf32>
    %22 = vector.broadcast %21 : vector<64x1xf32> to vector<64x32xf32>
    %23 = arith.subf %17, %22 : vector<64x32xf32>
    %24 = arith.mulf %23, %23 : vector<64x32xf32>
    %cst_19 = arith.constant dense<0.000000e+00> : vector<64xf32>
    %25 = vector.multi_reduction <add>, %24, %cst_19 [1] : vector<64x32xf32> to vector<64xf32>
    %26 = vector.shape_cast %25 : vector<64xf32> to vector<64x1xf32>
    %cst_20 = arith.constant 3.200000e+01 : f32
    %27 = vector.broadcast %cst_20 : f32 to vector<64x1xf32>
    %28 = arith.divf %26, %27 : vector<64x1xf32>
    %29 = vector.broadcast %21 : vector<64x1xf32> to vector<64x32xf32>
    %30 = arith.subf %17, %29 : vector<64x32xf32>
    %cst_21 = arith.constant 9.99999974E-6 : f32
    %31 = vector.broadcast %cst_21 : f32 to vector<64x1xf32>
    %32 = arith.addf %28, %31 : vector<64x1xf32>
    %33 = math.rsqrt %32 : vector<64x1xf32>
    %34 = vector.broadcast %33 : vector<64x1xf32> to vector<64x32xf32>
    %35 = arith.mulf %30, %34 : vector<64x32xf32>
    %36 = vector.broadcast %1 : vector<1x32xf32> to vector<64x32xf32>
    %37 = arith.mulf %35, %36 : vector<64x32xf32>
    %38 = vector.broadcast %2 : vector<1x32xf32> to vector<64x32xf32>
    %39 = arith.addf %37, %38 : vector<64x32xf32>
    %40 = arith.mulf %39, %39 : vector<64x32xf32>
    %41 = arith.mulf %39, %40 : vector<64x32xf32>
    %cst_22 = arith.constant 4.471500e-02 : f32
    %42 = vector.broadcast %cst_22 : f32 to vector<64x32xf32>
    %43 = arith.mulf %42, %41 : vector<64x32xf32>
    %44 = arith.addf %39, %43 : vector<64x32xf32>
    %cst_23 = arith.constant 0.797884583 : f32
    %45 = vector.broadcast %cst_23 : f32 to vector<64x32xf32>
    %46 = arith.mulf %45, %44 : vector<64x32xf32>
    %47 = math.tanh %46 : vector<64x32xf32>
    %cst_24 = arith.constant 1.000000e+00 : f32
    %48 = vector.broadcast %cst_24 : f32 to vector<64x32xf32>
    %49 = arith.addf %48, %47 : vector<64x32xf32>
    %cst_25 = arith.constant 5.000000e-01 : f32
    %50 = vector.broadcast %cst_25 : f32 to vector<64x32xf32>
    %51 = arith.mulf %50, %49 : vector<64x32xf32>
    %52 = arith.mulf %39, %51 : vector<64x32xf32>
    %53 = arith.truncf %52 : vector<64x32xf32> to vector<64x32xbf16>
    %c0_26 = arith.constant 0 : index
    %c0_27 = arith.constant 0 : index
    %54 = vector.load %arg6[%c0_26, %c0_27] : memref<32x1xbf16, #tpu.memory_space<vmem>>, vector<32x1xbf16>
    %cst_28 = arith.constant dense<0.000000e+00> : vector<64x1xf32>
    %55 = tpu.matmul %53, %54, %cst_28 {dimension_numbers = #tpu.dot_dimension_numbers<[1], [0], [0], [1], [0, 0, 1, 1], [], []>} : vector<64x32xbf16>, vector<32x1xbf16>, vector<64x1xf32> -> vector<64x1xf32>
    %56 = vector.broadcast %3 : vector<1x1xf32> to vector<64x1xf32>
    %57 = arith.addf %55, %56 : vector<64x1xf32>
    %58 = vector.shape_cast %57 : vector<64x1xf32> to vector<4x16x1xf32>
    %c0_29 = arith.constant 0 : index
    %c0_30 = arith.constant 0 : index
    %59 = vector.load %arg2[%c0_29, %c0_30] : memref<16x4xf32, #tpu.memory_space<vmem>>, vector<16x4xf32>
    %60 = vector.extract_strided_slice %59 {offsets = [0, 0], sizes = [16, 1], strides = [1, 1]} : vector<16x4xf32> to vector<16x1xf32>
    %cst_31 = arith.constant 5.000000e-01 : f32
    %61 = vector.broadcast %cst_31 : f32 to vector<16x1xf32>
    %62 = arith.cmpf ogt, %60, %61 : vector<16x1xf32>
    %63 = vector.extract_strided_slice %58 {offsets = [0, 0, 0], sizes = [1, 16, 1], strides = [1, 1, 1]} : vector<4x16x1xf32> to vector<1x16x1xf32>
    %64 = vector.shape_cast %63 : vector<1x16x1xf32> to vector<16x1xf32>
    %cst_32 = arith.constant -1.000000e+05 : f32
    %65 = vector.broadcast %cst_32 : f32 to vector<16x1xf32>
    %66 = arith.select %62, %64, %65 : vector<16x1xi1>, vector<16x1xf32>
    %67 = vector.extract_strided_slice %59 {offsets = [0, 1], sizes = [16, 1], strides = [1, 1]} : vector<16x4xf32> to vector<16x1xf32>
    %cst_33 = arith.constant 5.000000e-01 : f32
    %68 = vector.broadcast %cst_33 : f32 to vector<16x1xf32>
    %69 = arith.cmpf ogt, %67, %68 : vector<16x1xf32>
    %70 = vector.extract_strided_slice %58 {offsets = [1, 0, 0], sizes = [1, 16, 1], strides = [1, 1, 1]} : vector<4x16x1xf32> to vector<1x16x1xf32>
    %71 = vector.shape_cast %70 : vector<1x16x1xf32> to vector<16x1xf32>
    %cst_34 = arith.constant -1.000000e+05 : f32
    %72 = vector.broadcast %cst_34 : f32 to vector<16x1xf32>
    %73 = arith.select %69, %71, %72 : vector<16x1xi1>, vector<16x1xf32>
    %74 = vector.extract_strided_slice %59 {offsets = [0, 2], sizes = [16, 1], strides = [1, 1]} : vector<16x4xf32> to vector<16x1xf32>
    %cst_35 = arith.constant 5.000000e-01 : f32
    %75 = vector.broadcast %cst_35 : f32 to vector<16x1xf32>
    %76 = arith.cmpf ogt, %74, %75 : vector<16x1xf32>
    %77 = vector.extract_strided_slice %58 {offsets = [2, 0, 0], sizes = [1, 16, 1], strides = [1, 1, 1]} : vector<4x16x1xf32> to vector<1x16x1xf32>
    %78 = vector.shape_cast %77 : vector<1x16x1xf32> to vector<16x1xf32>
    %cst_36 = arith.constant -1.000000e+05 : f32
    %79 = vector.broadcast %cst_36 : f32 to vector<16x1xf32>
    %80 = arith.select %76, %78, %79 : vector<16x1xi1>, vector<16x1xf32>
    %81 = vector.extract_strided_slice %59 {offsets = [0, 3], sizes = [16, 1], strides = [1, 1]} : vector<16x4xf32> to vector<16x1xf32>
    %cst_37 = arith.constant 5.000000e-01 : f32
    %82 = vector.broadcast %cst_37 : f32 to vector<16x1xf32>
    %83 = arith.cmpf ogt, %81, %82 : vector<16x1xf32>
    %84 = vector.extract_strided_slice %58 {offsets = [3, 0, 0], sizes = [1, 16, 1], strides = [1, 1, 1]} : vector<4x16x1xf32> to vector<1x16x1xf32>
    %85 = vector.shape_cast %84 : vector<1x16x1xf32> to vector<16x1xf32>
    %cst_38 = arith.constant -1.000000e+05 : f32
    %86 = vector.broadcast %cst_38 : f32 to vector<16x1xf32>
    %87 = arith.select %83, %85, %86 : vector<16x1xi1>, vector<16x1xf32>
    %88 = arith.maximumf %66, %73 : vector<16x1xf32>
    %89 = arith.maximumf %88, %80 : vector<16x1xf32>
    %90 = arith.maximumf %89, %87 : vector<16x1xf32>
    %91 = arith.subf %66, %90 : vector<16x1xf32>
    %92 = math.exp %91 : vector<16x1xf32>
    %93 = arith.subf %73, %90 : vector<16x1xf32>
    %94 = math.exp %93 : vector<16x1xf32>
    %95 = arith.subf %80, %90 : vector<16x1xf32>
    %96 = math.exp %95 : vector<16x1xf32>
    %97 = arith.subf %87, %90 : vector<16x1xf32>
    %98 = math.exp %97 : vector<16x1xf32>
    %99 = arith.addf %92, %94 : vector<16x1xf32>
    %100 = arith.addf %99, %96 : vector<16x1xf32>
    %101 = arith.addf %100, %98 : vector<16x1xf32>
    %102 = tpu.reciprocal %101 {approx = true} : vector<16x1xf32> -> vector<16x1xf32>
    %103 = arith.mulf %92, %102 : vector<16x1xf32>
    %104 = vector.extract_strided_slice %12 {offsets = [0, 0, 0], sizes = [1, 16, 32], strides = [1, 1, 1]} : vector<4x16x32xbf16> to vector<1x16x32xbf16>
    %105 = vector.shape_cast %104 : vector<1x16x32xbf16> to vector<16x32xbf16>
    %106 = arith.extf %105 : vector<16x32xbf16> to vector<16x32xf32>
    %107 = vector.broadcast %103 : vector<16x1xf32> to vector<16x32xf32>
    %108 = arith.mulf %107, %106 : vector<16x32xf32>
    %109 = arith.mulf %94, %102 : vector<16x1xf32>
    %110 = vector.extract_strided_slice %12 {offsets = [1, 0, 0], sizes = [1, 16, 32], strides = [1, 1, 1]} : vector<4x16x32xbf16> to vector<1x16x32xbf16>
    %111 = vector.shape_cast %110 : vector<1x16x32xbf16> to vector<16x32xbf16>
    %112 = arith.extf %111 : vector<16x32xbf16> to vector<16x32xf32>
    %113 = vector.broadcast %109 : vector<16x1xf32> to vector<16x32xf32>
    %114 = arith.mulf %113, %112 : vector<16x32xf32>
    %115 = arith.addf %108, %114 : vector<16x32xf32>
    %116 = arith.mulf %96, %102 : vector<16x1xf32>
    %117 = vector.extract_strided_slice %12 {offsets = [2, 0, 0], sizes = [1, 16, 32], strides = [1, 1, 1]} : vector<4x16x32xbf16> to vector<1x16x32xbf16>
    %118 = vector.shape_cast %117 : vector<1x16x32xbf16> to vector<16x32xbf16>
    %119 = arith.extf %118 : vector<16x32xbf16> to vector<16x32xf32>
    %120 = vector.broadcast %116 : vector<16x1xf32> to vector<16x32xf32>
    %121 = arith.mulf %120, %119 : vector<16x32xf32>
    %122 = arith.addf %115, %121 : vector<16x32xf32>
    %123 = arith.mulf %98, %102 : vector<16x1xf32>
    %124 = vector.extract_strided_slice %12 {offsets = [3, 0, 0], sizes = [1, 16, 32], strides = [1, 1, 1]} : vector<4x16x32xbf16> to vector<1x16x32xbf16>
    %125 = vector.shape_cast %124 : vector<1x16x32xbf16> to vector<16x32xbf16>
    %126 = arith.extf %125 : vector<16x32xbf16> to vector<16x32xf32>
    %127 = vector.broadcast %123 : vector<16x1xf32> to vector<16x32xf32>
    %128 = arith.mulf %127, %126 : vector<16x32xf32>
    %129 = arith.addf %122, %128 : vector<16x32xf32>
    %c0_39 = arith.constant 0 : index
    %c0_40 = arith.constant 0 : index
    %130 = vector.load %arg3[%c0_39, %c0_40] : memref<16x128xbf16, #tpu.memory_space<vmem>>, vector<16x128xbf16>
    %c0_41 = arith.constant 0 : index
    %c0_42 = arith.constant 0 : index
    %131 = vector.load %arg7[%c0_41, %c0_42] : memref<128x32xbf16, #tpu.memory_space<vmem>>, vector<128x32xbf16>
    %cst_43 = arith.constant dense<0.000000e+00> : vector<16x32xf32>
    %132 = tpu.matmul %130, %131, %cst_43 {dimension_numbers = #tpu.dot_dimension_numbers<[1], [0], [0], [1], [0, 0, 1, 1], [], []>} : vector<16x128xbf16>, vector<128x32xbf16>, vector<16x32xf32> -> vector<16x32xf32>
    %133 = arith.truncf %129 : vector<16x32xf32> to vector<16x32xbf16>
    %c0_44 = arith.constant 0 : index
    %c0_45 = arith.constant 0 : index
    %134 = vector.load %arg8[%c0_44, %c0_45] : memref<32x32xbf16, #tpu.memory_space<vmem>>, vector<32x32xbf16>
    %cst_46 = arith.constant dense<0.000000e+00> : vector<16x32xf32>
    %135 = tpu.matmul %133, %134, %cst_46 {dimension_numbers = #tpu.dot_dimension_numbers<[1], [0], [0], [1], [0, 0, 1, 1], [], []>} : vector<16x32xbf16>, vector<32x32xbf16>, vector<16x32xf32> -> vector<16x32xf32>
    %136 = arith.addf %132, %135 : vector<16x32xf32>
    %137 = vector.broadcast %4 : vector<1x32xf32> to vector<16x32xf32>
    %138 = arith.addf %136, %137 : vector<16x32xf32>
    %cst_47 = arith.constant dense<0.000000e+00> : vector<16xf32>
    %139 = vector.multi_reduction <add>, %138, %cst_47 [1] : vector<16x32xf32> to vector<16xf32>
    %140 = vector.shape_cast %139 : vector<16xf32> to vector<16x1xf32>
    %cst_48 = arith.constant 3.200000e+01 : f32
    %141 = vector.broadcast %cst_48 : f32 to vector<16x1xf32>
    %142 = arith.divf %140, %141 : vector<16x1xf32>
    %143 = vector.broadcast %142 : vector<16x1xf32> to vector<16x32xf32>
    %144 = arith.subf %138, %143 : vector<16x32xf32>
    %145 = arith.mulf %144, %144 : vector<16x32xf32>
    %cst_49 = arith.constant dense<0.000000e+00> : vector<16xf32>
    %146 = vector.multi_reduction <add>, %145, %cst_49 [1] : vector<16x32xf32> to vector<16xf32>
    %147 = vector.shape_cast %146 : vector<16xf32> to vector<16x1xf32>
    %cst_50 = arith.constant 3.200000e+01 : f32
    %148 = vector.broadcast %cst_50 : f32 to vector<16x1xf32>
    %149 = arith.divf %147, %148 : vector<16x1xf32>
    %150 = vector.broadcast %142 : vector<16x1xf32> to vector<16x32xf32>
    %151 = arith.subf %138, %150 : vector<16x32xf32>
    %cst_51 = arith.constant 9.99999974E-6 : f32
    %152 = vector.broadcast %cst_51 : f32 to vector<16x1xf32>
    %153 = arith.addf %149, %152 : vector<16x1xf32>
    %154 = math.rsqrt %153 : vector<16x1xf32>
    %155 = vector.broadcast %154 : vector<16x1xf32> to vector<16x32xf32>
    %156 = arith.mulf %151, %155 : vector<16x32xf32>
    %157 = vector.broadcast %5 : vector<1x32xf32> to vector<16x32xf32>
    %158 = arith.mulf %156, %157 : vector<16x32xf32>
    %159 = vector.broadcast %6 : vector<1x32xf32> to vector<16x32xf32>
    %160 = arith.addf %158, %159 : vector<16x32xf32>
    %161 = arith.mulf %160, %160 : vector<16x32xf32>
    %162 = arith.mulf %160, %161 : vector<16x32xf32>
    %cst_52 = arith.constant 4.471500e-02 : f32
    %163 = vector.broadcast %cst_52 : f32 to vector<16x32xf32>
    %164 = arith.mulf %163, %162 : vector<16x32xf32>
    %165 = arith.addf %160, %164 : vector<16x32xf32>
    %cst_53 = arith.constant 0.797884583 : f32
    %166 = vector.broadcast %cst_53 : f32 to vector<16x32xf32>
    %167 = arith.mulf %166, %165 : vector<16x32xf32>
    %168 = math.tanh %167 : vector<16x32xf32>
    %cst_54 = arith.constant 1.000000e+00 : f32
    %169 = vector.broadcast %cst_54 : f32 to vector<16x32xf32>
    %170 = arith.addf %169, %168 : vector<16x32xf32>
    %cst_55 = arith.constant 5.000000e-01 : f32
    %171 = vector.broadcast %cst_55 : f32 to vector<16x32xf32>
    %172 = arith.mulf %171, %170 : vector<16x32xf32>
    %173 = arith.mulf %160, %172 : vector<16x32xf32>
    %174 = arith.truncf %173 : vector<16x32xf32> to vector<16x32xbf16>
    %c0_56 = arith.constant 0 : index
    %c0_57 = arith.constant 0 : index
    %175 = vector.load %arg9[%c0_56, %c0_57] : memref<32x32xbf16, #tpu.memory_space<vmem>>, vector<32x32xbf16>
    %cst_58 = arith.constant dense<0.000000e+00> : vector<16x32xf32>
    %176 = tpu.matmul %174, %175, %cst_58 {dimension_numbers = #tpu.dot_dimension_numbers<[1], [0], [0], [1], [0, 0, 1, 1], [], []>} : vector<16x32xbf16>, vector<32x32xbf16>, vector<16x32xf32> -> vector<16x32xf32>
    %177 = vector.broadcast %7 : vector<1x32xf32> to vector<16x32xf32>
    %178 = arith.addf %176, %177 : vector<16x32xf32>
    %cst_59 = arith.constant dense<0.000000e+00> : vector<16xf32>
    %179 = vector.multi_reduction <add>, %178, %cst_59 [1] : vector<16x32xf32> to vector<16xf32>
    %180 = vector.shape_cast %179 : vector<16xf32> to vector<16x1xf32>
    %cst_60 = arith.constant 3.200000e+01 : f32
    %181 = vector.broadcast %cst_60 : f32 to vector<16x1xf32>
    %182 = arith.divf %180, %181 : vector<16x1xf32>
    %183 = vector.broadcast %182 : vector<16x1xf32> to vector<16x32xf32>
    %184 = arith.subf %178, %183 : vector<16x32xf32>
    %185 = arith.mulf %184, %184 : vector<16x32xf32>
    %cst_61 = arith.constant dense<0.000000e+00> : vector<16xf32>
    %186 = vector.multi_reduction <add>, %185, %cst_61 [1] : vector<16x32xf32> to vector<16xf32>
    %187 = vector.shape_cast %186 : vector<16xf32> to vector<16x1xf32>
    %cst_62 = arith.constant 3.200000e+01 : f32
    %188 = vector.broadcast %cst_62 : f32 to vector<16x1xf32>
    %189 = arith.divf %187, %188 : vector<16x1xf32>
    %190 = vector.broadcast %182 : vector<16x1xf32> to vector<16x32xf32>
    %191 = arith.subf %178, %190 : vector<16x32xf32>
    %cst_63 = arith.constant 9.99999974E-6 : f32
    %192 = vector.broadcast %cst_63 : f32 to vector<16x1xf32>
    %193 = arith.addf %189, %192 : vector<16x1xf32>
    %194 = math.rsqrt %193 : vector<16x1xf32>
    %195 = vector.broadcast %194 : vector<16x1xf32> to vector<16x32xf32>
    %196 = arith.mulf %191, %195 : vector<16x32xf32>
    %197 = vector.broadcast %8 : vector<1x32xf32> to vector<16x32xf32>
    %198 = arith.mulf %196, %197 : vector<16x32xf32>
    %199 = vector.broadcast %9 : vector<1x32xf32> to vector<16x32xf32>
    %200 = arith.addf %198, %199 : vector<16x32xf32>
    %201 = arith.mulf %200, %200 : vector<16x32xf32>
    %202 = arith.mulf %200, %201 : vector<16x32xf32>
    %cst_64 = arith.constant 4.471500e-02 : f32
    %203 = vector.broadcast %cst_64 : f32 to vector<16x32xf32>
    %204 = arith.mulf %203, %202 : vector<16x32xf32>
    %205 = arith.addf %200, %204 : vector<16x32xf32>
    %cst_65 = arith.constant 0.797884583 : f32
    %206 = vector.broadcast %cst_65 : f32 to vector<16x32xf32>
    %207 = arith.mulf %206, %205 : vector<16x32xf32>
    %208 = math.tanh %207 : vector<16x32xf32>
    %cst_66 = arith.constant 1.000000e+00 : f32
    %209 = vector.broadcast %cst_66 : f32 to vector<16x32xf32>
    %210 = arith.addf %209, %208 : vector<16x32xf32>
    %cst_67 = arith.constant 5.000000e-01 : f32
    %211 = vector.broadcast %cst_67 : f32 to vector<16x32xf32>
    %212 = arith.mulf %211, %210 : vector<16x32xf32>
    %213 = arith.mulf %200, %212 : vector<16x32xf32>
    %214 = arith.truncf %213 : vector<16x32xf32> to vector<16x32xbf16>
    %c0_68 = arith.constant 0 : index
    %c0_69 = arith.constant 0 : index
    %215 = vector.load %arg10[%c0_68, %c0_69] : memref<32x128xbf16, #tpu.memory_space<vmem>>, vector<32x128xbf16>
    %cst_70 = arith.constant dense<0.000000e+00> : vector<16x128xf32>
    %216 = tpu.matmul %214, %215, %cst_70 {dimension_numbers = #tpu.dot_dimension_numbers<[1], [0], [0], [1], [0, 0, 1, 1], [], []>} : vector<16x32xbf16>, vector<32x128xbf16>, vector<16x128xf32> -> vector<16x128xf32>
    %217 = vector.broadcast %10 : vector<1x128xf32> to vector<16x128xf32>
    %218 = arith.addf %216, %217 : vector<16x128xf32>
    %219 = arith.truncf %218 : vector<16x128xf32> to vector<16x128xbf16>
    %c0_71 = arith.constant 0 : index
    %c0_72 = arith.constant 0 : index
    %220 = vector.load %arg12[%c0_71, %c0_72] : memref<16x128xbf16, #tpu.memory_space<vmem>>, vector<16x128xbf16>
    tpu.vector_store %arg12[%c0_71, %c0_72], %219 {strides = array<i32>} : memref<16x128xbf16, #tpu.memory_space<vmem>>, vector<16x128xbf16>,
    %221 = tpu.iota {dimensions = array<i32: 1>} : vector<16x128xi32>
    %c0_73 = arith.constant 0 : index
    %c0_74 = arith.constant 0 : index
    %222 = vector.load %arg4[%c0_73, %c0_74] : memref<16x1xi32, #tpu.memory_space<vmem>>, vector<16x1xi32>
    %223 = vector.broadcast %222 : vector<16x1xi32> to vector<16x128xi32>
    %224 = arith.cmpi eq, %221, %223 : vector<16x128xi32>
    %225 = arith.extui %224 : vector<16x128xi1> to vector<16x128xi32>
    %226 = arith.sitofp %225 : vector<16x128xi32> to vector<16x128xf32>
    %c4_i32 = arith.constant 4 : i32
    %227 = vector.broadcast %c4_i32 : i32 to vector<16x128xi32>
    %228 = arith.cmpi slt, %221, %227 : vector<16x128xi32>
    %cst_75 = arith.constant -1.000000e+30 : f32
    %229 = vector.broadcast %cst_75 : f32 to vector<16x128xf32>
    %230 = arith.select %228, %218, %229 : vector<16x128xi1>, vector<16x128xf32>
    %cst_76 = arith.constant dense<0xFF800000> : vector<16xf32>
    %231 = vector.multi_reduction <maximumf>, %230, %cst_76 [1] : vector<16x128xf32> to vector<16xf32>
    %232 = vector.shape_cast %231 : vector<16xf32> to vector<16x1xf32>
    %233 = vector.broadcast %232 : vector<16x1xf32> to vector<16x128xf32>
    %234 = arith.subf %230, %233 : vector<16x128xf32>
    %235 = math.exp %234 : vector<16x128xf32>
    %cst_77 = arith.constant dense<0.000000e+00> : vector<16xf32>
    %236 = vector.multi_reduction <add>, %235, %cst_77 [1] : vector<16x128xf32> to vector<16xf32>
    %237 = vector.shape_cast %236 : vector<16xf32> to vector<16x1xf32>
    %238 = math.log %237 : vector<16x1xf32>
    %239 = arith.addf %232, %238 : vector<16x1xf32>
    %240 = arith.mulf %226, %218 : vector<16x128xf32>
    %cst_78 = arith.constant dense<0.000000e+00> : vector<16xf32>
    %241 = vector.multi_reduction <add>, %240, %cst_78 [1] : vector<16x128xf32> to vector<16xf32>
    %242 = vector.shape_cast %241 : vector<16xf32> to vector<16x1xf32>
    %243 = arith.subf %239, %242 : vector<16x1xf32>
    %244 = vector.broadcast %11 : vector<1x128xf32> to vector<16x128xf32>
    %245 = arith.mulf %226, %244 : vector<16x128xf32>
    %cst_79 = arith.constant dense<0.000000e+00> : vector<16xf32>
    %246 = vector.multi_reduction <add>, %245, %cst_79 [1] : vector<16x128xf32> to vector<16xf32>
    %247 = vector.shape_cast %246 : vector<16xf32> to vector<16x1xf32>
    %248 = arith.mulf %247, %243 : vector<16x1xf32>
    %cst_80 = arith.constant dense<0.000000e+00> : vector<1xf32>
    %249 = vector.multi_reduction <add>, %248, %cst_80 [0] : vector<16x1xf32> to vector<1xf32>
    %250 = vector.shape_cast %249 : vector<1xf32> to vector<1x1xf32>
    %cst_81 = arith.constant dense<0.000000e+00> : vector<1xf32>
    %251 = vector.multi_reduction <add>, %247, %cst_81 [0] : vector<16x1xf32> to vector<1xf32>
    %252 = vector.shape_cast %251 : vector<1xf32> to vector<1x1xf32>
    %253 = tpu.iota {dimensions = array<i32: 0>} : vector<8x128xi32>
    %254 = tpu.iota {dimensions = array<i32: 1>} : vector<8x128xi32>
    %c0_i32 = arith.constant 0 : i32
    %255 = vector.broadcast %c0_i32 : i32 to vector<8x128xi32>
    %256 = arith.cmpi eq, %253, %255 : vector<8x128xi32>
    %c0_i32_82 = arith.constant 0 : i32
    %257 = vector.broadcast %c0_i32_82 : i32 to vector<8x128xi32>
    %258 = arith.cmpi eq, %254, %257 : vector<8x128xi32>
    %259 = arith.andi %256, %258 : vector<8x128xi1>
    %c0_i32_83 = arith.constant 0 : i32
    %260 = vector.broadcast %c0_i32_83 : i32 to vector<8x128xi32>
    %261 = arith.cmpi eq, %253, %260 : vector<8x128xi32>
    %c1_i32 = arith.constant 1 : i32
    %262 = vector.broadcast %c1_i32 : i32 to vector<8x128xi32>
    %263 = arith.cmpi eq, %254, %262 : vector<8x128xi32>
    %264 = arith.andi %261, %263 : vector<8x128xi1>
    %cst_84 = arith.constant 0.000000e+00 : f32
    %265 = vector.shape_cast %252 : vector<1x1xf32> to vector<1x1xf32>
    %266 = vector.broadcast %265 : vector<1x1xf32> to vector<8x128xf32>
    %267 = vector.broadcast %cst_84 : f32 to vector<8x128xf32>
    %268 = arith.select %264, %266, %267 : vector<8x128xi1>, vector<8x128xf32>
    %269 = vector.shape_cast %250 : vector<1x1xf32> to vector<1x1xf32>
    %270 = vector.broadcast %269 : vector<1x1xf32> to vector<8x128xf32>
    %271 = arith.select %259, %270, %268 : vector<8x128xi1>, vector<8x128xf32>
    %c0_85 = arith.constant 0 : index
    %c0_86 = arith.constant 0 : index
    %272 = vector.load %arg13[%c0_85, %c0_86] : memref<8x128xf32, #tpu.memory_space<vmem>>, vector<8x128xf32>
    tpu.vector_store %arg13[%c0_85, %c0_86], %271 {strides = array<i32>} : memref<8x128xf32, #tpu.memory_space<vmem>>, vector<8x128xf32>,
    return
  }
  func.func @transform_0(%arg0: i32) -> (i32, i32, i32) {
    %c0_i32 = arith.constant 0 : i32
    %c0_i32_0 = arith.constant 0 : i32
    %c0_i32_1 = arith.constant 0 : i32
    return %c0_i32, %arg0, %c0_i32_0 : i32, i32, i32
  }
  func.func @transform_1(%arg0: i32) -> (i32, i32) {
    %c0_i32 = arith.constant 0 : i32
    %c0_i32_0 = arith.constant 0 : i32
    return %arg0, %c0_i32 : i32, i32
  }
  func.func @transform_2(%arg0: i32) -> (i32, i32) {
    %c0_i32 = arith.constant 0 : i32
    %c0_i32_0 = arith.constant 0 : i32
    return %arg0, %c0_i32 : i32, i32
  }
  func.func @transform_3(%arg0: i32) -> (i32, i32) {
    %c0_i32 = arith.constant 0 : i32
    %c0_i32_0 = arith.constant 0 : i32
    return %arg0, %c0_i32 : i32, i32
  }
  func.func @transform_4(%arg0: i32) -> (i32, i32) {
    %c0_i32 = arith.constant 0 : i32
    %c0_i32_0 = arith.constant 0 : i32
    %c0_i32_1 = arith.constant 0 : i32
    return %c0_i32, %c0_i32_0 : i32, i32
  }
  func.func @transform_5(%arg0: i32) -> (i32, i32) {
    %c0_i32 = arith.constant 0 : i32
    %c0_i32_0 = arith.constant 0 : i32
    %c0_i32_1 = arith.constant 0 : i32
    return %c0_i32, %c0_i32_0 : i32, i32
  }
  func.func @transform_6(%arg0: i32) -> (i32, i32) {
    %c0_i32 = arith.constant 0 : i32
    %c0_i32_0 = arith.constant 0 : i32
    %c0_i32_1 = arith.constant 0 : i32
    return %c0_i32, %c0_i32_0 : i32, i32
  }
  func.func @transform_7(%arg0: i32) -> (i32, i32) {
    %c0_i32 = arith.constant 0 : i32
    %c0_i32_0 = arith.constant 0 : i32
    %c0_i32_1 = arith.constant 0 : i32
    return %c0_i32, %c0_i32_0 : i32, i32
  }
  func.func @transform_8(%arg0: i32) -> (i32, i32) {
    %c0_i32 = arith.constant 0 : i32
    %c0_i32_0 = arith.constant 0 : i32
    %c0_i32_1 = arith.constant 0 : i32
    return %c0_i32, %c0_i32_0 : i32, i32
  }
  func.func @transform_9(%arg0: i32) -> (i32, i32) {
    %c0_i32 = arith.constant 0 : i32
    %c0_i32_0 = arith.constant 0 : i32
    %c0_i32_1 = arith.constant 0 : i32
    return %c0_i32, %c0_i32_0 : i32, i32
  }
  func.func @transform_10(%arg0: i32) -> (i32, i32) {
    %c0_i32 = arith.constant 0 : i32
    %c0_i32_0 = arith.constant 0 : i32
    %c0_i32_1 = arith.constant 0 : i32
    return %c0_i32, %c0_i32_0 : i32, i32
  }
  func.func @transform_11(%arg0: i32) -> (i32, i32) {
    %c0_i32 = arith.constant 0 : i32
    %c0_i32_0 = arith.constant 0 : i32
    return %arg0, %c0_i32 : i32, i32
  }
  func.func @transform_12(%arg0: i32) -> (i32, i32) {
    %c0_i32 = arith.constant 0 : i32
    %c0_i32_0 = arith.constant 0 : i32
    return %arg0, %c0_i32 : i32, i32
  }
}

module attributes {stable_mosaic.version = 11 : i64} {
  func.func @entity_span_kernel(%arg0: i32, %arg1: memref<4x16x32xbf16, #tpu.memory_space<vmem>>, %arg2: memref<16x4xf32, #tpu.memory_space<vmem>>, %arg3: memref<16x128xbf16, #tpu.memory_space<vmem>>, %arg4: memref<16x1xi32, #tpu.memory_space<vmem>>, %arg5: memref<32x32xbf16, #tpu.memory_space<vmem>>, %arg6: memref<32x1xbf16, #tpu.memory_space<vmem>>, %arg7: memref<128x32xbf16, #tpu.memory_space<vmem>>, %arg8: memref<32x32xbf16, #tpu.memory_space<vmem>>, %arg9: memref<32x32xbf16, #tpu.memory_space<vmem>>, %arg10: memref<32x128xbf16, #tpu.memory_space<vmem>>, %arg11: memref<16x128xf32, #tpu.memory_space<vmem>>, %arg12: memref<16x128xbf16, #tpu.memory_space<vmem>>, %arg13: memref<8x128xf32, #tpu.memory_space<vmem>>) attributes {dimension_semantics = [#tpu.dimension_semantics<parallel>], iteration_bounds = array<i64: 2>, scalar_prefetch = 0 : i64, scratch_operands = 0 : i64, tpu.core_type = #tpu.core_type<tc>, window_params = [{transform_indices = @transform_0, window_bounds = array<i64: 4, 16, 32>}, {transform_indices = @transform_1, window_bounds = array<i64: 16, 4>}, {transform_indices = @transform_2, window_bounds = array<i64: 16, 128>}, {transform_indices = @transform_3, window_bounds = array<i64: 16, 1>}, {pipeline_mode = #tpu.pipeline_mode<synchronous>, transform_indices = @transform_4, window_bounds = array<i64: 32, 32>}, {pipeline_mode = #tpu.pipeline_mode<synchronous>, transform_indices = @transform_5, window_bounds = array<i64: 32, 1>}, {pipeline_mode = #tpu.pipeline_mode<synchronous>, transform_indices = @transform_6, window_bounds = array<i64: 128, 32>}, {pipeline_mode = #tpu.pipeline_mode<synchronous>, transform_indices = @transform_7, window_bounds = array<i64: 32, 32>}, {pipeline_mode = #tpu.pipeline_mode<synchronous>, transform_indices = @transform_8, window_bounds = array<i64: 32, 32>}, {pipeline_mode = #tpu.pipeline_mode<synchronous>, transform_indices = @transform_9, window_bounds = array<i64: 32, 128>}, {pipeline_mode = #tpu.pipeline_mode<synchronous>, transform_indices = @transform_10, window_bounds = array<i64: 16, 128>}, {transform_indices = @transform_11, window_bounds = array<i64: 16, 128>}, {transform_indices = @transform_12, window_bounds = array<i64: 8, 128>}]} {
    %c0 = arith.constant 0 : index
    %c0_0 = arith.constant 0 : index
    %0 = vector.load %arg11[%c0, %c0_0] : memref<16x128xf32, #tpu.memory_space<vmem>>, vector<1x32xf32>
    %c1 = arith.constant 1 : index
    %c0_1 = arith.constant 0 : index
    %1 = vector.load %arg11[%c1, %c0_1] : memref<16x128xf32, #tpu.memory_space<vmem>>, vector<1x32xf32>
    %c2 = arith.constant 2 : index
    %c0_2 = arith.constant 0 : index
    %2 = vector.load %arg11[%c2, %c0_2] : memref<16x128xf32, #tpu.memory_space<vmem>>, vector<1x32xf32>
    %c3 = arith.constant 3 : index
    %c0_3 = arith.constant 0 : index
    %3 = vector.load %arg11[%c3, %c0_3] : memref<16x128xf32, #tpu.memory_space<vmem>>, vector<1x1xf32>
    %c4 = arith.constant 4 : index
    %c0_4 = arith.constant 0 : index
    %4 = vector.load %arg11[%c4, %c0_4] : memref<16x128xf32, #tpu.memory_space<vmem>>, vector<1x32xf32>
    %c5 = arith.constant 5 : index
    %c0_5 = arith.constant 0 : index
    %5 = vector.load %arg11[%c5, %c0_5] : memref<16x128xf32, #tpu.memory_space<vmem>>, vector<1x32xf32>
    %c6 = arith.constant 6 : index
    %c0_6 = arith.constant 0 : index
    %6 = vector.load %arg11[%c6, %c0_6] : memref<16x128xf32, #tpu.memory_space<vmem>>, vector<1x32xf32>
    %c7 = arith.constant 7 : index
    %c0_7 = arith.constant 0 : index
    %7 = vector.load %arg11[%c7, %c0_7] : memref<16x128xf32, #tpu.memory_space<vmem>>, vector<1x32xf32>
    %c8 = arith.constant 8 : index
    %c0_8 = arith.constant 0 : index
    %8 = vector.load %arg11[%c8, %c0_8] : memref<16x128xf32, #tpu.memory_space<vmem>>, vector<1x32xf32>
    %c9 = arith.constant 9 : index
    %c0_9 = arith.constant 0 : index
    %9 = vector.load %arg11[%c9, %c0_9] : memref<16x128xf32, #tpu.memory_space<vmem>>, vector<1x32xf32>
    %c10 = arith.constant 10 : index
    %c0_10 = arith.constant 0 : index
    %10 = vector.load %arg11[%c10, %c0_10] : memref<16x128xf32, #tpu.memory_space<vmem>>, vector<1x128xf32>
    %c11 = arith.constant 11 : index
    %c0_11 = arith.constant 0 : index
    %11 = vector.load %arg11[%c11, %c0_11] : memref<16x128xf32, #tpu.memory_space<vmem>>, vector<1x128xf32>
    %c0_12 = arith.constant 0 : index
    %c0_13 = arith.constant 0 : index
    %c0_14 = arith.constant 0 : index
    %12 = vector.load %arg1[%c0_12, %c0_13, %c0_14] : memref<4x16x32xbf16, #tpu.memory_space<vmem>>, vector<4x16x32xbf16>
    %13 = vector.shape_cast %12 : vector<4x16x32xbf16> to vector<64x32xbf16>
    %c0_15 = arith.constant 0 : index
    %c0_16 = arith.constant 0 : index
    %14 = vector.load %arg5[%c0_15, %c0_16] : memref<32x32xbf16, #tpu.memory_space<vmem>>, vector<32x32xbf16>
    %cst = arith.constant dense<0.000000e+00> : vector<64x32xf32>
    %15 = tpu.matmul %13, %14, %cst {dimension_numbers = #tpu.dot_dimension_numbers<[1], [0], [0], [1], [0, 0, 1, 1], [], []>} : vector<64x32xbf16>, vector<32x32xbf16>, vector<64x32xf32> -> vector<64x32xf32>
    %16 = vector.broadcast %0 : vector<1x32xf32> to vector<64x32xf32>
    %17 = arith.addf %15, %16 : vector<64x32xf32>
    %cst_17 = arith.constant dense<0.000000e+00> : vector<64xf32>
    %18 = vector.multi_reduction <add>, %17, %cst_17 [1] : vector<64x32xf32> to vector<64xf32>
    %19 = vector.shape_cast %18 : vector<64xf32> to vector<64x1xf32>
    %cst_18 = arith.constant 3.200000e+01 : f32
    %20 = vector.broadcast %cst_18 : f32 to vector<64x1xf32>
    %21 = arith.divf %19, %20 : vector<64x1xf32>
    %22 = vector.broadcast %21 : vector<64x1xf32> to vector<64x32xf32>
    %23 = arith.subf %17, %22 : vector<64x32xf32>
    %24 = arith.mulf %23, %23 : vector<64x32xf32>
    %cst_19 = arith.constant dense<0.000000e+00> : vector<64xf32>
    %25 = vector.multi_reduction <add>, %24, %cst_19 [1] : vector<64x32xf32> to vector<64xf32>
    %26 = vector.shape_cast %25 : vector<64xf32> to vector<64x1xf32>
    %cst_20 = arith.constant 3.200000e+01 : f32
    %27 = vector.broadcast %cst_20 : f32 to vector<64x1xf32>
    %28 = arith.divf %26, %27 : vector<64x1xf32>
    %29 = vector.broadcast %21 : vector<64x1xf32> to vector<64x32xf32>
    %30 = arith.subf %17, %29 : vector<64x32xf32>
    %cst_21 = arith.constant 9.99999974E-6 : f32
    %31 = vector.broadcast %cst_21 : f32 to vector<64x1xf32>
    %32 = arith.addf %28, %31 : vector<64x1xf32>
    %33 = math.rsqrt %32 : vector<64x1xf32>
    %34 = vector.broadcast %33 : vector<64x1xf32> to vector<64x32xf32>
    %35 = arith.mulf %30, %34 : vector<64x32xf32>
    %36 = vector.broadcast %1 : vector<1x32xf32> to vector<64x32xf32>
    %37 = arith.mulf %35, %36 : vector<64x32xf32>
    %38 = vector.broadcast %2 : vector<1x32xf32> to vector<64x32xf32>
    %39 = arith.addf %37, %38 : vector<64x32xf32>
    %40 = arith.mulf %39, %39 : vector<64x32xf32>
    %41 = arith.mulf %39, %40 : vector<64x32xf32>
    %cst_22 = arith.constant 4.471500e-02 : f32
    %42 = vector.broadcast %cst_22 : f32 to vector<64x32xf32>
    %43 = arith.mulf %42, %41 : vector<64x32xf32>
    %44 = arith.addf %39, %43 : vector<64x32xf32>
    %cst_23 = arith.constant 0.797884583 : f32
    %45 = vector.broadcast %cst_23 : f32 to vector<64x32xf32>
    %46 = arith.mulf %45, %44 : vector<64x32xf32>
    %47 = math.tanh %46 : vector<64x32xf32>
    %cst_24 = arith.constant 1.000000e+00 : f32
    %48 = vector.broadcast %cst_24 : f32 to vector<64x32xf32>
    %49 = arith.addf %48, %47 : vector<64x32xf32>
    %cst_25 = arith.constant 5.000000e-01 : f32
    %50 = vector.broadcast %cst_25 : f32 to vector<64x32xf32>
    %51 = arith.mulf %50, %49 : vector<64x32xf32>
    %52 = arith.mulf %39, %51 : vector<64x32xf32>
    %53 = arith.truncf %52 : vector<64x32xf32> to vector<64x32xbf16>
    %c0_26 = arith.constant 0 : index
    %c0_27 = arith.constant 0 : index
    %54 = vector.load %arg6[%c0_26, %c0_27] : memref<32x1xbf16, #tpu.memory_space<vmem>>, vector<32x1xbf16>
    %cst_28 = arith.constant dense<0.000000e+00> : vector<64x1xf32>
    %55 = tpu.matmul %53, %54, %cst_28 {dimension_numbers = #tpu.dot_dimension_numbers<[1], [0], [0], [1], [0, 0, 1, 1], [], []>} : vector<64x32xbf16>, vector<32x1xbf16>, vector<64x1xf32> -> vector<64x1xf32>
    %56 = vector.broadcast %3 : vector<1x1xf32> to vector<64x1xf32>
    %57 = arith.addf %55, %56 : vector<64x1xf32>
    %58 = vector.shape_cast %57 : vector<64x1xf32> to vector<4x16x1xf32>
    %c0_29 = arith.constant 0 : index
    %c0_30 = arith.constant 0 : index
    %59 = vector.load %arg2[%c0_29, %c0_30] : memref<16x4xf32, #tpu.memory_space<vmem>>, vector<16x4xf32>
    %60 = vector.extract_strided_slice %59 {offsets = [0, 0], sizes = [16, 1], strides = [1, 1]} : vector<16x4xf32> to vector<16x1xf32>
    %cst_31 = arith.constant 5.000000e-01 : f32
    %61 = vector.broadcast %cst_31 : f32 to vector<16x1xf32>
    %62 = arith.cmpf ogt, %60, %61 : vector<16x1xf32>
    %63 = vector.extract_strided_slice %58 {offsets = [0, 0, 0], sizes = [1, 16, 1], strides = [1, 1, 1]} : vector<4x16x1xf32> to vector<1x16x1xf32>
    %64 = vector.shape_cast %63 : vector<1x16x1xf32> to vector<16x1xf32>
    %cst_32 = arith.constant -1.000000e+05 : f32
    %65 = vector.broadcast %cst_32 : f32 to vector<16x1xf32>
    %66 = arith.select %62, %64, %65 : vector<16x1xi1>, vector<16x1xf32>
    %67 = vector.extract_strided_slice %59 {offsets = [0, 1], sizes = [16, 1], strides = [1, 1]} : vector<16x4xf32> to vector<16x1xf32>
    %cst_33 = arith.constant 5.000000e-01 : f32
    %68 = vector.broadcast %cst_33 : f32 to vector<16x1xf32>
    %69 = arith.cmpf ogt, %67, %68 : vector<16x1xf32>
    %70 = vector.extract_strided_slice %58 {offsets = [1, 0, 0], sizes = [1, 16, 1], strides = [1, 1, 1]} : vector<4x16x1xf32> to vector<1x16x1xf32>
    %71 = vector.shape_cast %70 : vector<1x16x1xf32> to vector<16x1xf32>
    %cst_34 = arith.constant -1.000000e+05 : f32
    %72 = vector.broadcast %cst_34 : f32 to vector<16x1xf32>
    %73 = arith.select %69, %71, %72 : vector<16x1xi1>, vector<16x1xf32>
    %74 = vector.extract_strided_slice %59 {offsets = [0, 2], sizes = [16, 1], strides = [1, 1]} : vector<16x4xf32> to vector<16x1xf32>
    %cst_35 = arith.constant 5.000000e-01 : f32
    %75 = vector.broadcast %cst_35 : f32 to vector<16x1xf32>
    %76 = arith.cmpf ogt, %74, %75 : vector<16x1xf32>
    %77 = vector.extract_strided_slice %58 {offsets = [2, 0, 0], sizes = [1, 16, 1], strides = [1, 1, 1]} : vector<4x16x1xf32> to vector<1x16x1xf32>
    %78 = vector.shape_cast %77 : vector<1x16x1xf32> to vector<16x1xf32>
    %cst_36 = arith.constant -1.000000e+05 : f32
    %79 = vector.broadcast %cst_36 : f32 to vector<16x1xf32>
    %80 = arith.select %76, %78, %79 : vector<16x1xi1>, vector<16x1xf32>
    %81 = vector.extract_strided_slice %59 {offsets = [0, 3], sizes = [16, 1], strides = [1, 1]} : vector<16x4xf32> to vector<16x1xf32>
    %cst_37 = arith.constant 5.000000e-01 : f32
    %82 = vector.broadcast %cst_37 : f32 to vector<16x1xf32>
    %83 = arith.cmpf ogt, %81, %82 : vector<16x1xf32>
    %84 = vector.extract_strided_slice %58 {offsets = [3, 0, 0], sizes = [1, 16, 1], strides = [1, 1, 1]} : vector<4x16x1xf32> to vector<1x16x1xf32>
    %85 = vector.shape_cast %84 : vector<1x16x1xf32> to vector<16x1xf32>
    %cst_38 = arith.constant -1.000000e+05 : f32
    %86 = vector.broadcast %cst_38 : f32 to vector<16x1xf32>
    %87 = arith.select %83, %85, %86 : vector<16x1xi1>, vector<16x1xf32>
    %88 = arith.maximumf %66, %73 : vector<16x1xf32>
    %89 = arith.maximumf %88, %80 : vector<16x1xf32>
    %90 = arith.maximumf %89, %87 : vector<16x1xf32>
    %91 = arith.subf %66, %90 : vector<16x1xf32>
    %92 = math.exp %91 : vector<16x1xf32>
    %93 = arith.subf %73, %90 : vector<16x1xf32>
    %94 = math.exp %93 : vector<16x1xf32>
    %95 = arith.subf %80, %90 : vector<16x1xf32>
    %96 = math.exp %95 : vector<16x1xf32>
    %97 = arith.subf %87, %90 : vector<16x1xf32>
    %98 = math.exp %97 : vector<16x1xf32>
    %99 = arith.addf %92, %94 : vector<16x1xf32>
    %100 = arith.addf %99, %96 : vector<16x1xf32>
    %101 = arith.addf %100, %98 : vector<16x1xf32>
    %102 = tpu.reciprocal %101 {approx = true} : vector<16x1xf32> -> vector<16x1xf32>
    %103 = arith.mulf %92, %102 : vector<16x1xf32>
    %104 = vector.extract_strided_slice %12 {offsets = [0, 0, 0], sizes = [1, 16, 32], strides = [1, 1, 1]} : vector<4x16x32xbf16> to vector<1x16x32xbf16>
    %105 = vector.shape_cast %104 : vector<1x16x32xbf16> to vector<16x32xbf16>
    %106 = arith.extf %105 : vector<16x32xbf16> to vector<16x32xf32>
    %107 = vector.broadcast %103 : vector<16x1xf32> to vector<16x32xf32>
    %108 = arith.mulf %107, %106 : vector<16x32xf32>
    %109 = arith.mulf %94, %102 : vector<16x1xf32>
    %110 = vector.extract_strided_slice %12 {offsets = [1, 0, 0], sizes = [1, 16, 32], strides = [1, 1, 1]} : vector<4x16x32xbf16> to vector<1x16x32xbf16>
    %111 = vector.shape_cast %110 : vector<1x16x32xbf16> to vector<16x32xbf16>
    %112 = arith.extf %111 : vector<16x32xbf16> to vector<16x32xf32>
    %113 = vector.broadcast %109 : vector<16x1xf32> to vector<16x32xf32>
    %114 = arith.mulf %113, %112 : vector<16x32xf32>
    %115 = arith.addf %108, %114 : vector<16x32xf32>
    %116 = arith.mulf %96, %102 : vector<16x1xf32>
    %117 = vector.extract_strided_slice %12 {offsets = [2, 0, 0], sizes = [1, 16, 32], strides = [1, 1, 1]} : vector<4x16x32xbf16> to vector<1x16x32xbf16>
    %118 = vector.shape_cast %117 : vector<1x16x32xbf16> to vector<16x32xbf16>
    %119 = arith.extf %118 : vector<16x32xbf16> to vector<16x32xf32>
    %120 = vector.broadcast %116 : vector<16x1xf32> to vector<16x32xf32>
    %121 = arith.mulf %120, %119 : vector<16x32xf32>
    %122 = arith.addf %115, %121 : vector<16x32xf32>
    %123 = arith.mulf %98, %102 : vector<16x1xf32>
    %124 = vector.extract_strided_slice %12 {offsets = [3, 0, 0], sizes = [1, 16, 32], strides = [1, 1, 1]} : vector<4x16x32xbf16> to vector<1x16x32xbf16>
    %125 = vector.shape_cast %124 : vector<1x16x32xbf16> to vector<16x32xbf16>
    %126 = arith.extf %125 : vector<16x32xbf16> to vector<16x32xf32>
    %127 = vector.broadcast %123 : vector<16x1xf32> to vector<16x32xf32>
    %128 = arith.mulf %127, %126 : vector<16x32xf32>
    %129 = arith.addf %122, %128 : vector<16x32xf32>
    %c0_39 = arith.constant 0 : index
    %c0_40 = arith.constant 0 : index
    %130 = vector.load %arg3[%c0_39, %c0_40] : memref<16x128xbf16, #tpu.memory_space<vmem>>, vector<16x128xbf16>
    %c0_41 = arith.constant 0 : index
    %c0_42 = arith.constant 0 : index
    %131 = vector.load %arg7[%c0_41, %c0_42] : memref<128x32xbf16, #tpu.memory_space<vmem>>, vector<128x32xbf16>
    %cst_43 = arith.constant dense<0.000000e+00> : vector<16x32xf32>
    %132 = tpu.matmul %130, %131, %cst_43 {dimension_numbers = #tpu.dot_dimension_numbers<[1], [0], [0], [1], [0, 0, 1, 1], [], []>} : vector<16x128xbf16>, vector<128x32xbf16>, vector<16x32xf32> -> vector<16x32xf32>
    %133 = arith.truncf %129 : vector<16x32xf32> to vector<16x32xbf16>
    %c0_44 = arith.constant 0 : index
    %c0_45 = arith.constant 0 : index
    %134 = vector.load %arg8[%c0_44, %c0_45] : memref<32x32xbf16, #tpu.memory_space<vmem>>, vector<32x32xbf16>
    %cst_46 = arith.constant dense<0.000000e+00> : vector<16x32xf32>
    %135 = tpu.matmul %133, %134, %cst_46 {dimension_numbers = #tpu.dot_dimension_numbers<[1], [0], [0], [1], [0, 0, 1, 1], [], []>} : vector<16x32xbf16>, vector<32x32xbf16>, vector<16x32xf32> -> vector<16x32xf32>
    %136 = arith.addf %132, %135 : vector<16x32xf32>
    %137 = vector.broadcast %4 : vector<1x32xf32> to vector<16x32xf32>
    %138 = arith.addf %136, %137 : vector<16x32xf32>
    %cst_47 = arith.constant dense<0.000000e+00> : vector<16xf32>
    %139 = vector.multi_reduction <add>, %138, %cst_47 [1] : vector<16x32xf32> to vector<16xf32>
    %140 = vector.shape_cast %139 : vector<16xf32> to vector<16x1xf32>
    %cst_48 = arith.constant 3.200000e+01 : f32
    %141 = vector.broadcast %cst_48 : f32 to vector<16x1xf32>
    %142 = arith.divf %140, %141 : vector<16x1xf32>
    %143 = vector.broadcast %142 : vector<16x1xf32> to vector<16x32xf32>
    %144 = arith.subf %138, %143 : vector<16x32xf32>
    %145 = arith.mulf %144, %144 : vector<16x32xf32>
    %cst_49 = arith.constant dense<0.000000e+00> : vector<16xf32>
    %146 = vector.multi_reduction <add>, %145, %cst_49 [1] : vector<16x32xf32> to vector<16xf32>
    %147 = vector.shape_cast %146 : vector<16xf32> to vector<16x1xf32>
    %cst_50 = arith.constant 3.200000e+01 : f32
    %148 = vector.broadcast %cst_50 : f32 to vector<16x1xf32>
    %149 = arith.divf %147, %148 : vector<16x1xf32>
    %150 = vector.broadcast %142 : vector<16x1xf32> to vector<16x32xf32>
    %151 = arith.subf %138, %150 : vector<16x32xf32>
    %cst_51 = arith.constant 9.99999974E-6 : f32
    %152 = vector.broadcast %cst_51 : f32 to vector<16x1xf32>
    %153 = arith.addf %149, %152 : vector<16x1xf32>
    %154 = math.rsqrt %153 : vector<16x1xf32>
    %155 = vector.broadcast %154 : vector<16x1xf32> to vector<16x32xf32>
    %156 = arith.mulf %151, %155 : vector<16x32xf32>
    %157 = vector.broadcast %5 : vector<1x32xf32> to vector<16x32xf32>
    %158 = arith.mulf %156, %157 : vector<16x32xf32>
    %159 = vector.broadcast %6 : vector<1x32xf32> to vector<16x32xf32>
    %160 = arith.addf %158, %159 : vector<16x32xf32>
    %161 = arith.mulf %160, %160 : vector<16x32xf32>
    %162 = arith.mulf %160, %161 : vector<16x32xf32>
    %cst_52 = arith.constant 4.471500e-02 : f32
    %163 = vector.broadcast %cst_52 : f32 to vector<16x32xf32>
    %164 = arith.mulf %163, %162 : vector<16x32xf32>
    %165 = arith.addf %160, %164 : vector<16x32xf32>
    %cst_53 = arith.constant 0.797884583 : f32
    %166 = vector.broadcast %cst_53 : f32 to vector<16x32xf32>
    %167 = arith.mulf %166, %165 : vector<16x32xf32>
    %168 = math.tanh %167 : vector<16x32xf32>
    %cst_54 = arith.constant 1.000000e+00 : f32
    %169 = vector.broadcast %cst_54 : f32 to vector<16x32xf32>
    %170 = arith.addf %169, %168 : vector<16x32xf32>
    %cst_55 = arith.constant 5.000000e-01 : f32
    %171 = vector.broadcast %cst_55 : f32 to vector<16x32xf32>
    %172 = arith.mulf %171, %170 : vector<16x32xf32>
    %173 = arith.mulf %160, %172 : vector<16x32xf32>
    %174 = arith.truncf %173 : vector<16x32xf32> to vector<16x32xbf16>
    %c0_56 = arith.constant 0 : index
    %c0_57 = arith.constant 0 : index
    %175 = vector.load %arg9[%c0_56, %c0_57] : memref<32x32xbf16, #tpu.memory_space<vmem>>, vector<32x32xbf16>
    %cst_58 = arith.constant dense<0.000000e+00> : vector<16x32xf32>
    %176 = tpu.matmul %174, %175, %cst_58 {dimension_numbers = #tpu.dot_dimension_numbers<[1], [0], [0], [1], [0, 0, 1, 1], [], []>} : vector<16x32xbf16>, vector<32x32xbf16>, vector<16x32xf32> -> vector<16x32xf32>
    %177 = vector.broadcast %7 : vector<1x32xf32> to vector<16x32xf32>
    %178 = arith.addf %176, %177 : vector<16x32xf32>
    %cst_59 = arith.constant dense<0.000000e+00> : vector<16xf32>
    %179 = vector.multi_reduction <add>, %178, %cst_59 [1] : vector<16x32xf32> to vector<16xf32>
    %180 = vector.shape_cast %179 : vector<16xf32> to vector<16x1xf32>
    %cst_60 = arith.constant 3.200000e+01 : f32
    %181 = vector.broadcast %cst_60 : f32 to vector<16x1xf32>
    %182 = arith.divf %180, %181 : vector<16x1xf32>
    %183 = vector.broadcast %182 : vector<16x1xf32> to vector<16x32xf32>
    %184 = arith.subf %178, %183 : vector<16x32xf32>
    %185 = arith.mulf %184, %184 : vector<16x32xf32>
    %cst_61 = arith.constant dense<0.000000e+00> : vector<16xf32>
    %186 = vector.multi_reduction <add>, %185, %cst_61 [1] : vector<16x32xf32> to vector<16xf32>
    %187 = vector.shape_cast %186 : vector<16xf32> to vector<16x1xf32>
    %cst_62 = arith.constant 3.200000e+01 : f32
    %188 = vector.broadcast %cst_62 : f32 to vector<16x1xf32>
    %189 = arith.divf %187, %188 : vector<16x1xf32>
    %190 = vector.broadcast %182 : vector<16x1xf32> to vector<16x32xf32>
    %191 = arith.subf %178, %190 : vector<16x32xf32>
    %cst_63 = arith.constant 9.99999974E-6 : f32
    %192 = vector.broadcast %cst_63 : f32 to vector<16x1xf32>
    %193 = arith.addf %189, %192 : vector<16x1xf32>
    %194 = math.rsqrt %193 : vector<16x1xf32>
    %195 = vector.broadcast %194 : vector<16x1xf32> to vector<16x32xf32>
    %196 = arith.mulf %191, %195 : vector<16x32xf32>
    %197 = vector.broadcast %8 : vector<1x32xf32> to vector<16x32xf32>
    %198 = arith.mulf %196, %197 : vector<16x32xf32>
    %199 = vector.broadcast %9 : vector<1x32xf32> to vector<16x32xf32>
    %200 = arith.addf %198, %199 : vector<16x32xf32>
    %201 = arith.mulf %200, %200 : vector<16x32xf32>
    %202 = arith.mulf %200, %201 : vector<16x32xf32>
    %cst_64 = arith.constant 4.471500e-02 : f32
    %203 = vector.broadcast %cst_64 : f32 to vector<16x32xf32>
    %204 = arith.mulf %203, %202 : vector<16x32xf32>
    %205 = arith.addf %200, %204 : vector<16x32xf32>
    %cst_65 = arith.constant 0.797884583 : f32
    %206 = vector.broadcast %cst_65 : f32 to vector<16x32xf32>
    %207 = arith.mulf %206, %205 : vector<16x32xf32>
    %208 = math.tanh %207 : vector<16x32xf32>
    %cst_66 = arith.constant 1.000000e+00 : f32
    %209 = vector.broadcast %cst_66 : f32 to vector<16x32xf32>
    %210 = arith.addf %209, %208 : vector<16x32xf32>
    %cst_67 = arith.constant 5.000000e-01 : f32
    %211 = vector.broadcast %cst_67 : f32 to vector<16x32xf32>
    %212 = arith.mulf %211, %210 : vector<16x32xf32>
    %213 = arith.mulf %200, %212 : vector<16x32xf32>
    %214 = arith.truncf %213 : vector<16x32xf32> to vector<16x32xbf16>
    %c0_68 = arith.constant 0 : index
    %c0_69 = arith.constant 0 : index
    %215 = vector.load %arg10[%c0_68, %c0_69] : memref<32x128xbf16, #tpu.memory_space<vmem>>, vector<32x128xbf16>
    %cst_70 = arith.constant dense<0.000000e+00> : vector<16x128xf32>
    %216 = tpu.matmul %214, %215, %cst_70 {dimension_numbers = #tpu.dot_dimension_numbers<[1], [0], [0], [1], [0, 0, 1, 1], [], []>} : vector<16x32xbf16>, vector<32x128xbf16>, vector<16x128xf32> -> vector<16x128xf32>
    %217 = vector.broadcast %10 : vector<1x128xf32> to vector<16x128xf32>
    %218 = arith.addf %216, %217 : vector<16x128xf32>
    %219 = arith.truncf %218 : vector<16x128xf32> to vector<16x128xbf16>
    %c0_71 = arith.constant 0 : index
    %c0_72 = arith.constant 0 : index
    %220 = vector.load %arg12[%c0_71, %c0_72] : memref<16x128xbf16, #tpu.memory_space<vmem>>, vector<16x128xbf16>
    tpu.vector_store %arg12[%c0_71, %c0_72], %219 {strides = array<i32>} : memref<16x128xbf16, #tpu.memory_space<vmem>>, vector<16x128xbf16>,
    %221 = tpu.iota {dimensions = array<i32: 1>} : vector<16x128xi32>
    %c0_73 = arith.constant 0 : index
    %c0_74 = arith.constant 0 : index
    %222 = vector.load %arg4[%c0_73, %c0_74] : memref<16x1xi32, #tpu.memory_space<vmem>>, vector<16x1xi32>
    %223 = vector.broadcast %222 : vector<16x1xi32> to vector<16x128xi32>
    %224 = arith.cmpi eq, %221, %223 : vector<16x128xi32>
    %225 = arith.extui %224 : vector<16x128xi1> to vector<16x128xi32>
    %226 = arith.sitofp %225 : vector<16x128xi32> to vector<16x128xf32>
    %c4_i32 = arith.constant 4 : i32
    %227 = vector.broadcast %c4_i32 : i32 to vector<16x128xi32>
    %228 = arith.cmpi slt, %221, %227 : vector<16x128xi32>
    %cst_75 = arith.constant -1.000000e+30 : f32
    %229 = vector.broadcast %cst_75 : f32 to vector<16x128xf32>
    %230 = arith.select %228, %218, %229 : vector<16x128xi1>, vector<16x128xf32>
    %cst_76 = arith.constant dense<0xFF800000> : vector<16xf32>
    %231 = vector.multi_reduction <maximumf>, %230, %cst_76 [1] : vector<16x128xf32> to vector<16xf32>
    %232 = vector.shape_cast %231 : vector<16xf32> to vector<16x1xf32>
    %233 = vector.broadcast %232 : vector<16x1xf32> to vector<16x128xf32>
    %234 = arith.subf %230, %233 : vector<16x128xf32>
    %235 = math.exp %234 : vector<16x128xf32>
    %cst_77 = arith.constant dense<0.000000e+00> : vector<16xf32>
    %236 = vector.multi_reduction <add>, %235, %cst_77 [1] : vector<16x128xf32> to vector<16xf32>
    %237 = vector.shape_cast %236 : vector<16xf32> to vector<16x1xf32>
    %238 = math.log %237 : vector<16x1xf32>
    %239 = arith.addf %232, %238 : vector<16x1xf32>
    %240 = arith.mulf %226, %218 : vector<16x128xf32>
    %cst_78 = arith.constant dense<0.000000e+00> : vector<16xf32>
    %241 = vector.multi_reduction <add>, %240, %cst_78 [1] : vector<16x128xf32> to vector<16xf32>
    %242 = vector.shape_cast %241 : vector<16xf32> to vector<16x1xf32>
    %243 = arith.subf %239, %242 : vector<16x1xf32>
    %244 = vector.broadcast %11 : vector<1x128xf32> to vector<16x128xf32>
    %245 = arith.mulf %226, %244 : vector<16x128xf32>
    %cst_79 = arith.constant dense<0.000000e+00> : vector<16xf32>
    %246 = vector.multi_reduction <add>, %245, %cst_79 [1] : vector<16x128xf32> to vector<16xf32>
    %247 = vector.shape_cast %246 : vector<16xf32> to vector<16x1xf32>
    %248 = arith.mulf %247, %243 : vector<16x1xf32>
    %cst_80 = arith.constant dense<0.000000e+00> : vector<1xf32>
    %249 = vector.multi_reduction <add>, %248, %cst_80 [0] : vector<16x1xf32> to vector<1xf32>
    %250 = vector.shape_cast %249 : vector<1xf32> to vector<1x1xf32>
    %cst_81 = arith.constant dense<0.000000e+00> : vector<1xf32>
    %251 = vector.multi_reduction <add>, %247, %cst_81 [0] : vector<16x1xf32> to vector<1xf32>
    %252 = vector.shape_cast %251 : vector<1xf32> to vector<1x1xf32>
    %253 = tpu.iota {dimensions = array<i32: 0>} : vector<8x128xi32>
    %254 = tpu.iota {dimensions = array<i32: 1>} : vector<8x128xi32>
    %c0_i32 = arith.constant 0 : i32
    %255 = vector.broadcast %c0_i32 : i32 to vector<8x128xi32>
    %256 = arith.cmpi eq, %253, %255 : vector<8x128xi32>
    %c0_i32_82 = arith.constant 0 : i32
    %257 = vector.broadcast %c0_i32_82 : i32 to vector<8x128xi32>
    %258 = arith.cmpi eq, %254, %257 : vector<8x128xi32>
    %259 = arith.andi %256, %258 : vector<8x128xi1>
    %c0_i32_83 = arith.constant 0 : i32
    %260 = vector.broadcast %c0_i32_83 : i32 to vector<8x128xi32>
    %261 = arith.cmpi eq, %253, %260 : vector<8x128xi32>
    %c1_i32 = arith.constant 1 : i32
    %262 = vector.broadcast %c1_i32 : i32 to vector<8x128xi32>
    %263 = arith.cmpi eq, %254, %262 : vector<8x128xi32>
    %264 = arith.andi %261, %263 : vector<8x128xi1>
    %cst_84 = arith.constant 0.000000e+00 : f32
    %265 = vector.shape_cast %252 : vector<1x1xf32> to vector<1x1xf32>
    %266 = vector.broadcast %265 : vector<1x1xf32> to vector<8x128xf32>
    %267 = vector.broadcast %cst_84 : f32 to vector<8x128xf32>
    %268 = arith.select %264, %266, %267 : vector<8x128xi1>, vector<8x128xf32>
    %269 = vector.shape_cast %250 : vector<1x1xf32> to vector<1x1xf32>
    %270 = vector.broadcast %269 : vector<1x1xf32> to vector<8x128xf32>
    %271 = arith.select %259, %270, %268 : vector<8x128xi1>, vector<8x128xf32>
    %c0_85 = arith.constant 0 : index
    %c0_86 = arith.constant 0 : index
    %272 = vector.load %arg13[%c0_85, %c0_86] : memref<8x128xf32, #tpu.memory_space<vmem>>, vector<8x128xf32>
    tpu.vector_store %arg13[%c0_85, %c0_86], %271 {strides = array<i32>} : memref<8x128xf32, #tpu.memory_space<vmem>>, vector<8x128xf32>,
    return
  }
  func.func @transform_0(%arg0: i32) -> (i32, i32, i32) {
    %c0_i32 = arith.constant 0 : i32
    %c0_i32_0 = arith.constant 0 : i32
    %c0_i32_1 = arith.constant 0 : i32
    return %c0_i32, %arg0, %c0_i32_0 : i32, i32, i32
  }
  func.func @transform_1(%arg0: i32) -> (i32, i32) {
    %c0_i32 = arith.constant 0 : i32
    %c0_i32_0 = arith.constant 0 : i32
    return %arg0, %c0_i32 : i32, i32
  }
  func.func @transform_2(%arg0: i32) -> (i32, i32) {
    %c0_i32 = arith.constant 0 : i32
    %c0_i32_0 = arith.constant 0 : i32
    return %arg0, %c0_i32 : i32, i32
  }
  func.func @transform_3(%arg0: i32) -> (i32, i32) {
    %c0_i32 = arith.constant 0 : i32
    %c0_i32_0 = arith.constant 0 : i32
    return %arg0, %c0_i32 : i32, i32
  }
  func.func @transform_4(%arg0: i32) -> (i32, i32) {
    %c0_i32 = arith.constant 0 : i32
    %c0_i32_0 = arith.constant 0 : i32
    %c0_i32_1 = arith.constant 0 : i32
    return %c0_i32, %c0_i32_0 : i32, i32
  }
  func.func @transform_5(%arg0: i32) -> (i32, i32) {
    %c0_i32 = arith.constant 0 : i32
    %c0_i32_0 = arith.constant 0 : i32
    %c0_i32_1 = arith.constant 0 : i32
    return %c0_i32, %c0_i32_0 : i32, i32
  }
  func.func @transform_6(%arg0: i32) -> (i32, i32) {
    %c0_i32 = arith.constant 0 : i32
    %c0_i32_0 = arith.constant 0 : i32
    %c0_i32_1 = arith.constant 0 : i32
    return %c0_i32, %c0_i32_0 : i32, i32
  }
  func.func @transform_7(%arg0: i32) -> (i32, i32) {
    %c0_i32 = arith.constant 0 : i32
    %c0_i32_0 = arith.constant 0 : i32
    %c0_i32_1 = arith.constant 0 : i32
    return %c0_i32, %c0_i32_0 : i32, i32
  }
  func.func @transform_8(%arg0: i32) -> (i32, i32) {
    %c0_i32 = arith.constant 0 : i32
    %c0_i32_0 = arith.constant 0 : i32
    %c0_i32_1 = arith.constant 0 : i32
    return %c0_i32, %c0_i32_0 : i32, i32
  }
  func.func @transform_9(%arg0: i32) -> (i32, i32) {
    %c0_i32 = arith.constant 0 : i32
    %c0_i32_0 = arith.constant 0 : i32
    %c0_i32_1 = arith.constant 0 : i32
    return %c0_i32, %c0_i32_0 : i32, i32
  }
  func.func @transform_10(%arg0: i32) -> (i32, i32) {
    %c0_i32 = arith.constant 0 : i32
    %c0_i32_0 = arith.constant 0 : i32
    %c0_i32_1 = arith.constant 0 : i32
    return %c0_i32, %c0_i32_0 : i32, i32
  }
  func.func @transform_11(%arg0: i32) -> (i32, i32) {
    %c0_i32 = arith.constant 0 : i32
    %c0_i32_0 = arith.constant 0 : i32
    return %arg0, %c0_i32 : i32, i32
  }
  func.func @transform_12(%arg0: i32) -> (i32, i32) {
    %c0_i32 = arith.constant 0 : i32
    %c0_i32_0 = arith.constant 0 : i32
    return %arg0, %c0_i32 : i32, i32
  }
}

</mosaic_0001>

<llo_original>
// kernel: tpu_custom_call.1
$region0: #{tpu_custom_call.1}
  #allocation0 [shape = 'u32[]', space=smem, size = 0x4, offset = 0x4, fixed_abs, tag = 'smem constant byte address 0x4 - core index']
  #allocation1 [shape = 'u32[144,128]{1,0:T(1,128)}', space=vmem, size = 0x12000, scoped, tag = 'internal scratch']
  %s0 = inlined_call_operand.vmem [shape: bf16[4,32,32], index: 0, kind: input, shape index: {}]
  %s1 = inlined_call_operand.vmem [shape: f32[32,4], index: 1, kind: input, shape index: {}]
  %s2 = inlined_call_operand.vmem [shape: bf16[32,128], index: 2, kind: input, shape index: {}]
  %s3 = inlined_call_operand.vmem [shape: s32[32,1], index: 3, kind: input, shape index: {}]
  %s4 = inlined_call_operand.vmem [shape: bf16[32,32], index: 4, kind: input, shape index: {}]
  %s5 = inlined_call_operand.vmem [shape: bf16[32,1], index: 5, kind: input, shape index: {}]
  %s6 = inlined_call_operand.vmem [shape: bf16[128,32], index: 6, kind: input, shape index: {}]
  %s7 = inlined_call_operand.vmem [shape: bf16[32,32], index: 7, kind: input, shape index: {}]
  %s8 = inlined_call_operand.vmem [shape: bf16[32,32], index: 8, kind: input, shape index: {}]
  %s9 = inlined_call_operand.vmem [shape: bf16[32,128], index: 9, kind: input, shape index: {}]
  %s10 = inlined_call_operand.vmem [shape: f32[16,128], index: 10, kind: input, shape index: {}]
  %s11 = inlined_call_operand.hbm [shape: bf16[32,128], index: 11, kind: output, shape index: {0}]
  %s12 = inlined_call_operand.hbm [shape: f32[16,128], index: 12, kind: output, shape index: {1}]
  %13 = xla_tuple %s11, %s12
  %s14 = sld [smem:[#allocation0]]
  $region126: #{tpu_custom_call.1} parent=0
    _
  %s16 = ssub.s32 1, %s14
  %s17 = scalar_select 0, %s16, %s14
  $region1: #{tpu_custom_call.1} parent=0
    #allocation2 [shape = 'u8[32768]{0}', space=vmem, size = 0x8000, scoped, tag = 'input window, operand 0']
    #allocation3 [shape = 'u8[8192]{0}', space=vmem, size = 0x2000, scoped, tag = 'output window, operand 0']
    #allocation4 [shape = 's32[2]{0}', space=sflag, size = 0x8, scoped, tag = 'scoped memory for tpu_custom_call.1']
    #allocation5 [shape = 'u8[8192]{0}', space=vmem, size = 0x2000, scoped, tag = 'output window, operand 1']
    #allocation6 [shape = 's32[2]{0}', space=sflag, size = 0x8, scoped, tag = 'scoped memory for tpu_custom_call.1']
    %18 = vsyncpa [#allocation4], 0
    %s19 = scalar_lea.sflag [#allocation4], 1
    %20 = vsyncpa %s19, 0
    %21 = vsyncpa [#allocation6], 0
    %s22 = scalar_lea.sflag [#allocation6], 1
    %23 = vsyncpa %s22, 0
    loop: start=0, step=1, limit=4
    $region2: #{tpu_custom_call.1} parent=1 // loop_pre_header
      _
    $region3: #{tpu_custom_call.1} parent=1 // loop_header
      %s25 = sphi 0, %s29
      %p26 = scmp.ge.s32.totalorder %s25, 4
      %s35 = sphi 0, %s37
      %s38 = sphi 0, %s35
      %s39 = sphi 0, %s38
      %s55 = sphi 0, %s39
      %s61 = sphi 0, %s63
      %s64 = sphi 0, %s61
      %s65 = sphi 0, %s64
      %s81 = sphi 0, %s65
      %s87 = sphi 0, %s89
      %s90 = sphi 0, %s87
      %s91 = sphi 0, %s90
      %s107 = sphi 0, %s91
      %s113 = sphi 0, %s115
      %s116 = sphi 0, %s113
      %s117 = sphi 0, %s116
      %s133 = sphi 0, %s117
      %s137 = sphi 0, %s137
      %s139 = sphi 0, %s137
      %s140 = sphi 0, %s139
      %s154 = sphi 0, %s140
      %s158 = sphi 0, %s158
      %s160 = sphi 0, %s158
      %s161 = sphi 0, %s160
      %s175 = sphi 0, %s161
      %s179 = sphi 0, %s179
      %s181 = sphi 0, %s179
      %s182 = sphi 0, %s181
      %s196 = sphi 0, %s182
      %s200 = sphi 0, %s200
      %s202 = sphi 0, %s200
      %s203 = sphi 0, %s202
      %s217 = sphi 0, %s203
      %s221 = sphi 0, %s221
      %s223 = sphi 0, %s221
      %s224 = sphi 0, %s223
      %s238 = sphi 0, %s224
      %s242 = sphi 0, %s242
      %s244 = sphi 0, %s242
      %s245 = sphi 0, %s244
      %s259 = sphi 0, %s245
      %s263 = sphi 0, %s263
      %s265 = sphi 0, %s263
      %s266 = sphi 0, %s265
      %s280 = sphi 0, %s266
      %s286 = sphi 0, %s288
      %s289 = sphi 0, %s286
      %s290 = sphi 0, %s289
      %s306 = sphi 0, %s290
      %s312 = sphi 0, %s314
      %s315 = sphi 0, %s312
      %s316 = sphi 0, %s315
      %s332 = sphi 0, %s316
    $region4: #{tpu_custom_call.1} parent=1 // loop_header_branch
      %28 = sbr.rel (%p26) target = $region8
    $region5: #{tpu_custom_call.1} parent=1 // loop_body
      %s30 = ssub.s32 %s25, 1
      %s31 = ssub.s32 %s25, 2
      %s32 = sadd.s32 %s25, 1
      %s33 = ssub.s32 %s25, %s32
      %p34 = scmp.eq.s32.totalorder %s33, 0
      %s36 = sadd.s32 %s35, 1
      %s37 = scalar_select %p34, %s35, %s36
      %p40 = pneg %p34
      %p41 = scmp.eq.s32.totalorder %s25, 1
      %p42 = por %p40, %p41
      %p43 = scmp.ne.s32.totalorder %s35, %s38
      %p44 = scmp.eq.s32.totalorder %s25, 0
      %p45 = por %p43, %p44
      %p46 = scmp.ne.s32.totalorder %s35, %s38
      %p47 = scmp.eq.s32.totalorder %s30, 1
      %p48 = por %p46, %p47
      %p49 = scmp.ne.s32.totalorder %s38, %s39
      %p50 = scmp.eq.s32.totalorder %s30, 0
      %p51 = por %p49, %p50
      %p52 = scmp.ne.s32.totalorder %s38, %s39
      %p53 = scmp.eq.s32.totalorder %s31, 1
      %p54 = por %p52, %p53
      %p56 = scmp.ne.s32.totalorder %s39, %s55
      %p57 = scmp.eq.s32.totalorder %s31, 0
      %p58 = por %p56, %p57
      %s59 = ssub.s32 %s25, %s32
      %p60 = scmp.eq.s32.totalorder %s59, 0
      %s62 = sadd.s32 %s61, 1
      %s63 = scalar_select %p60, %s61, %s62
      %p66 = pneg %p60
      %p67 = scmp.eq.s32.totalorder %s25, 1
      %p68 = por %p66, %p67
      %p69 = scmp.ne.s32.totalorder %s61, %s64
      %p70 = scmp.eq.s32.totalorder %s25, 0
      %p71 = por %p69, %p70
      %p72 = scmp.ne.s32.totalorder %s61, %s64
      %p73 = scmp.eq.s32.totalorder %s30, 1
      %p74 = por %p72, %p73
      %p75 = scmp.ne.s32.totalorder %s64, %s65
      %p76 = scmp.eq.s32.totalorder %s30, 0
      %p77 = por %p75, %p76
      %p78 = scmp.ne.s32.totalorder %s64, %s65
      %p79 = scmp.eq.s32.totalorder %s31, 1
      %p80 = por %p78, %p79
      %p82 = scmp.ne.s32.totalorder %s65, %s81
      %p83 = scmp.eq.s32.totalorder %s31, 0
      %p84 = por %p82, %p83
      %s85 = ssub.s32 %s25, %s32
      %p86 = scmp.eq.s32.totalorder %s85, 0
      %s88 = sadd.s32 %s87, 1
      %s89 = scalar_select %p86, %s87, %s88
      %p92 = pneg %p86
      %p93 = scmp.eq.s32.totalorder %s25, 1
      %p94 = por %p92, %p93
      %p95 = scmp.ne.s32.totalorder %s87, %s90
      %p96 = scmp.eq.s32.totalorder %s25, 0
      %p97 = por %p95, %p96
      %p98 = scmp.ne.s32.totalorder %s87, %s90
      %p99 = scmp.eq.s32.totalorder %s30, 1
      %p100 = por %p98, %p99
      %p101 = scmp.ne.s32.totalorder %s90, %s91
      %p102 = scmp.eq.s32.totalorder %s30, 0
      %p103 = por %p101, %p102
      %p104 = scmp.ne.s32.totalorder %s90, %s91
      %p105 = scmp.eq.s32.totalorder %s31, 1
      %p106 = por %p104, %p105
      %p108 = scmp.ne.s32.totalorder %s91, %s107
      %p109 = scmp.eq.s32.totalorder %s31, 0
      %p110 = por %p108, %p109
      %s111 = ssub.s32 %s25, %s32
      %p112 = scmp.eq.s32.totalorder %s111, 0
      %s114 = sadd.s32 %s113, 1
      %s115 = scalar_select %p112, %s113, %s114
      %p118 = pneg %p112
      %p119 = scmp.eq.s32.totalorder %s25, 1
      %p120 = por %p118, %p119
      %p121 = scmp.ne.s32.totalorder %s113, %s116
      %p122 = scmp.eq.s32.totalorder %s25, 0
      %p123 = por %p121, %p122
      %p124 = scmp.ne.s32.totalorder %s113, %s116
      %p125 = scmp.eq.s32.totalorder %s30, 1
      %p126 = por %p124, %p125
      %p127 = scmp.ne.s32.totalorder %s116, %s117
      %p128 = scmp.eq.s32.totalorder %s30, 0
      %p129 = por %p127, %p128
      %p130 = scmp.ne.s32.totalorder %s116, %s117
      %p131 = scmp.eq.s32.totalorder %s31, 1
      %p132 = por %p130, %p131
      %p134 = scmp.ne.s32.totalorder %s117, %s133
      %p135 = scmp.eq.s32.totalorder %s31, 0
      %p136 = por %p134, %p135
      %s138 = sadd.s32 %s137, 1
      %p141 = scmp.eq.s32.totalorder %s25, 1
      %p142 = scmp.ne.s32.totalorder %s137, %s139
      %p143 = scmp.eq.s32.totalorder %s25, 0
      %p144 = por %p142, %p143
      %p145 = scmp.ne.s32.totalorder %s137, %s139
      %p146 = scmp.eq.s32.totalorder %s30, 1
      %p147 = por %p145, %p146
      %p148 = scmp.ne.s32.totalorder %s139, %s140
      %p149 = scmp.eq.s32.totalorder %s30, 0
      %p150 = por %p148, %p149
      %p151 = scmp.ne.s32.totalorder %s139, %s140
      %p152 = scmp.eq.s32.totalorder %s31, 1
      %p153 = por %p151, %p152
      %p155 = scmp.ne.s32.totalorder %s140, %s154
      %p156 = scmp.eq.s32.totalorder %s31, 0
      %p157 = por %p155, %p156
      %s159 = sadd.s32 %s158, 1
      %p162 = scmp.eq.s32.totalorder %s25, 1
      %p163 = scmp.ne.s32.totalorder %s158, %s160
      %p164 = scmp.eq.s32.totalorder %s25, 0
      %p165 = por %p163, %p164
      %p166 = scmp.ne.s32.totalorder %s158, %s160
      %p167 = scmp.eq.s32.totalorder %s30, 1
      %p168 = por %p166, %p167
      %p169 = scmp.ne.s32.totalorder %s160, %s161
      %p170 = scmp.eq.s32.totalorder %s30, 0
      %p171 = por %p169, %p170
      %p172 = scmp.ne.s32.totalorder %s160, %s161
      %p173 = scmp.eq.s32.totalorder %s31, 1
      %p174 = por %p172, %p173
      %p176 = scmp.ne.s32.totalorder %s161, %s175
      %p177 = scmp.eq.s32.totalorder %s31, 0
      %p178 = por %p176, %p177
      %s180 = sadd.s32 %s179, 1
      %p183 = scmp.eq.s32.totalorder %s25, 1
      %p184 = scmp.ne.s32.totalorder %s179, %s181
      %p185 = scmp.eq.s32.totalorder %s25, 0
      %p186 = por %p184, %p185
      %p187 = scmp.ne.s32.totalorder %s179, %s181
      %p188 = scmp.eq.s32.totalorder %s30, 1
      %p189 = por %p187, %p188
      %p190 = scmp.ne.s32.totalorder %s181, %s182
      %p191 = scmp.eq.s32.totalorder %s30, 0
      %p192 = por %p190, %p191
      %p193 = scmp.ne.s32.totalorder %s181, %s182
      %p194 = scmp.eq.s32.totalorder %s31, 1
      %p195 = por %p193, %p194
      %p197 = scmp.ne.s32.totalorder %s182, %s196
      %p198 = scmp.eq.s32.totalorder %s31, 0
      %p199 = por %p197, %p198
      %s201 = sadd.s32 %s200, 1
      %p204 = scmp.eq.s32.totalorder %s25, 1
      %p205 = scmp.ne.s32.totalorder %s200, %s202
      %p206 = scmp.eq.s32.totalorder %s25, 0
      %p207 = por %p205, %p206
      %p208 = scmp.ne.s32.totalorder %s200, %s202
      %p209 = scmp.eq.s32.totalorder %s30, 1
      %p210 = por %p208, %p209
      %p211 = scmp.ne.s32.totalorder %s202, %s203
      %p212 = scmp.eq.s32.totalorder %s30, 0
      %p213 = por %p211, %p212
      %p214 = scmp.ne.s32.totalorder %s202, %s203
      %p215 = scmp.eq.s32.totalorder %s31, 1
      %p216 = por %p214, %p215
      %p218 = scmp.ne.s32.totalorder %s203, %s217
      %p219 = scmp.eq.s32.totalorder %s31, 0
      %p220 = por %p218, %p219
      %s222 = sadd.s32 %s221, 1
      %p225 = scmp.eq.s32.totalorder %s25, 1
      %p226 = scmp.ne.s32.totalorder %s221, %s223
      %p227 = scmp.eq.s32.totalorder %s25, 0
      %p228 = por %p226, %p227
      %p229 = scmp.ne.s32.totalorder %s221, %s223
      %p230 = scmp.eq.s32.totalorder %s30, 1
      %p231 = por %p229, %p230
      %p232 = scmp.ne.s32.totalorder %s223, %s224
      %p233 = scmp.eq.s32.totalorder %s30, 0
      %p234 = por %p232, %p233
      %p235 = scmp.ne.s32.totalorder %s223, %s224
      %p236 = scmp.eq.s32.totalorder %s31, 1
      %p237 = por %p235, %p236
      %p239 = scmp.ne.s32.totalorder %s224, %s238
      %p240 = scmp.eq.s32.totalorder %s31, 0
      %p241 = por %p239, %p240
      %s243 = sadd.s32 %s242, 1
      %p246 = scmp.eq.s32.totalorder %s25, 1
      %p247 = scmp.ne.s32.totalorder %s242, %s244
      %p248 = scmp.eq.s32.totalorder %s25, 0
      %p249 = por %p247, %p248
      %p250 = scmp.ne.s32.totalorder %s242, %s244
      %p251 = scmp.eq.s32.totalorder %s30, 1
      %p252 = por %p250, %p251
      %p253 = scmp.ne.s32.totalorder %s244, %s245
      %p254 = scmp.eq.s32.totalorder %s30, 0
      %p255 = por %p253, %p254
      %p256 = scmp.ne.s32.totalorder %s244, %s245
      %p257 = scmp.eq.s32.totalorder %s31, 1
      %p258 = por %p256, %p257
      %p260 = scmp.ne.s32.totalorder %s245, %s259
      %p261 = scmp.eq.s32.totalorder %s31, 0
      %p262 = por %p260, %p261
      %s264 = sadd.s32 %s263, 1
      %p267 = scmp.eq.s32.totalorder %s25, 1
      %p268 = scmp.ne.s32.totalorder %s263, %s265
      %p269 = scmp.eq.s32.totalorder %s25, 0
      %p270 = por %p268, %p269
      %p271 = scmp.ne.s32.totalorder %s263, %s265
      %p272 = scmp.eq.s32.totalorder %s30, 1
      %p273 = por %p271, %p272
      %p274 = scmp.ne.s32.totalorder %s265, %s266
      %p275 = scmp.eq.s32.totalorder %s30, 0
      %p276 = por %p274, %p275
      %p277 = scmp.ne.s32.totalorder %s265, %s266
      %p278 = scmp.eq.s32.totalorder %s31, 1
      %p279 = por %p277, %p278
      %p281 = scmp.ne.s32.totalorder %s266, %s280
      %p282 = scmp.eq.s32.totalorder %s31, 0
      %p283 = por %p281, %p282
      %s284 = ssub.s32 %s25, %s32
      %p285 = scmp.eq.s32.totalorder %s284, 0
      %s287 = sadd.s32 %s286, 1
      %s288 = scalar_select %p285, %s286, %s287
      %p291 = pneg %p285
      %p292 = scmp.eq.s32.totalorder %s25, 1
      %p293 = por %p291, %p292
      %p294 = scmp.ne.s32.totalorder %s286, %s289
      %p295 = scmp.eq.s32.totalorder %s25, 0
      %p296 = por %p294, %p295
      %p297 = scmp.ne.s32.totalorder %s286, %s289
      %p298 = scmp.eq.s32.totalorder %s30, 1
      %p299 = por %p297, %p298
      %p300 = scmp.ne.s32.totalorder %s289, %s290
      %p301 = scmp.eq.s32.totalorder %s30, 0
      %p302 = por %p300, %p301
      %p303 = scmp.ne.s32.totalorder %s289, %s290
      %p304 = scmp.eq.s32.totalorder %s31, 1
      %p305 = por %p303, %p304
      %p307 = scmp.ne.s32.totalorder %s290, %s306
      %p308 = scmp.eq.s32.totalorder %s31, 0
      %p309 = por %p307, %p308
      %s310 = ssub.s32 %s25, %s32
      %p311 = scmp.eq.s32.totalorder %s310, 0
      %s313 = sadd.s32 %s312, 1
      %s314 = scalar_select %p311, %s312, %s313
      %p317 = pneg %p311
      %p318 = scmp.eq.s32.totalorder %s25, 1
      %p319 = por %p317, %p318
      %p320 = scmp.ne.s32.totalorder %s312, %s315
      %p321 = scmp.eq.s32.totalorder %s25, 0
      %p322 = por %p320, %p321
      %p323 = scmp.ne.s32.totalorder %s312, %s315
      %p324 = scmp.eq.s32.totalorder %s30, 1
      %p325 = por %p323, %p324
      %p326 = scmp.ne.s32.totalorder %s315, %s316
      %p327 = scmp.eq.s32.totalorder %s30, 0
      %p328 = por %p326, %p327
      %p329 = scmp.ne.s32.totalorder %s315, %s316
      %p330 = scmp.eq.s32.totalorder %s31, 1
      %p331 = por %p329, %p330
      %p333 = scmp.ne.s32.totalorder %s316, %s332
      %p334 = scmp.eq.s32.totalorder %s31, 0
      %p335 = por %p333, %p334
      %p336 = scmp.le.s32.totalorder 1, %s25
      %p337 = scmp.lt.s32.totalorder %s25, 3
      %p338 = pnand %p336, %p337
      %p339 = pneg %p338
      // Predicated region
      $region9: #{tpu_custom_call.1} parent=5 // pred_check
        _
      $region10: #{tpu_custom_call.1} parent=5 // pred_check_branch
        %341 = sbr.rel (%p338) target = $region12
      $region11: #{tpu_custom_call.1} parent=5 // pred_region
        %s342 = ssub.s32 %s25, 1
        // Predicated region
        $region13: #{tpu_custom_call.1} parent=11 // pred_check
          %p343 = pneg %p150
        $region14: #{tpu_custom_call.1} parent=11 // pred_check_branch
          %345 = sbr.rel (%p343) target = $region16
        $region15: #{tpu_custom_call.1} parent=11 // pred_region
          _
        $region16: #{tpu_custom_call.1} parent=11 // pred_fallthru
          _
        // Predicated region
        $region17: #{tpu_custom_call.1} parent=11 // pred_check
          %p346 = pneg %p171
        $region18: #{tpu_custom_call.1} parent=11 // pred_check_branch
          %348 = sbr.rel (%p346) target = $region20
        $region19: #{tpu_custom_call.1} parent=11 // pred_region
          _
        $region20: #{tpu_custom_call.1} parent=11 // pred_fallthru
          _
        // Predicated region
        $region21: #{tpu_custom_call.1} parent=11 // pred_check
          %p349 = pneg %p192
        $region22: #{tpu_custom_call.1} parent=11 // pred_check_branch
          %351 = sbr.rel (%p349) target = $region24
        $region23: #{tpu_custom_call.1} parent=11 // pred_region
          _
        $region24: #{tpu_custom_call.1} parent=11 // pred_fallthru
          _
        // Predicated region
        $region25: #{tpu_custom_call.1} parent=11 // pred_check
          %p352 = pneg %p213
        $region26: #{tpu_custom_call.1} parent=11 // pred_check_branch
          %354 = sbr.rel (%p352) target = $region28
        $region27: #{tpu_custom_call.1} parent=11 // pred_region
          _
        $region28: #{tpu_custom_call.1} parent=11 // pred_fallthru
          _
        // Predicated region
        $region29: #{tpu_custom_call.1} parent=11 // pred_check
          %p355 = pneg %p234
        $region30: #{tpu_custom_call.1} parent=11 // pred_check_branch
          %357 = sbr.rel (%p355) target = $region32
        $region31: #{tpu_custom_call.1} parent=11 // pred_region
          _
        $region32: #{tpu_custom_call.1} parent=11 // pred_fallthru
          _
        // Predicated region
        $region33: #{tpu_custom_call.1} parent=11 // pred_check
          %p358 = pneg %p255
        $region34: #{tpu_custom_call.1} parent=11 // pred_check_branch
          %360 = sbr.rel (%p358) target = $region36
        $region35: #{tpu_custom_call.1} parent=11 // pred_region
          _
        $region36: #{tpu_custom_call.1} parent=11 // pred_fallthru
          _
        // Predicated region
        $region37: #{tpu_custom_call.1} parent=11 // pred_check
          %p361 = pneg %p276
        $region38: #{tpu_custom_call.1} parent=11 // pred_check_branch
          %363 = sbr.rel (%p361) target = $region40
        $region39: #{tpu_custom_call.1} parent=11 // pred_region
          _
        $region40: #{tpu_custom_call.1} parent=11 // pred_fallthru
          _
      $region12: #{tpu_custom_call.1} parent=5 // pred_fallthru
        _
      %p364 = scmp.lt.s32.totalorder %s25, 2
      // Predicated region
      $region41: #{tpu_custom_call.1} parent=5 // pred_check
        %p365 = pneg %p364
      $region42: #{tpu_custom_call.1} parent=5 // pred_check_branch
        %367 = sbr.rel (%p365) target = $region44
      $region43: #{tpu_custom_call.1} parent=5 // pred_region
        // Predicated region
        $region45: #{tpu_custom_call.1} parent=43 // pred_check
          %p368 = pneg %p45
        $region46: #{tpu_custom_call.1} parent=43 // pred_check_branch
          %370 = sbr.rel (%p368) target = $region48
        $region47: #{tpu_custom_call.1} parent=43 // pred_region
          %s371 = sand.u32 %s35, 1
          %s372 = sand.u32 %s35, 1
          %s373 = smul.addr %s372, 32
          %s374 = scalar_lea.vmem [#allocation2], %s373
          %s375 = smul.u32 2, %s25
          %s376 = smul.addr %s375, 4
          %s377 = scalar_lea.vmem %s0, %s376
          // Predicated region
          $region49: #{tpu_custom_call.1} parent=47 // pred_check
            _
          $region50: #{tpu_custom_call.1} parent=47 // pred_check_branch
            %379 = sbr.rel (0) target = $region52
          $region51: #{tpu_custom_call.1} parent=47 // pred_region
            // Predicated region
            $region53: #{tpu_custom_call.1} parent=51 // pred_check
              _
            $region54: #{tpu_custom_call.1} parent=51 // pred_check_branch
              %381 = sbr.rel target = $region56
            $region55: #{tpu_custom_call.1} parent=51 // pred_region
              // Predicated region
              $region68: #{tpu_custom_call.1} parent=55 // pred_check
                _
              $region69: #{tpu_custom_call.1} parent=55 // pred_check_branch
                %410 = sbr.rel (0) target = $region71
              $region70: #{tpu_custom_call.1} parent=55 // pred_region
                loop: start=0, step=1, limit=1
                $region72: #{tpu_custom_call.1} parent=70 // loop_pre_header
                  _
                $region73: #{tpu_custom_call.1} parent=70 // loop_header
                  %s412 = sphi 0, %s416
                  %p413 = scmp.ge.s32.totalorder %s412, 1
                  %s417 = sphi %s377, %s377
                  %s418 = sphi %s374, %s374
                $region74: #{tpu_custom_call.1} parent=70 // loop_header_branch
                  %415 = sbr.rel (%p413) target = $region78
                $region75: #{tpu_custom_call.1} parent=70 // loop_body
                  _
                $region76: #{tpu_custom_call.1} parent=70 // loop_footer
                  %s416 = sadd.s32 1, %s412
                $region77: #{tpu_custom_call.1} parent=70 // loop_footer_branch
                  %411 = sbr.rel target = $region73
                $region78: #{tpu_custom_call.1} parent=70 // loop_exit
                  _
                loop: start=0, step=1, limit=1
                $region79: #{tpu_custom_call.1} parent=70 // loop_pre_header
                  _
                $region80: #{tpu_custom_call.1} parent=70 // loop_header
                  %s421 = sphi 0, %s425
                  %p422 = scmp.ge.s32.totalorder %s421, 1
                  %s426 = sphi %s377, %s377
                  %s427 = sphi %s374, %s374
                $region81: #{tpu_custom_call.1} parent=70 // loop_header_branch
                  %424 = sbr.rel (%p422) target = $region85
                $region82: #{tpu_custom_call.1} parent=70 // loop_body
                  %v428 = vld [vmem:[%s426] sm:$0xf]
                  %429 = vst [vmem:[%s427] sm:$0xf] %v428
                  %v430 = vld [vmem:[%s426 + $0x4] sm:$0xf]
                  %431 = vst [vmem:[%s427 + $0x4] sm:$0xf] %v430
                  %v432 = vld [vmem:[%s426 + $0x10] sm:$0xf]
                  %433 = vst [vmem:[%s427 + $0x8] sm:$0xf] %v432
                  %v434 = vld [vmem:[%s426 + $0x14] sm:$0xf]
                  %435 = vst [vmem:[%s427 + $0xc] sm:$0xf] %v434
                  %v436 = vld [vmem:[%s426 + $0x20] sm:$0xf]
                  %437 = vst [vmem:[%s427 + $0x10] sm:$0xf] %v436
                  %v438 = vld [vmem:[%s426 + $0x24] sm:$0xf]
                  %439 = vst [vmem:[%s427 + $0x14] sm:$0xf] %v438
                  %v440 = vld [vmem:[%s426 + $0x30] sm:$0xf]
                  %441 = vst [vmem:[%s427 + $0x18] sm:$0xf] %v440
                  %v442 = vld [vmem:[%s426 + $0x34] sm:$0xf]
                  %443 = vst [vmem:[%s427 + $0x1c] sm:$0xf] %v442
                $region83: #{tpu_custom_call.1} parent=70 // loop_footer
                  %s425 = sadd.s32 1, %s421
                $region84: #{tpu_custom_call.1} parent=70 // loop_footer_branch
                  %420 = sbr.rel target = $region80
                $region85: #{tpu_custom_call.1} parent=70 // loop_exit
                  _
              $region71: #{tpu_custom_call.1} parent=55 // pred_fallthru
                _
            $region56: #{tpu_custom_call.1} parent=51 // pred_fallthru
              _
            // Predicated region
            $region57: #{tpu_custom_call.1} parent=51 // pred_check
              _
            $region58: #{tpu_custom_call.1} parent=51 // pred_check_branch
              %383 = sbr.rel (0) target = $region60
            $region59: #{tpu_custom_call.1} parent=51 // pred_region
              loop: start=0, step=1, limit=1
              $region61: #{tpu_custom_call.1} parent=59 // loop_pre_header
                _
              $region62: #{tpu_custom_call.1} parent=59 // loop_header
                %s386 = sphi 0, %s390
                %p387 = scmp.ge.s32.totalorder %s386, 1
                %s391 = sphi %s377, %s377
                %s392 = sphi %s374, %s374
              $region63: #{tpu_custom_call.1} parent=59 // loop_header_branch
                %389 = sbr.rel (%p387) target = $region67
              $region64: #{tpu_custom_call.1} parent=59 // loop_body
                %v393 = vld [vmem:[%s391] sm:$0xf]
                %394 = vst [vmem:[%s392] sm:$0xf] %v393
                %v395 = vld [vmem:[%s391 + $0x4] sm:$0xf]
                %396 = vst [vmem:[%s392 + $0x4] sm:$0xf] %v395
                %v397 = vld [vmem:[%s391 + $0x10] sm:$0xf]
                %398 = vst [vmem:[%s392 + $0x8] sm:$0xf] %v397
                %v399 = vld [vmem:[%s391 + $0x14] sm:$0xf]
                %400 = vst [vmem:[%s392 + $0xc] sm:$0xf] %v399
                %v401 = vld [vmem:[%s391 + $0x20] sm:$0xf]
                %402 = vst [vmem:[%s392 + $0x10] sm:$0xf] %v401
                %v403 = vld [vmem:[%s391 + $0x24] sm:$0xf]
                %404 = vst [vmem:[%s392 + $0x14] sm:$0xf] %v403
                %v405 = vld [vmem:[%s391 + $0x30] sm:$0xf]
                %406 = vst [vmem:[%s392 + $0x18] sm:$0xf] %v405
                %v407 = vld [vmem:[%s391 + $0x34] sm:$0xf]
                %408 = vst [vmem:[%s392 + $0x1c] sm:$0xf] %v407
              $region65: #{tpu_custom_call.1} parent=59 // loop_footer
                %s390 = sadd.s32 1, %s386
              $region66: #{tpu_custom_call.1} parent=59 // loop_footer_branch
                %385 = sbr.rel target = $region62
              $region67: #{tpu_custom_call.1} parent=59 // loop_exit
                _
            $region60: #{tpu_custom_call.1} parent=51 // pred_fallthru
              _
          $region52: #{tpu_custom_call.1} parent=47 // pred_fallthru
            _
          %444 = vnop
        $region48: #{tpu_custom_call.1} parent=43 // pred_fallthru
          _
        // Predicated region
        $region86: #{tpu_custom_call.1} parent=43 // pred_check
          %p445 = pneg %p71
        $region87: #{tpu_custom_call.1} parent=43 // pred_check_branch
          %447 = sbr.rel (%p445) target = $region89
        $region88: #{tpu_custom_call.1} parent=43 // pred_region
          %s448 = smul.u32 2, %s25
          %p449 = scmp.lt.s32.totalorder %s448, 3
          %s450 = scalar_select %p449, %s448, 3
          %s451 = smul.addr %s450, 8
          %s452 = scalar_lea.vmem %s1, %s451
          %s453 = smul.u32 2, %s25
        $region89: #{tpu_custom_call.1} parent=43 // pred_fallthru
          _
        // Predicated region
        $region90: #{tpu_custom_call.1} parent=43 // pred_check
          %p454 = pneg %p97
        $region91: #{tpu_custom_call.1} parent=43 // pred_check_branch
          %456 = sbr.rel (%p454) target = $region93
        $region92: #{tpu_custom_call.1} parent=43 // pred_region
          %s457 = smul.u32 2, %s25
          %p458 = scmp.lt.s32.totalorder %s457, 3
          %s459 = scalar_select %p458, %s457, 3
          %s460 = smul.addr %s459, 4
          %s461 = scalar_lea.vmem %s2, %s460
          %s462 = smul.u32 2, %s25
        $region93: #{tpu_custom_call.1} parent=43 // pred_fallthru
          _
        // Predicated region
        $region94: #{tpu_custom_call.1} parent=43 // pred_check
          %p463 = pneg %p123
        $region95: #{tpu_custom_call.1} parent=43 // pred_check_branch
          %465 = sbr.rel (%p463) target = $region97
        $region96: #{tpu_custom_call.1} parent=43 // pred_region
          %s466 = smul.u32 2, %s25
          %p467 = scmp.lt.s32.totalorder %s466, 3
          %s468 = scalar_select %p467, %s466, 3
          %s469 = smul.addr %s468, 8
          %s470 = scalar_lea.vmem %s3, %s469
          %s471 = smul.u32 2, %s25
        $region97: #{tpu_custom_call.1} parent=43 // pred_fallthru
          _
      $region44: #{tpu_custom_call.1} parent=5 // pred_fallthru
        _
      %p472 = scmp.le.s32.totalorder 1, %s25
      %p473 = scmp.lt.s32.totalorder %s25, 3
      %p474 = pnand %p472, %p473
      %p475 = pneg %p474
      // Predicated region
      $region98: #{tpu_custom_call.1} parent=5 // pred_check
        _
      $region99: #{tpu_custom_call.1} parent=5 // pred_check_branch
        %477 = sbr.rel (%p474) target = $region101
      $region100: #{tpu_custom_call.1} parent=5 // pred_region
        %s478 = ssub.s32 %s25, 1
        %s479 = sand.u32 %s38, 1
        %s480 = sand.u32 %s38, 1
        %s481 = smul.addr %s480, 32
        %s482 = scalar_lea.vmem [#allocation2], %s481
        // Predicated region
        $region102: #{tpu_custom_call.1} parent=100 // pred_check
          %p483 = pneg %p51
        $region103: #{tpu_custom_call.1} parent=100 // pred_check_branch
          %485 = sbr.rel (%p483) target = $region105
        $region104: #{tpu_custom_call.1} parent=100 // pred_region
          _
        $region105: #{tpu_custom_call.1} parent=100 // pred_fallthru
          _
        %s486 = sand.u32 %s38, 1
        %s487 = sand.u32 %s38, 1
        %s488 = smul.addr %s487, 32
        %s489 = scalar_lea.vmem [#allocation2], %s488
        %p490 = pneg %p51
        %p491 = pneg %p48
        %s492 = smul.u32 2, %s30
        %p493 = scmp.lt.s32.totalorder %s492, 3
        %s494 = scalar_select %p493, %s492, 3
        %s495 = smul.addr %s494, 8
        %s496 = scalar_lea.vmem %s1, %s495
        %p497 = pneg %p77
        %p498 = pneg %p74
        %s499 = smul.u32 2, %s30
        %p500 = scmp.lt.s32.totalorder %s499, 3
        %s501 = scalar_select %p500, %s499, 3
        %s502 = smul.addr %s501, 4
        %s503 = scalar_lea.vmem %s2, %s502
        %p504 = pneg %p103
        %p505 = pneg %p100
        %s506 = smul.u32 2, %s30
        %p507 = scmp.lt.s32.totalorder %s506, 3
        %s508 = scalar_select %p507, %s506, 3
        %s509 = smul.addr %s508, 8
        %s510 = scalar_lea.vmem %s3, %s509
        %p511 = pneg %p129
        %p512 = pneg %p126
        %p513 = pneg %p150
        %p514 = pneg %p147
        %p515 = pneg %p171
        %p516 = pneg %p168
        %p517 = pneg %p192
        %p518 = pneg %p189
        %p519 = pneg %p213
        %p520 = pneg %p210
        %p521 = pneg %p234
        %p522 = pneg %p231
        %p523 = pneg %p255
        %p524 = pneg %p252
        %p525 = pneg %p276
        %p526 = pneg %p273
        %p527 = pneg %p302
        %p528 = pneg %p299
        %s529 = sand.u32 %s289, 1
        %s530 = scalar_lea.sflag [#allocation4], %s529
        %s531 = sand.u32 %s289, 1
        %s532 = smul.addr %s531, 8
        %s533 = scalar_lea.vmem [#allocation3], %s532
        %p534 = pneg %p328
        %p535 = pneg %p325
        %s536 = sand.u32 %s315, 1
        %s537 = scalar_lea.sflag [#allocation6], %s536
        %s538 = sand.u32 %s315, 1
        %s539 = smul.addr %s538, 8
        %s540 = scalar_lea.vmem [#allocation5], %s539
        %s541 = smul.u32 2, %s30
        %s542 = smul.u32 2, %s30
        %p543 = scmp.lt.s32.totalorder %s542, 3
        %s544 = scalar_select %p543, %s542, 3
        %s545 = smul.addr %s544, 8
        %s546 = scalar_lea.vmem %s1, %s545
        %s547 = smul.u32 2, %s30
        %s548 = smul.u32 2, %s30
        %p549 = scmp.lt.s32.totalorder %s548, 3
        %s550 = scalar_select %p549, %s548, 3
        %s551 = smul.addr %s550, 4
        %s552 = scalar_lea.vmem %s2, %s551
        %s553 = smul.u32 2, %s30
        %s554 = smul.u32 2, %s30
        %p555 = scmp.lt.s32.totalorder %s554, 3
        %s556 = scalar_select %p555, %s554, 3
        %s557 = smul.addr %s556, 8
        %s558 = scalar_lea.vmem %s3, %s557
        %s559 = smul.u32 2, %s30
        %s560 = smul.u32 2, %s30
        %v562 = vld [vmem:[%s10] sm:$0x1]
        %v563 = vld [vmem:[%s10 + $0x1] sm:$0x1]
        %v564 = vld [vmem:[%s10 + $0x2] sm:$0x1]
        %v565 = vld [vmem:[%s10 + $0x3] sm:$0x1]
        %v566 = vld [vmem:[%s10 + $0x4] sm:$0x1]
        %v567 = vld [vmem:[%s10 + $0x5] sm:$0x1]
        %v568 = vld [vmem:[%s10 + $0x6] sm:$0x1]
        %v569 = vld [vmem:[%s10 + $0x7] sm:$0x1]
        %v570 = vld [vmem:[%s10 + $0x8] sm:$0x1]
        %v571 = vld [vmem:[%s10 + $0x9] sm:$0x1]
        %v572 = vld [vmem:[%s10 + $0xa] sm:$0x1]
        %v573 = vld [vmem:[%s10 + $0xb] sm:$0x1]
        %v574 = vld [vmem:[%s482] sm:$0xf]
        %v575 = vld [vmem:[%s482 + $0x4] sm:$0xf]
        %v576 = vld [vmem:[%s482 + $0x8] sm:$0xf]
        %v577 = vld [vmem:[%s482 + $0xc] sm:$0xf]
        %v578 = vld [vmem:[%s482 + $0x10] sm:$0xf]
        %v579 = vld [vmem:[%s482 + $0x14] sm:$0xf]
        %v580 = vld [vmem:[%s482 + $0x18] sm:$0xf]
        %v581 = vld [vmem:[%s482 + $0x1c] sm:$0xf]
        %v582 = vld [vmem:[%s4] sm:$0xf]
        %v583 = vld [vmem:[%s4 + $0x4] sm:$0xf]
        %v584 = vld [vmem:[%s4 + $0x8] sm:$0xf]
        %v585 = vld [vmem:[%s4 + $0xc] sm:$0xf]
        %v586 = vlaneseq
        %v587 = vshrl.u32 %v586, 7
        %v588 = vsub.s32 0, %v587
        %v589 = vrot.slane %v562, %v588
        %v598 = vunpack.c.l.b16 %v574
        %v599 = vunpack.c.l.b16 %v575
        %v600 = vunpack.c.l.b16 %v576
        %v601 = vunpack.c.l.b16 %v577
        %v602 = vunpack.c.l.b16 %v578
        %v603 = vunpack.c.l.b16 %v579
        %v604 = vunpack.c.l.b16 %v580
        %v605 = vunpack.c.l.b16 %v581
        %v606 = vpack.c.b16 %v599, %v598
        %v607 = vpack.c.b16 %v601, %v600
        %v608 = vpack.c.b16 %v603, %v602
        %v609 = vpack.c.b16 %v605, %v604
        %v614 = vunpack.c.l.b16 %v582
        %v615 = vunpack.c.l.b16 %v583
        %v616 = vunpack.c.l.b16 %v584
        %v617 = vunpack.c.l.b16 %v585
        %v618 = vpack.c.b16 %v615, %v614
        %v619 = vpack.c.b16 %v617, %v616
        %vm622 = vcmask 261120
        %v624 = vsel %vm622, %v606, 0
        %v627 = vsel %vm622, %v607, 0
        %v630 = vsel %vm622, %v608, 0
        %v633 = vsel %vm622, %v609, 0
        %635 = vmatprep.subr.bf16.mxu0 0
        %636 = vmatpush1.bf16.msra.mxu0 %v618
        %637 = vmatprep.subr.bf16.mxu0 0
        %638 = vmatpush1.bf16.msra.mxu0 %v619
        %639 = vmatprep.subr.bf16.mxu0 0
        %640 = vmatpush1.bf16.msra.mxu0 0
        %641 = vmatprep.subr.bf16.mxu0 0
        %642 = vmatpush1.bf16.msra.mxu0 0
        %643 = vmatprep.subr.bf16.mxu0 0
        %644 = vmatpush1.bf16.msra.mxu0 0
        %645 = vmatprep.subr.bf16.mxu0 0
        %646 = vmatpush1.bf16.msra.mxu0 0
        %647 = vmatprep.subr.bf16.mxu0 0
        %648 = vmatpush1.bf16.msra.mxu0 0
        %649 = vmatprep.subr.bf16.mxu0 0
        %650 = vmatpush1.bf16.msra.mxu0 0
        %651 = vmatprep.subr.bf16.mxu0 0
        %652 = vmatpush1.bf16.msra.mxu0 0
        %653 = vmatprep.subr.bf16.mxu0 0
        %654 = vmatpush1.bf16.msra.mxu0 0
        %655 = vmatprep.subr.bf16.mxu0 0
        %656 = vmatpush1.bf16.msra.mxu0 0
        %657 = vmatprep.subr.bf16.mxu0 0
        %658 = vmatpush1.bf16.msra.mxu0 0
        %659 = vmatprep.subr.bf16.mxu0 0
        %660 = vmatpush1.bf16.msra.mxu0 0
        %661 = vmatprep.subr.bf16.mxu0 0
        %662 = vmatpush1.bf16.msra.mxu0 0
        %663 = vmatprep.subr.bf16.mxu0 0
        %664 = vmatpush1.bf16.msra.mxu0 0
        %665 = vmatprep.subr.bf16.mxu0 0
        %666 = vmatpush1.bf16.msra.mxu0 0
        %667 = vmatprep.mubr.bf16.mxu0 0
        %668 = vmatmul.mubr.bf16.gmra.mrb[0].mxu0 %v624
        %v669 = vpop.f32.mrb[0].mxu0
        %v670 = vadd.f32 %v589, %v669
        %v671 = vpop.f32.mrb[0].mxu0
        %v672 = vpop.f32.mrb[0].mxu0
        %v673 = vadd.f32 %v589, %v672
        %v674 = vpop.f32.mrb[0].mxu0
        %675 = vmatprep.mubr.bf16.mxu0 0
        %676 = vmatmul.mubr.bf16.gmra.mrb[0].mxu0 %v627
        %v677 = vpop.f32.mrb[0].mxu0
        %v678 = vadd.f32 %v589, %v677
        %v679 = vpop.f32.mrb[0].mxu0
        %v680 = vpop.f32.mrb[0].mxu0
        %v681 = vadd.f32 %v589, %v680
        %v682 = vpop.f32.mrb[0].mxu0
        %683 = vmatprep.mubr.bf16.mxu0 0
        %684 = vmatmul.mubr.bf16.gmra.mrb[0].mxu0 %v630
        %v685 = vpop.f32.mrb[0].mxu0
        %v686 = vadd.f32 %v589, %v685
        %v687 = vpop.f32.mrb[0].mxu0
        %v688 = vpop.f32.mrb[0].mxu0
        %v689 = vadd.f32 %v589, %v688
        %v690 = vpop.f32.mrb[0].mxu0
        %691 = vmatprep.mubr.bf16.mxu0 0
        %692 = vmatmul.mubr.bf16.gmra.mrb[0].mxu0 %v633
        %v693 = vpop.f32.mrb[0].mxu0
        %v694 = vadd.f32 %v589, %v693
        %v695 = vpop.f32.mrb[0].mxu0
        %v696 = vpop.f32.mrb[0].mxu0
        %v697 = vadd.f32 %v589, %v696
        %v698 = vpop.f32.mrb[0].mxu0
        %699 = vdwg.mxu0
        %v700 = vsel %vm622, %v670, 0.0
        %701 = vadd.xlane.f32.xlu0 %v700
        %v702 = vpop.xlane.xlu0 %701
        %v703 = vsel %vm622, %v673, 0.0
        %704 = vadd.xlane.f32.xlu0 %v703
        %v705 = vpop.xlane.xlu0 %704
        %v706 = vsel %vm622, %v678, 0.0
        %707 = vadd.xlane.f32.xlu0 %v706
        %v708 = vpop.xlane.xlu0 %707
        %v709 = vsel %vm622, %v681, 0.0
        %710 = vadd.xlane.f32.xlu0 %v709
        %v711 = vpop.xlane.xlu0 %710
        %v712 = vsel %vm622, %v686, 0.0
        %713 = vadd.xlane.f32.xlu0 %v712
        %v714 = vpop.xlane.xlu0 %713
        %v715 = vsel %vm622, %v689, 0.0
        %716 = vadd.xlane.f32.xlu0 %v715
        %v717 = vpop.xlane.xlu0 %716
        %v718 = vsel %vm622, %v694, 0.0
        %719 = vadd.xlane.f32.xlu0 %v718
        %v720 = vpop.xlane.xlu0 %719
        %v721 = vsel %vm622, %v697, 0.0
        %722 = vadd.xlane.f32.xlu0 %v721
        %v723 = vpop.xlane.xlu0 %722
        %v724 = vrcp.pop 32.0
        %v725 = vmul.f32 %v702, %v724
        %v726 = vmul.f32 %v705, %v724
        %v727 = vmul.f32 %v708, %v724
        %v728 = vmul.f32 %v711, %v724
        %v729 = vmul.f32 %v714, %v724
        %v730 = vmul.f32 %v717, %v724
        %v731 = vmul.f32 %v720, %v724
        %v732 = vmul.f32 %v723, %v724
        %v733 = vsub.f32 %v670, %v725
        %v734 = vsub.f32 %v673, %v726
        %v735 = vsub.f32 %v678, %v727
        %v736 = vsub.f32 %v681, %v728
        %v737 = vsub.f32 %v686, %v729
        %v738 = vsub.f32 %v689, %v730
        %v739 = vsub.f32 %v694, %v731
        %v740 = vsub.f32 %v697, %v732
        %v741 = vmul.f32 %v733, %v733
        %v742 = vmul.f32 %v734, %v734
        %v743 = vmul.f32 %v735, %v735
        %v744 = vmul.f32 %v736, %v736
        %v745 = vmul.f32 %v737, %v737
        %v746 = vmul.f32 %v738, %v738
        %v747 = vmul.f32 %v739, %v739
        %v748 = vmul.f32 %v740, %v740
        %v749 = vsel %vm622, %v741, 0.0
        %750 = vadd.xlane.f32.xlu0 %v749
        %v751 = vpop.xlane.xlu0 %750
        %v752 = vsel %vm622, %v742, 0.0
        %753 = vadd.xlane.f32.xlu0 %v752
        %v754 = vpop.xlane.xlu0 %753
        %v755 = vsel %vm622, %v743, 0.0
        %756 = vadd.xlane.f32.xlu0 %v755
        %v757 = vpop.xlane.xlu0 %756
        %v758 = vsel %vm622, %v744, 0.0
        %759 = vadd.xlane.f32.xlu0 %v758
        %v760 = vpop.xlane.xlu0 %759
        %v761 = vsel %vm622, %v745, 0.0
        %762 = vadd.xlane.f32.xlu0 %v761
        %v763 = vpop.xlane.xlu0 %762
        %v764 = vsel %vm622, %v746, 0.0
        %765 = vadd.xlane.f32.xlu0 %v764
        %v766 = vpop.xlane.xlu0 %765
        %v767 = vsel %vm622, %v747, 0.0
        %768 = vadd.xlane.f32.xlu0 %v767
        %v769 = vpop.xlane.xlu0 %768
        %v770 = vsel %vm622, %v748, 0.0
        %771 = vadd.xlane.f32.xlu0 %v770
        %v772 = vpop.xlane.xlu0 %771
        %v773 = vmul.f32 %v751, %v724
        %v774 = vmul.f32 %v754, %v724
        %v775 = vmul.f32 %v757, %v724
        %v776 = vmul.f32 %v760, %v724
        %v777 = vmul.f32 %v763, %v724
        %v778 = vmul.f32 %v766, %v724
        %v779 = vmul.f32 %v769, %v724
        %v780 = vmul.f32 %v772, %v724
        %v781 = vadd.f32 %v773, 1e-05
        %v782 = vadd.f32 %v774, 1e-05
        %v783 = vadd.f32 %v775, 1e-05
        %v784 = vadd.f32 %v776, 1e-05
        %v785 = vadd.f32 %v777, 1e-05
        %v786 = vadd.f32 %v778, 1e-05
        %v787 = vadd.f32 %v779, 1e-05
        %v788 = vadd.f32 %v780, 1e-05
        %v789 = vrsqrt.pop %v781
        %v790 = vrsqrt.pop %v782
        %v791 = vrsqrt.pop %v783
        %v792 = vrsqrt.pop %v784
        %v793 = vrsqrt.pop %v785
        %v794 = vrsqrt.pop %v786
        %v795 = vrsqrt.pop %v787
        %v796 = vrsqrt.pop %v788
        %v797 = vmul.f32 %v733, %v789
        %v798 = vmul.f32 %v734, %v790
        %v799 = vmul.f32 %v735, %v791
        %v800 = vmul.f32 %v736, %v792
        %v801 = vmul.f32 %v737, %v793
        %v802 = vmul.f32 %v738, %v794
        %v803 = vmul.f32 %v739, %v795
        %v804 = vmul.f32 %v740, %v796
        %v805 = vlaneseq
        %v806 = vshrl.u32 %v805, 7
        %v807 = vsub.s32 0, %v806
        %v808 = vrot.slane %v563, %v807
        %v809 = vmul.f32 %v797, %v808
        %v810 = vmul.f32 %v798, %v808
        %v811 = vmul.f32 %v799, %v808
        %v812 = vmul.f32 %v800, %v808
        %v813 = vmul.f32 %v801, %v808
        %v814 = vmul.f32 %v802, %v808
        %v815 = vmul.f32 %v803, %v808
        %v816 = vmul.f32 %v804, %v808
        %v817 = vlaneseq
        %v818 = vshrl.u32 %v817, 7
        %v819 = vsub.s32 0, %v818
        %v820 = vrot.slane %v564, %v819
        %v821 = vadd.f32 %v809, %v820
        %v822 = vadd.f32 %v810, %v820
        %v823 = vadd.f32 %v811, %v820
        %v824 = vadd.f32 %v812, %v820
        %v825 = vadd.f32 %v813, %v820
        %v826 = vadd.f32 %v814, %v820
        %v827 = vadd.f32 %v815, %v820
        %v828 = vadd.f32 %v816, %v820
        %v829 = vmul.f32 %v821, %v821
        %v830 = vmul.f32 %v822, %v822
        %v831 = vmul.f32 %v823, %v823
        %v832 = vmul.f32 %v824, %v824
        %v833 = vmul.f32 %v825, %v825
        %v834 = vmul.f32 %v826, %v826
        %v835 = vmul.f32 %v827, %v827
        %v836 = vmul.f32 %v828, %v828
        %v837 = vmul.f32 %v821, %v829
        %v838 = vmul.f32 %v822, %v830
        %v839 = vmul.f32 %v823, %v831
        %v840 = vmul.f32 %v824, %v832
        %v841 = vmul.f32 %v825, %v833
        %v842 = vmul.f32 %v826, %v834
        %v843 = vmul.f32 %v827, %v835
        %v844 = vmul.f32 %v828, %v836
        %v845 = vmul.f32 %v837, 0.044715
        %v846 = vmul.f32 %v838, 0.044715
        %v847 = vmul.f32 %v839, 0.044715
        %v848 = vmul.f32 %v840, 0.044715
        %v849 = vmul.f32 %v841, 0.044715
        %v850 = vmul.f32 %v842, 0.044715
        %v851 = vmul.f32 %v843, 0.044715
        %v852 = vmul.f32 %v844, 0.044715
        %v853 = vadd.f32 %v821, %v845
        %v854 = vadd.f32 %v822, %v846
        %v855 = vadd.f32 %v823, %v847
        %v856 = vadd.f32 %v824, %v848
        %v857 = vadd.f32 %v825, %v849
        %v858 = vadd.f32 %v826, %v850
        %v859 = vadd.f32 %v827, %v851
        %v860 = vadd.f32 %v828, %v852
        %v861 = vmul.f32 %v853, 0.7978846
        %v862 = vmul.f32 %v854, 0.7978846
        %v863 = vmul.f32 %v855, 0.7978846
        %v864 = vmul.f32 %v856, 0.7978846
        %v865 = vmul.f32 %v857, 0.7978846
        %v866 = vmul.f32 %v858, 0.7978846
        %v867 = vmul.f32 %v859, 0.7978846
        %v868 = vmul.f32 %v860, 0.7978846
        %v869 = vtanh.pop %v861
        %v870 = vtanh.pop %v862
        %v871 = vtanh.pop %v863
        %v872 = vtanh.pop %v864
        %v873 = vtanh.pop %v865
        %v874 = vtanh.pop %v866
        %v875 = vtanh.pop %v867
        %v876 = vtanh.pop %v868
        %v877 = vadd.f32 %v869, 1.0
        %v878 = vadd.f32 %v870, 1.0
        %v879 = vadd.f32 %v871, 1.0
        %v880 = vadd.f32 %v872, 1.0
        %v881 = vadd.f32 %v873, 1.0
        %v882 = vadd.f32 %v874, 1.0
        %v883 = vadd.f32 %v875, 1.0
        %v884 = vadd.f32 %v876, 1.0
        %v885 = vmul.f32 %v877, 0.5
        %v886 = vmul.f32 %v878, 0.5
        %v887 = vmul.f32 %v879, 0.5
        %v888 = vmul.f32 %v880, 0.5
        %v889 = vmul.f32 %v881, 0.5
        %v890 = vmul.f32 %v882, 0.5
        %v891 = vmul.f32 %v883, 0.5
        %v892 = vmul.f32 %v884, 0.5
        %v893 = vmul.f32 %v821, %v885
        %v894 = vmul.f32 %v822, %v886
        %v895 = vmul.f32 %v823, %v887
        %v896 = vmul.f32 %v824, %v888
        %v897 = vmul.f32 %v825, %v889
        %v898 = vmul.f32 %v826, %v890
        %v899 = vmul.f32 %v827, %v891
        %v900 = vmul.f32 %v828, %v892
        %v901 = vpack.c.bf16 %v894, %v893
        %v902 = vpack.c.bf16 %v896, %v895
        %v903 = vpack.c.bf16 %v898, %v897
        %v904 = vpack.c.bf16 %v900, %v899
        %v905 = vld [vmem:[%s5] sm:$0xf]
        %v906 = vld [vmem:[%s5 + $0x4] sm:$0xf]
        %v907 = vld [vmem:[%s5 + $0x8] sm:$0xf]
        %v908 = vld [vmem:[%s5 + $0xc] sm:$0xf]
        %v909 = vlaneseq
        %v910 = vshrl.u32 %v909, 7
        %v911 = vsub.s32 0, %v910
        %v912 = vrot.slane %v565, %v911
        %v917 = vunpack.c.l.b16 %v905
        %v918 = vunpack.c.l.b16 %v906
        %v919 = vunpack.c.l.b16 %v907
        %v920 = vunpack.c.l.b16 %v908
        %v921 = vpack.c.b16 %v918, %v917
        %v922 = vpack.c.b16 %v920, %v919
        %v926 = vsel %vm622, %v901, 0
        %v929 = vsel %vm622, %v902, 0
        %v932 = vsel %vm622, %v903, 0
        %v935 = vsel %vm622, %v904, 0
        %937 = vmatprep.subr.bf16.mxu0 0
        %938 = vmatpush1.bf16.msra.mxu0 %v921
        %939 = vmatprep.subr.bf16.mxu0 0
        %940 = vmatpush1.bf16.msra.mxu0 %v922
        %941 = vmatprep.subr.bf16.mxu0 0
        %942 = vmatpush1.bf16.msra.mxu0 0
        %943 = vmatprep.subr.bf16.mxu0 0
        %944 = vmatpush1.bf16.msra.mxu0 0
        %945 = vmatprep.subr.bf16.mxu0 0
        %946 = vmatpush1.bf16.msra.mxu0 0
        %947 = vmatprep.subr.bf16.mxu0 0
        %948 = vmatpush1.bf16.msra.mxu0 0
        %949 = vmatprep.subr.bf16.mxu0 0
        %950 = vmatpush1.bf16.msra.mxu0 0
        %951 = vmatprep.subr.bf16.mxu0 0
        %952 = vmatpush1.bf16.msra.mxu0 0
        %953 = vmatprep.subr.bf16.mxu0 0
        %954 = vmatpush1.bf16.msra.mxu0 0
        %955 = vmatprep.subr.bf16.mxu0 0
        %956 = vmatpush1.bf16.msra.mxu0 0
        %957 = vmatprep.subr.bf16.mxu0 0
        %958 = vmatpush1.bf16.msra.mxu0 0
        %959 = vmatprep.subr.bf16.mxu0 0
        %960 = vmatpush1.bf16.msra.mxu0 0
        %961 = vmatprep.subr.bf16.mxu0 0
        %962 = vmatpush1.bf16.msra.mxu0 0
        %963 = vmatprep.subr.bf16.mxu0 0
        %964 = vmatpush1.bf16.msra.mxu0 0
        %965 = vmatprep.subr.bf16.mxu0 0
        %966 = vmatpush1.bf16.msra.mxu0 0
        %967 = vmatprep.subr.bf16.mxu0 0
        %968 = vmatpush1.bf16.msra.mxu0 0
        %969 = vmatprep.mubr.bf16.mxu0 0
        %970 = vmatmul.mubr.bf16.gmra.mrb[0].mxu0 %v926
        %v971 = vpop.f32.mrb[0].mxu0
        %v972 = vadd.f32 %v912, %v971
        %v973 = vpop.f32.mrb[0].mxu0
        %v974 = vpop.f32.mrb[0].mxu0
        %v975 = vadd.f32 %v912, %v974
        %v976 = vpop.f32.mrb[0].mxu0
        %977 = vmatprep.mubr.bf16.mxu0 0
        %978 = vmatmul.mubr.bf16.gmra.mrb[0].mxu0 %v929
        %v979 = vpop.f32.mrb[0].mxu0
        %v980 = vadd.f32 %v912, %v979
        %v981 = vpop.f32.mrb[0].mxu0
        %v982 = vpop.f32.mrb[0].mxu0
        %v983 = vadd.f32 %v912, %v982
        %v984 = vpop.f32.mrb[0].mxu0
        %985 = vmatprep.mubr.bf16.mxu0 0
        %986 = vmatmul.mubr.bf16.gmra.mrb[0].mxu0 %v932
        %v987 = vpop.f32.mrb[0].mxu0
        %v988 = vadd.f32 %v912, %v987
        %v989 = vpop.f32.mrb[0].mxu0
        %v990 = vpop.f32.mrb[0].mxu0
        %v991 = vadd.f32 %v912, %v990
        %v992 = vpop.f32.mrb[0].mxu0
        %993 = vmatprep.mubr.bf16.mxu0 0
        %994 = vmatmul.mubr.bf16.gmra.mrb[0].mxu0 %v935
        %v995 = vpop.f32.mrb[0].mxu0
        %v996 = vadd.f32 %v912, %v995
        %v997 = vpop.f32.mrb[0].mxu0
        %v998 = vpop.f32.mrb[0].mxu0
        %v999 = vadd.f32 %v912, %v998
        %v1000 = vpop.f32.mrb[0].mxu0
        %1001 = vdwg.mxu0
        %v1002 = vld [vmem:[%s546] sm:$0xff]
        %v1003 = vld [vmem:[%s546 + $0x8] sm:$0xff]
        %vm1004 = vcmp.gt.f32.partialorder %v1002, 0.5
        %vm1005 = vcmp.gt.f32.partialorder %v1003, 0.5
        %v1006 = vsel %vm1004, %v972, -100000.0
        %v1007 = vsel %vm1005, %v975, -100000.0
        %1010 = vrot.lane.b32.xlu0 %v980, 1
        %v1011 = vpop.permute.xlu0 %1010
        %1012 = vrot.lane.b32.xlu0 %v983, 1
        %v1013 = vpop.permute.xlu0 %1012
        %v1016 = vsel %vm1004, %v1011, -100000.0
        %v1017 = vsel %vm1005, %v1013, -100000.0
        %1020 = vrot.lane.b32.xlu0 %v988, 2
        %v1021 = vpop.permute.xlu0 %1020
        %1022 = vrot.lane.b32.xlu0 %v991, 2
        %v1023 = vpop.permute.xlu0 %1022
        %v1026 = vsel %vm1004, %v1021, -100000.0
        %v1027 = vsel %vm1005, %v1023, -100000.0
        %1030 = vrot.lane.b32.xlu0 %v996, 3
        %v1031 = vpop.permute.xlu0 %1030
        %1032 = vrot.lane.b32.xlu0 %v999, 3
        %v1033 = vpop.permute.xlu0 %1032
        %v1036 = vsel %vm1004, %v1031, -100000.0
        %v1037 = vsel %vm1005, %v1033, -100000.0
        %1040 = vrot.lane.b32.xlu0 %v1016, 127
        %v1041 = vpop.permute.xlu0 %1040
        %1042 = vrot.lane.b32.xlu0 %v1017, 127
        %v1043 = vpop.permute.xlu0 %1042
        %v1046 = vmax.f32 %v1006, %v1041
        %v1047 = vmax.f32 %v1007, %v1043
        %1050 = vrot.lane.b32.xlu0 %v1026, 126
        %v1051 = vpop.permute.xlu0 %1050
        %1052 = vrot.lane.b32.xlu0 %v1027, 126
        %v1053 = vpop.permute.xlu0 %1052
        %v1056 = vmax.f32 %v1046, %v1051
        %v1057 = vmax.f32 %v1047, %v1053
        %1060 = vrot.lane.b32.xlu0 %v1036, 125
        %v1061 = vpop.permute.xlu0 %1060
        %1062 = vrot.lane.b32.xlu0 %v1037, 125
        %v1063 = vpop.permute.xlu0 %1062
        %v1066 = vmax.f32 %v1056, %v1061
        %v1067 = vmax.f32 %v1057, %v1063
        %v1068 = vsub.f32 %v1006, %v1066
        %v1069 = vsub.f32 %v1007, %v1067
        %v1070 = vmul.f32 %v1068, 1.442695
        %v1071 = vpow.pop %v1070
        %v1072 = vmul.f32 %v1069, 1.442695
        %v1073 = vpow.pop %v1072
        %1076 = vrot.lane.b32.xlu0 %v1066, 1
        %v1077 = vpop.permute.xlu0 %1076
        %1078 = vrot.lane.b32.xlu0 %v1067, 1
        %v1079 = vpop.permute.xlu0 %1078
        %v1082 = vsub.f32 %v1016, %v1077
        %v1083 = vsub.f32 %v1017, %v1079
        %v1084 = vmul.f32 %v1082, 1.442695
        %v1085 = vpow.pop %v1084
        %v1086 = vmul.f32 %v1083, 1.442695
        %v1087 = vpow.pop %v1086
        %1088 = vrot.lane.b32.xlu0 %v1066, 2
        %v1089 = vpop.permute.xlu0 %1088
        %1090 = vrot.lane.b32.xlu0 %v1067, 2
        %v1091 = vpop.permute.xlu0 %1090
        %v1094 = vsub.f32 %v1026, %v1089
        %v1095 = vsub.f32 %v1027, %v1091
        %v1096 = vmul.f32 %v1094, 1.442695
        %v1097 = vpow.pop %v1096
        %v1098 = vmul.f32 %v1095, 1.442695
        %v1099 = vpow.pop %v1098
        %1100 = vrot.lane.b32.xlu0 %v1066, 3
        %v1101 = vpop.permute.xlu0 %1100
        %1102 = vrot.lane.b32.xlu0 %v1067, 3
        %v1103 = vpop.permute.xlu0 %1102
        %v1106 = vsub.f32 %v1036, %v1101
        %v1107 = vsub.f32 %v1037, %v1103
        %v1108 = vmul.f32 %v1106, 1.442695
        %v1109 = vpow.pop %v1108
        %v1110 = vmul.f32 %v1107, 1.442695
        %v1111 = vpow.pop %v1110
        %1114 = vrot.lane.b32.xlu0 %v1085, 127
        %v1115 = vpop.permute.xlu0 %1114
        %1116 = vrot.lane.b32.xlu0 %v1087, 127
        %v1117 = vpop.permute.xlu0 %1116
        %v1120 = vadd.f32 %v1071, %v1115
        %v1121 = vadd.f32 %v1073, %v1117
        %1124 = vrot.lane.b32.xlu0 %v1097, 126
        %v1125 = vpop.permute.xlu0 %1124
        %1126 = vrot.lane.b32.xlu0 %v1099, 126
        %v1127 = vpop.permute.xlu0 %1126
        %v1130 = vadd.f32 %v1120, %v1125
        %v1131 = vadd.f32 %v1121, %v1127
        %1134 = vrot.lane.b32.xlu0 %v1109, 125
        %v1135 = vpop.permute.xlu0 %1134
        %1136 = vrot.lane.b32.xlu0 %v1111, 125
        %v1137 = vpop.permute.xlu0 %1136
        %v1140 = vadd.f32 %v1130, %v1135
        %v1141 = vadd.f32 %v1131, %v1137
        %v1142 = vrcp.pop %v1140
        %v1143 = vrcp.pop %v1141
        %v1144 = vmul.f32 %v1071, %v1142
        %v1145 = vmul.f32 %v1073, %v1143
        %v1146 = vunpack.c.l.bf16 %v574
        %v1147 = vunpack.c.l.bf16 %v575
        %1149 = vset.pattern.permute.xlu0 0
        %1150 = vperm.xlu0 %1149, %v1144
        %v1151 = vpop.permute.xlu0 %1150
        %1154 = vset.pattern.permute.xlu0 0
        %1155 = vperm.xlu0 %1154, %v1145
        %v1156 = vpop.permute.xlu0 %1155
        %v1158 = vmul.f32 %v1151, %v1146
        %v1159 = vmul.f32 %v1156, %v1147
        %1162 = vrot.lane.b32.xlu0 %v1142, 1
        %v1163 = vpop.permute.xlu0 %1162
        %1164 = vrot.lane.b32.xlu0 %v1143, 1
        %v1165 = vpop.permute.xlu0 %1164
        %v1168 = vmul.f32 %v1085, %v1163
        %v1169 = vmul.f32 %v1087, %v1165
        %v1170 = vunpack.c.l.bf16 %v576
        %v1171 = vunpack.c.l.bf16 %v577
        %1173 = vset.pattern.permute.xlu0 1
        %1174 = vperm.xlu0 %1173, %v1168
        %v1175 = vpop.permute.xlu0 %1174
        %1178 = vset.pattern.permute.xlu0 1
        %1179 = vperm.xlu0 %1178, %v1169
        %v1180 = vpop.permute.xlu0 %1179
        %v1182 = vmul.f32 %v1175, %v1170
        %v1183 = vmul.f32 %v1180, %v1171
        %v1184 = vadd.f32 %v1158, %v1182
        %v1185 = vadd.f32 %v1159, %v1183
        %1186 = vrot.lane.b32.xlu0 %v1142, 2
        %v1187 = vpop.permute.xlu0 %1186
        %1188 = vrot.lane.b32.xlu0 %v1143, 2
        %v1189 = vpop.permute.xlu0 %1188
        %v1192 = vmul.f32 %v1097, %v1187
        %v1193 = vmul.f32 %v1099, %v1189
        %v1194 = vunpack.c.l.bf16 %v578
        %v1195 = vunpack.c.l.bf16 %v579
        %1197 = vset.pattern.permute.xlu0 2
        %1198 = vperm.xlu0 %1197, %v1192
        %v1199 = vpop.permute.xlu0 %1198
        %1202 = vset.pattern.permute.xlu0 2
        %1203 = vperm.xlu0 %1202, %v1193
        %v1204 = vpop.permute.xlu0 %1203
        %v1206 = vmul.f32 %v1199, %v1194
        %v1207 = vmul.f32 %v1204, %v1195
        %v1208 = vadd.f32 %v1184, %v1206
        %v1209 = vadd.f32 %v1185, %v1207
        %1210 = vrot.lane.b32.xlu0 %v1142, 3
        %v1211 = vpop.permute.xlu0 %1210
        %1212 = vrot.lane.b32.xlu0 %v1143, 3
        %v1213 = vpop.permute.xlu0 %1212
        %v1216 = vmul.f32 %v1109, %v1211
        %v1217 = vmul.f32 %v1111, %v1213
        %v1218 = vunpack.c.l.bf16 %v580
        %v1219 = vunpack.c.l.bf16 %v581
        %1221 = vset.pattern.permute.xlu0 3
        %1222 = vperm.xlu0 %1221, %v1216
        %v1223 = vpop.permute.xlu0 %1222
        %1226 = vset.pattern.permute.xlu0 3
        %1227 = vperm.xlu0 %1226, %v1217
        %v1228 = vpop.permute.xlu0 %1227
        %v1230 = vmul.f32 %v1223, %v1218
        %v1231 = vmul.f32 %v1228, %v1219
        %v1232 = vadd.f32 %v1208, %v1230
        %v1233 = vadd.f32 %v1209, %v1231
        %v1234 = vld [vmem:[%s552] sm:$0xf]
        %v1235 = vld [vmem:[%s552 + $0x4] sm:$0xf]
        %v1236 = vld [vmem:[%s6] sm:$0xf]
        %v1237 = vld [vmem:[%s6 + $0x4] sm:$0xf]
        %v1238 = vld [vmem:[%s6 + $0x8] sm:$0xf]
        %v1239 = vld [vmem:[%s6 + $0xc] sm:$0xf]
        %v1240 = vld [vmem:[%s6 + $0x10] sm:$0xf]
        %v1241 = vld [vmem:[%s6 + $0x14] sm:$0xf]
        %v1242 = vld [vmem:[%s6 + $0x18] sm:$0xf]
        %v1243 = vld [vmem:[%s6 + $0x1c] sm:$0xf]
        %v1244 = vld [vmem:[%s6 + $0x20] sm:$0xf]
        %v1245 = vld [vmem:[%s6 + $0x24] sm:$0xf]
        %v1246 = vld [vmem:[%s6 + $0x28] sm:$0xf]
        %v1247 = vld [vmem:[%s6 + $0x2c] sm:$0xf]
        %v1248 = vld [vmem:[%s6 + $0x30] sm:$0xf]
        %v1249 = vld [vmem:[%s6 + $0x34] sm:$0xf]
        %v1250 = vld [vmem:[%s6 + $0x38] sm:$0xf]
        %v1251 = vld [vmem:[%s6 + $0x3c] sm:$0xf]
        %v1252 = vpack.c.bf16 %v1233, %v1232
        %v1253 = vld [vmem:[%s7] sm:$0xf]
        %v1254 = vld [vmem:[%s7 + $0x4] sm:$0xf]
        %v1255 = vld [vmem:[%s7 + $0x8] sm:$0xf]
        %v1256 = vld [vmem:[%s7 + $0xc] sm:$0xf]
        %v1261 = vunpack.c.l.b16 %v1253
        %v1262 = vunpack.c.l.b16 %v1254
        %v1263 = vunpack.c.l.b16 %v1255
        %v1264 = vunpack.c.l.b16 %v1256
        %v1265 = vpack.c.b16 %v1262, %v1261
        %v1266 = vpack.c.b16 %v1264, %v1263
        %v1270 = vsel %vm622, %v1252, 0
        %1272 = vmatprep.subr.bf16.mxu0 0
        %1273 = vmatpush1.bf16.msra.mxu0 %v1265
        %1274 = vmatprep.subr.bf16.mxu0 0
        %1275 = vmatpush1.bf16.msra.mxu0 %v1266
        %1276 = vmatprep.subr.bf16.mxu0 0
        %1277 = vmatpush1.bf16.msra.mxu0 0
        %1278 = vmatprep.subr.bf16.mxu0 0
        %1279 = vmatpush1.bf16.msra.mxu0 0
        %1280 = vmatprep.subr.bf16.mxu0 0
        %1281 = vmatpush1.bf16.msra.mxu0 0
        %1282 = vmatprep.subr.bf16.mxu0 0
        %1283 = vmatpush1.bf16.msra.mxu0 0
        %1284 = vmatprep.subr.bf16.mxu0 0
        %1285 = vmatpush1.bf16.msra.mxu0 0
        %1286 = vmatprep.subr.bf16.mxu0 0
        %1287 = vmatpush1.bf16.msra.mxu0 0
        %1288 = vmatprep.subr.bf16.mxu0 0
        %1289 = vmatpush1.bf16.msra.mxu0 0
        %1290 = vmatprep.subr.bf16.mxu0 0
        %1291 = vmatpush1.bf16.msra.mxu0 0
        %1292 = vmatprep.subr.bf16.mxu0 0
        %1293 = vmatpush1.bf16.msra.mxu0 0
        %1294 = vmatprep.subr.bf16.mxu0 0
        %1295 = vmatpush1.bf16.msra.mxu0 0
        %1296 = vmatprep.subr.bf16.mxu0 0
        %1297 = vmatpush1.bf16.msra.mxu0 0
        %1298 = vmatprep.subr.bf16.mxu0 0
        %1299 = vmatpush1.bf16.msra.mxu0 0
        %1300 = vmatprep.subr.bf16.mxu0 0
        %1301 = vmatpush1.bf16.msra.mxu0 0
        %1302 = vmatprep.subr.bf16.mxu0 0
        %1303 = vmatpush1.bf16.msra.mxu0 0
        %1304 = vmatprep.mubr.bf16.mxu0 0
        %1305 = vmatmul.mubr.bf16.gmra.mrb[0].mxu0 %v1270
        %v1306 = vpop.f32.mrb[0].mxu0
        %v1307 = vadd.f32 0.0, %v1306
        %v1308 = vpop.f32.mrb[0].mxu0
        %v1309 = vpop.f32.mrb[0].mxu0
        %v1310 = vadd.f32 0.0, %v1309
        %v1311 = vpop.f32.mrb[0].mxu0
        %1312 = vdwg.mxu0
        %v1315 = vunpack.c.l.b16 %v1234
        %v1316 = vunpack.c.l.b16 %v1235
        %v1317 = vpack.c.b16 %v1316, %v1315
        %v1335 = vunpack.c.l.b16 %v1236
        %v1336 = vunpack.c.l.b16 %v1237
        %v1337 = vunpack.c.l.b16 %v1238
        %v1338 = vunpack.c.l.b16 %v1239
        %v1339 = vunpack.c.l.b16 %v1240
        %v1340 = vunpack.c.l.b16 %v1241
        %v1341 = vunpack.c.l.b16 %v1242
        %v1342 = vunpack.c.l.b16 %v1243
        %v1343 = vunpack.c.l.b16 %v1244
        %v1344 = vunpack.c.l.b16 %v1245
        %v1345 = vunpack.c.l.b16 %v1246
        %v1346 = vunpack.c.l.b16 %v1247
        %v1347 = vunpack.c.l.b16 %v1248
        %v1348 = vunpack.c.l.b16 %v1249
        %v1349 = vunpack.c.l.b16 %v1250
        %v1350 = vunpack.c.l.b16 %v1251
        %v1351 = vpack.c.b16 %v1336, %v1335
        %v1352 = vpack.c.b16 %v1338, %v1337
        %v1353 = vpack.c.b16 %v1340, %v1339
        %v1354 = vpack.c.b16 %v1342, %v1341
        %v1355 = vpack.c.b16 %v1344, %v1343
        %v1356 = vpack.c.b16 %v1346, %v1345
        %v1357 = vpack.c.b16 %v1348, %v1347
        %v1358 = vpack.c.b16 %v1350, %v1349
        %1367 = vmatprep.subr.bf16.mxu0 0
        %1368 = vmatpush1.bf16.msra.mxu0 %v1351
        %1369 = vmatprep.subr.bf16.mxu0 0
        %1370 = vmatpush1.bf16.msra.mxu0 %v1352
        %1371 = vmatprep.subr.bf16.mxu0 0
        %1372 = vmatpush1.bf16.msra.mxu0 %v1353
        %1373 = vmatprep.subr.bf16.mxu0 0
        %1374 = vmatpush1.bf16.msra.mxu0 %v1354
        %1375 = vmatprep.subr.bf16.mxu0 0
        %1376 = vmatpush1.bf16.msra.mxu0 %v1355
        %1377 = vmatprep.subr.bf16.mxu0 0
        %1378 = vmatpush1.bf16.msra.mxu0 %v1356
        %1379 = vmatprep.subr.bf16.mxu0 0
        %1380 = vmatpush1.bf16.msra.mxu0 %v1357
        %1381 = vmatprep.subr.bf16.mxu0 0
        %1382 = vmatpush1.bf16.msra.mxu0 %v1358
        %1383 = vmatprep.subr.bf16.mxu0 0
        %1384 = vmatpush1.bf16.msra.mxu0 0
        %1385 = vmatprep.subr.bf16.mxu0 0
        %1386 = vmatpush1.bf16.msra.mxu0 0
        %1387 = vmatprep.subr.bf16.mxu0 0
        %1388 = vmatpush1.bf16.msra.mxu0 0
        %1389 = vmatprep.subr.bf16.mxu0 0
        %1390 = vmatpush1.bf16.msra.mxu0 0
        %1391 = vmatprep.subr.bf16.mxu0 0
        %1392 = vmatpush1.bf16.msra.mxu0 0
        %1393 = vmatprep.subr.bf16.mxu0 0
        %1394 = vmatpush1.bf16.msra.mxu0 0
        %1395 = vmatprep.subr.bf16.mxu0 0
        %1396 = vmatpush1.bf16.msra.mxu0 0
        %1397 = vmatprep.subr.bf16.mxu0 0
        %1398 = vmatpush1.bf16.msra.mxu0 0
        %1399 = vmatprep.mubr.bf16.mxu0 0
        %1400 = vmatmul.mubr.bf16.gmra.mrb[0].mxu0 %v1317
        %v1401 = vpop.f32.mrb[0].mxu0
        %v1402 = vadd.f32 %v1307, %v1401
        %v1403 = vpop.f32.mrb[0].mxu0
        %v1404 = vpop.f32.mrb[0].mxu0
        %v1405 = vadd.f32 %v1310, %v1404
        %v1406 = vpop.f32.mrb[0].mxu0
        %1407 = vdwg.mxu0
        %v1408 = vlaneseq
        %v1409 = vshrl.u32 %v1408, 7
        %v1410 = vsub.s32 0, %v1409
        %v1411 = vrot.slane %v566, %v1410
        %v1412 = vadd.f32 %v1402, %v1411
        %v1413 = vadd.f32 %v1405, %v1411
        %v1414 = vsel %vm622, %v1412, 0.0
        %1415 = vadd.xlane.f32.xlu0 %v1414
        %v1416 = vpop.xlane.xlu0 %1415
        %v1417 = vsel %vm622, %v1413, 0.0
        %1418 = vadd.xlane.f32.xlu0 %v1417
        %v1419 = vpop.xlane.xlu0 %1418
        %v1420 = vmul.f32 %v1416, %v724
        %v1421 = vmul.f32 %v1419, %v724
        %v1422 = vsub.f32 %v1412, %v1420
        %v1423 = vsub.f32 %v1413, %v1421
        %v1424 = vmul.f32 %v1422, %v1422
        %v1425 = vmul.f32 %v1423, %v1423
        %v1426 = vsel %vm622, %v1424, 0.0
        %1427 = vadd.xlane.f32.xlu0 %v1426
        %v1428 = vpop.xlane.xlu0 %1427
        %v1429 = vsel %vm622, %v1425, 0.0
        %1430 = vadd.xlane.f32.xlu0 %v1429
        %v1431 = vpop.xlane.xlu0 %1430
        %v1432 = vmul.f32 %v1428, %v724
        %v1433 = vmul.f32 %v1431, %v724
        %v1434 = vadd.f32 %v1432, 1e-05
        %v1435 = vadd.f32 %v1433, 1e-05
        %v1436 = vrsqrt.pop %v1434
        %v1437 = vrsqrt.pop %v1435
        %v1438 = vmul.f32 %v1422, %v1436
        %v1439 = vmul.f32 %v1423, %v1437
        %v1440 = vlaneseq
        %v1441 = vshrl.u32 %v1440, 7
        %v1442 = vsub.s32 0, %v1441
        %v1443 = vrot.slane %v567, %v1442
        %v1444 = vmul.f32 %v1438, %v1443
        %v1445 = vmul.f32 %v1439, %v1443
        %v1446 = vlaneseq
        %v1447 = vshrl.u32 %v1446, 7
        %v1448 = vsub.s32 0, %v1447
        %v1449 = vrot.slane %v568, %v1448
        %v1450 = vadd.f32 %v1444, %v1449
        %v1451 = vadd.f32 %v1445, %v1449
        %v1452 = vmul.f32 %v1450, %v1450
        %v1453 = vmul.f32 %v1451, %v1451
        %v1454 = vmul.f32 %v1450, %v1452
        %v1455 = vmul.f32 %v1451, %v1453
        %v1456 = vmul.f32 %v1454, 0.044715
        %v1457 = vmul.f32 %v1455, 0.044715
        %v1458 = vadd.f32 %v1450, %v1456
        %v1459 = vadd.f32 %v1451, %v1457
        %v1460 = vmul.f32 %v1458, 0.7978846
        %v1461 = vmul.f32 %v1459, 0.7978846
        %v1462 = vtanh.pop %v1460
        %v1463 = vtanh.pop %v1461
        %v1464 = vadd.f32 %v1462, 1.0
        %v1465 = vadd.f32 %v1463, 1.0
        %v1466 = vmul.f32 %v1464, 0.5
        %v1467 = vmul.f32 %v1465, 0.5
        %v1468 = vmul.f32 %v1450, %v1466
        %v1469 = vmul.f32 %v1451, %v1467
        %v1470 = vpack.c.bf16 %v1469, %v1468
        %v1471 = vld [vmem:[%s8] sm:$0xf]
        %v1472 = vld [vmem:[%s8 + $0x4] sm:$0xf]
        %v1473 = vld [vmem:[%s8 + $0x8] sm:$0xf]
        %v1474 = vld [vmem:[%s8 + $0xc] sm:$0xf]
        %v1475 = vlaneseq
        %v1476 = vshrl.u32 %v1475, 7
        %v1477 = vsub.s32 0, %v1476
        %v1478 = vrot.slane %v569, %v1477
        %v1483 = vunpack.c.l.b16 %v1471
        %v1484 = vunpack.c.l.b16 %v1472
        %v1485 = vunpack.c.l.b16 %v1473
        %v1486 = vunpack.c.l.b16 %v1474
        %v1487 = vpack.c.b16 %v1484, %v1483
        %v1488 = vpack.c.b16 %v1486, %v1485
        %v1492 = vsel %vm622, %v1470, 0
        %1494 = vmatprep.subr.bf16.mxu0 0
        %1495 = vmatpush1.bf16.msra.mxu0 %v1487
        %1496 = vmatprep.subr.bf16.mxu0 0
        %1497 = vmatpush1.bf16.msra.mxu0 %v1488
        %1498 = vmatprep.subr.bf16.mxu0 0
        %1499 = vmatpush1.bf16.msra.mxu0 0
        %1500 = vmatprep.subr.bf16.mxu0 0
        %1501 = vmatpush1.bf16.msra.mxu0 0
        %1502 = vmatprep.subr.bf16.mxu0 0
        %1503 = vmatpush1.bf16.msra.mxu0 0
        %1504 = vmatprep.subr.bf16.mxu0 0
        %1505 = vmatpush1.bf16.msra.mxu0 0
        %1506 = vmatprep.subr.bf16.mxu0 0
        %1507 = vmatpush1.bf16.msra.mxu0 0
        %1508 = vmatprep.subr.bf16.mxu0 0
        %1509 = vmatpush1.bf16.msra.mxu0 0
        %1510 = vmatprep.subr.bf16.mxu0 0
        %1511 = vmatpush1.bf16.msra.mxu0 0
        %1512 = vmatprep.subr.bf16.mxu0 0
        %1513 = vmatpush1.bf16.msra.mxu0 0
        %1514 = vmatprep.subr.bf16.mxu0 0
        %1515 = vmatpush1.bf16.msra.mxu0 0
        %1516 = vmatprep.subr.bf16.mxu0 0
        %1517 = vmatpush1.bf16.msra.mxu0 0
        %1518 = vmatprep.subr.bf16.mxu0 0
        %1519 = vmatpush1.bf16.msra.mxu0 0
        %1520 = vmatprep.subr.bf16.mxu0 0
        %1521 = vmatpush1.bf16.msra.mxu0 0
        %1522 = vmatprep.subr.bf16.mxu0 0
        %1523 = vmatpush1.bf16.msra.mxu0 0
        %1524 = vmatprep.subr.bf16.mxu0 0
        %1525 = vmatpush1.bf16.msra.mxu0 0
        %1526 = vmatprep.mubr.bf16.mxu0 0
        %1527 = vmatmul.mubr.bf16.gmra.mrb[0].mxu0 %v1492
        %v1528 = vpop.f32.mrb[0].mxu0
        %v1529 = vadd.f32 %v1478, %v1528
        %v1530 = vpop.f32.mrb[0].mxu0
        %v1531 = vpop.f32.mrb[0].mxu0
        %v1532 = vadd.f32 %v1478, %v1531
        %v1533 = vpop.f32.mrb[0].mxu0
        %1534 = vdwg.mxu0
        %v1535 = vsel %vm622, %v1529, 0.0
        %1536 = vadd.xlane.f32.xlu0 %v1535
        %v1537 = vpop.xlane.xlu0 %1536
        %v1538 = vsel %vm622, %v1532, 0.0
        %1539 = vadd.xlane.f32.xlu0 %v1538
        %v1540 = vpop.xlane.xlu0 %1539
        %v1541 = vmul.f32 %v1537, %v724
        %v1542 = vmul.f32 %v1540, %v724
        %v1543 = vsub.f32 %v1529, %v1541
        %v1544 = vsub.f32 %v1532, %v1542
        %v1545 = vmul.f32 %v1543, %v1543
        %v1546 = vmul.f32 %v1544, %v1544
        %v1547 = vsel %vm622, %v1545, 0.0
        %1548 = vadd.xlane.f32.xlu0 %v1547
        %v1549 = vpop.xlane.xlu0 %1548
        %v1550 = vsel %vm622, %v1546, 0.0
        %1551 = vadd.xlane.f32.xlu0 %v1550
        %v1552 = vpop.xlane.xlu0 %1551
        %v1553 = vmul.f32 %v1549, %v724
        %v1554 = vmul.f32 %v1552, %v724
        %v1555 = vadd.f32 %v1553, 1e-05
        %v1556 = vadd.f32 %v1554, 1e-05
        %v1557 = vrsqrt.pop %v1555
        %v1558 = vrsqrt.pop %v1556
        %v1559 = vmul.f32 %v1543, %v1557
        %v1560 = vmul.f32 %v1544, %v1558
        %v1561 = vlaneseq
        %v1562 = vshrl.u32 %v1561, 7
        %v1563 = vsub.s32 0, %v1562
        %v1564 = vrot.slane %v570, %v1563
        %v1565 = vmul.f32 %v1559, %v1564
        %v1566 = vmul.f32 %v1560, %v1564
        %v1567 = vlaneseq
        %v1568 = vshrl.u32 %v1567, 7
        %v1569 = vsub.s32 0, %v1568
        %v1570 = vrot.slane %v571, %v1569
        %v1571 = vadd.f32 %v1565, %v1570
        %v1572 = vadd.f32 %v1566, %v1570
        %v1573 = vmul.f32 %v1571, %v1571
        %v1574 = vmul.f32 %v1572, %v1572
        %v1575 = vmul.f32 %v1571, %v1573
        %v1576 = vmul.f32 %v1572, %v1574
        %v1577 = vmul.f32 %v1575, 0.044715
        %v1578 = vmul.f32 %v1576, 0.044715
        %v1579 = vadd.f32 %v1571, %v1577
        %v1580 = vadd.f32 %v1572, %v1578
        %v1581 = vmul.f32 %v1579, 0.7978846
        %v1582 = vmul.f32 %v1580, 0.7978846
        %v1583 = vtanh.pop %v1581
        %v1584 = vtanh.pop %v1582
        %v1585 = vadd.f32 %v1583, 1.0
        %v1586 = vadd.f32 %v1584, 1.0
        %v1587 = vmul.f32 %v1585, 0.5
        %v1588 = vmul.f32 %v1586, 0.5
        %v1589 = vmul.f32 %v1571, %v1587
        %v1590 = vmul.f32 %v1572, %v1588
        %v1591 = vpack.c.bf16 %v1590, %v1589
        %v1592 = vld [vmem:[%s9] sm:$0xf]
        %v1593 = vld [vmem:[%s9 + $0x4] sm:$0xf]
        %v1594 = vld [vmem:[%s9 + $0x8] sm:$0xf]
        %v1595 = vld [vmem:[%s9 + $0xc] sm:$0xf]
        %v1596 = vlaneseq
        %v1597 = vshrl.u32 %v1596, 7
        %v1598 = vsub.s32 0, %v1597
        %v1599 = vrot.slane %v572, %v1598
        %v1604 = vunpack.c.l.b16 %v1592
        %v1605 = vunpack.c.l.b16 %v1593
        %v1606 = vunpack.c.l.b16 %v1594
        %v1607 = vunpack.c.l.b16 %v1595
        %v1608 = vpack.c.b16 %v1605, %v1604
        %v1609 = vpack.c.b16 %v1607, %v1606
        %v1613 = vsel %vm622, %v1591, 0
        %1615 = vmatprep.subr.bf16.mxu0 0
        %1616 = vmatpush1.bf16.msra.mxu0 %v1608
        %1617 = vmatprep.subr.bf16.mxu0 0
        %1618 = vmatpush1.bf16.msra.mxu0 %v1609
        %1619 = vmatprep.subr.bf16.mxu0 0
        %1620 = vmatpush1.bf16.msra.mxu0 0
        %1621 = vmatprep.subr.bf16.mxu0 0
        %1622 = vmatpush1.bf16.msra.mxu0 0
        %1623 = vmatprep.subr.bf16.mxu0 0
        %1624 = vmatpush1.bf16.msra.mxu0 0
        %1625 = vmatprep.subr.bf16.mxu0 0
        %1626 = vmatpush1.bf16.msra.mxu0 0
        %1627 = vmatprep.subr.bf16.mxu0 0
        %1628 = vmatpush1.bf16.msra.mxu0 0
        %1629 = vmatprep.subr.bf16.mxu0 0
        %1630 = vmatpush1.bf16.msra.mxu0 0
        %1631 = vmatprep.subr.bf16.mxu0 0
        %1632 = vmatpush1.bf16.msra.mxu0 0
        %1633 = vmatprep.subr.bf16.mxu0 0
        %1634 = vmatpush1.bf16.msra.mxu0 0
        %1635 = vmatprep.subr.bf16.mxu0 0
        %1636 = vmatpush1.bf16.msra.mxu0 0
        %1637 = vmatprep.subr.bf16.mxu0 0
        %1638 = vmatpush1.bf16.msra.mxu0 0
        %1639 = vmatprep.subr.bf16.mxu0 0
        %1640 = vmatpush1.bf16.msra.mxu0 0
        %1641 = vmatprep.subr.bf16.mxu0 0
        %1642 = vmatpush1.bf16.msra.mxu0 0
        %1643 = vmatprep.subr.bf16.mxu0 0
        %1644 = vmatpush1.bf16.msra.mxu0 0
        %1645 = vmatprep.subr.bf16.mxu0 0
        %1646 = vmatpush1.bf16.msra.mxu0 0
        %1647 = vmatprep.mubr.bf16.mxu0 0
        %1648 = vmatmul.mubr.bf16.gmra.mrb[0].mxu0 %v1613
        %v1649 = vpop.f32.mrb[0].mxu0
        %v1650 = vadd.f32 %v1599, %v1649
        %v1651 = vpop.f32.mrb[0].mxu0
        %v1652 = vpop.f32.mrb[0].mxu0
        %v1653 = vadd.f32 %v1599, %v1652
        %v1654 = vpop.f32.mrb[0].mxu0
        %1655 = vdwg.mxu0
        %v1656 = vpack.c.bf16 %v1653, %v1650
        %v1658 = vunpack.c.l.b16 %v1656
        %v1659 = vunpack.c.h.b16 %v1656
        %v1660 = vpack.c.b16 %v1658, %v1658
        %v1661 = vpack.c.b16 %v1659, %v1659
        %1664 = vst [vmem:[%s533] sm:$0xf] %v1660
        %1665 = vst [vmem:[%s533 + $0x4] sm:$0xf] %v1661
        %v1666 = vlaneseq
        %v1667 = vand.u32 %v1666, 127
        %v1668 = vld [vmem:[%s558] sm:$0xff]
        %v1669 = vld [vmem:[%s558 + $0x8] sm:$0xff]
        %1670 = vset.pattern.permute.xlu0 0
        %1671 = vperm.xlu0 %1670, %v1668
        %v1672 = vpop.permute.xlu0 %1671
        %1673 = vset.pattern.permute.xlu0 0
        %1674 = vperm.xlu0 %1673, %v1669
        %v1675 = vpop.permute.xlu0 %1674
        %vm1676 = vcmp.eq.s32.totalorder %v1667, %v1672
        %vm1677 = vcmp.eq.s32.totalorder %v1667, %v1675
        %v1678 = vsel %vm1676, 1, 0
        %v1679 = vsel %vm1677, 1, 0
        %v1680 = vcvt.s32.f32 %v1678
        %v1681 = vcvt.s32.f32 %v1679
        %vm1682 = vcmp.lt.s32.totalorder %v1667, 4
        %v1683 = vsel %vm1682, %v1650, -1e+30
        %v1684 = vsel %vm1682, %v1653, -1e+30
        %1685 = vmax.xlane.f32.xlu0 %v1683
        %v1686 = vpop.xlane.xlu0 %1685
        %1687 = vmax.xlane.f32.xlu0 %v1684
        %v1688 = vpop.xlane.xlu0 %1687
        %v1689 = vsub.f32 %v1683, %v1686
        %v1690 = vsub.f32 %v1684, %v1688
        %v1691 = vmul.f32 %v1689, 1.442695
        %v1692 = vpow.pop %v1691
        %v1693 = vmul.f32 %v1690, 1.442695
        %v1694 = vpow.pop %v1693
        %1695 = vadd.xlane.f32.xlu0 %v1692
        %v1696 = vpop.xlane.xlu0 %1695
        %1697 = vadd.xlane.f32.xlu0 %v1694
        %v1698 = vpop.xlane.xlu0 %1697
        %v1699 = vlog2.pop %v1696
        %v1700 = vmul.f32 %v1699, 0.6931472
        %v1701 = vlog2.pop %v1698
        %v1702 = vmul.f32 %v1701, 0.6931472
        %v1703 = vadd.f32 %v1686, %v1700
        %v1704 = vadd.f32 %v1688, %v1702
        %v1705 = vmul.f32 %v1680, %v1650
        %v1706 = vmul.f32 %v1681, %v1653
        %1707 = vadd.xlane.f32.xlu0 %v1705
        %v1708 = vpop.xlane.xlu0 %1707
        %1709 = vadd.xlane.f32.xlu0 %v1706
        %v1710 = vpop.xlane.xlu0 %1709
        %v1711 = vsub.f32 %v1703, %v1708
        %v1712 = vsub.f32 %v1704, %v1710
        %v1713 = vlaneseq
        %v1714 = vshrl.u32 %v1713, 7
        %v1715 = vsub.s32 0, %v1714
        %v1716 = vrot.slane %v573, %v1715
        %v1717 = vmul.f32 %v1680, %v1716
        %v1718 = vmul.f32 %v1681, %v1716
        %1719 = vadd.xlane.f32.xlu0 %v1717
        %v1720 = vpop.xlane.xlu0 %1719
        %1721 = vadd.xlane.f32.xlu0 %v1718
        %v1722 = vpop.xlane.xlu0 %1721
        %v1723 = vmul.f32 %v1720, %v1711
        %v1724 = vmul.f32 %v1722, %v1712
        %v1725 = vadd.f32 %v1723, %v1724
        %v1726 = vrot.slane %v1725, 4
        %v1727 = vadd.f32 %v1725, %v1726
        %v1728 = vrot.slane %v1727, 2
        %v1729 = vadd.f32 %v1727, %v1728
        %v1730 = vrot.slane %v1729, 1
        %v1731 = vadd.f32 %v1729, %v1730
        %v1732 = vadd.f32 %v1720, %v1722
        %v1733 = vrot.slane %v1732, 4
        %v1734 = vadd.f32 %v1732, %v1733
        %v1735 = vrot.slane %v1734, 2
        %v1736 = vadd.f32 %v1734, %v1735
        %v1737 = vrot.slane %v1736, 1
        %v1738 = vadd.f32 %v1736, %v1737
        %v1739 = vlaneseq
        %v1740 = vshrl.u32 %v1739, 7
        %vm1741 = vcmp.eq.s32.totalorder %v1740, 0
        %vm1742 = vcmp.eq.s32.totalorder %v1667, 0
        %vm1743 = vmand %vm1741, %vm1742
        %vm1744 = vcmp.eq.s32.totalorder %v1667, 1
        %vm1745 = vmand %vm1741, %vm1744
        %v1746 = vsel %vm1745, %v1738, 0.0
        %v1747 = vsel %vm1743, %v1731, %v1746
        %1748 = vst [vmem:[%s540] sm:$0xff] %v1747
        %s1749 = sand.u32 %s289, 1
        %s1750 = scalar_lea.sflag [#allocation4], %s1749
        %s1751 = sand.u32 %s289, 1
        %s1752 = smul.addr %s1751, 8
        %s1753 = scalar_lea.vmem [#allocation3], %s1752
        %s1754 = sand.u32 %s315, 1
        %s1755 = scalar_lea.sflag [#allocation6], %s1754
        %s1756 = sand.u32 %s315, 1
        %s1757 = smul.addr %s1756, 8
        %s1758 = scalar_lea.vmem [#allocation5], %s1757
        // Predicated region
        $region106: #{tpu_custom_call.1} parent=100 // pred_check
          %p1759 = pneg %p299
        $region107: #{tpu_custom_call.1} parent=100 // pred_check_branch
          %1761 = sbr.rel (%p1759) target = $region109
        $region108: #{tpu_custom_call.1} parent=100 // pred_region
          %s1762 = smul.u32 2, %s30
          %s1764 = ssub.s32 128, 128
          %1765 = vsyncadd %s1750, %s1764
          %s1766 = smul.addr %s1762, 64
          %s1767 = scalar_lea.hbm %s11, %s1766
          %s1768 = sshll.u32 %s1753, 4
          %s1769 = int_to_ptr.vmem [resolvable:$true] %s1768
          %1774 = dma.vmem_to_hbm [thread:$0]  %s1769, 128, %s1767, %s1750, 64, 64, 4
        $region109: #{tpu_custom_call.1} parent=100 // pred_fallthru
          _
        // Predicated region
        $region110: #{tpu_custom_call.1} parent=100 // pred_check
          %p1775 = pneg %p325
        $region111: #{tpu_custom_call.1} parent=100 // pred_check_branch
          %1777 = sbr.rel (%p1775) target = $region113
        $region112: #{tpu_custom_call.1} parent=100 // pred_region
          %s1779 = ssub.s32 128, 128
          %1780 = vsyncadd %s1755, %s1779
          %s1781 = smul.addr %s30, 128
          %s1782 = scalar_lea.hbm %s12, %s1781
          %s1784 = sshll.u32 %s1758, 4
          %s1785 = int_to_ptr.vmem [resolvable:$true] %s1784
          %1787 = dma.vmem_to_hbm [thread:$0]  %s1785, 128, %s1782, %s1755
        $region113: #{tpu_custom_call.1} parent=100 // pred_fallthru
          _
      $region101: #{tpu_custom_call.1} parent=5 // pred_fallthru
        _
      %p1788 = scmp.le.s32.totalorder 2, %s25
      // Predicated region
      $region114: #{tpu_custom_call.1} parent=5 // pred_check
        %p1789 = pneg %p1788
      $region115: #{tpu_custom_call.1} parent=5 // pred_check_branch
        %1791 = sbr.rel (%p1789) target = $region117
      $region116: #{tpu_custom_call.1} parent=5 // pred_region
        %s1792 = ssub.s32 %s25, 2
        // Predicated region
        $region118: #{tpu_custom_call.1} parent=116 // pred_check
          %p1793 = pneg %p305
        $region119: #{tpu_custom_call.1} parent=116 // pred_check_branch
          %1795 = sbr.rel (%p1793) target = $region121
        $region120: #{tpu_custom_call.1} parent=116 // pred_region
          %s1796 = sand.u32 %s290, 1
          %s1797 = scalar_lea.sflag [#allocation4], %s1796
          %s1798 = sand.u32 %s290, 1
          %s1799 = smul.addr %s1798, 8
          %s1800 = scalar_lea.vmem [#allocation3], %s1799
          %1801 = dma.done %s1797, 128
        $region121: #{tpu_custom_call.1} parent=116 // pred_fallthru
          _
        // Predicated region
        $region122: #{tpu_custom_call.1} parent=116 // pred_check
          %p1802 = pneg %p331
        $region123: #{tpu_custom_call.1} parent=116 // pred_check_branch
          %1804 = sbr.rel (%p1802) target = $region125
        $region124: #{tpu_custom_call.1} parent=116 // pred_region
          %s1805 = sand.u32 %s316, 1
          %s1806 = scalar_lea.sflag [#allocation6], %s1805
          %s1807 = sand.u32 %s316, 1
          %s1808 = smul.addr %s1807, 8
          %s1809 = scalar_lea.vmem [#allocation5], %s1808
          %1810 = dma.done %s1806, 128
        $region125: #{tpu_custom_call.1} parent=116 // pred_fallthru
          _
      $region117: #{tpu_custom_call.1} parent=5 // pred_fallthru
        _
    $region6: #{tpu_custom_call.1} parent=1 // loop_footer
      %s29 = sadd.s32 1, %s25
    $region7: #{tpu_custom_call.1} parent=1 // loop_footer_branch
      %24 = sbr.rel target = $region3
    $region8: #{tpu_custom_call.1} parent=1 // loop_exit
      _
    %1811 = vsyncpa [#allocation4], 1
    %s1812 = scalar_lea.sflag [#allocation4], 1
    %1813 = vsyncpa %s1812, 1
    %1814 = vsyncpa [#allocation6], 1
    %s1815 = scalar_lea.sflag [#allocation6], 1
    %1816 = vsyncpa %s1815, 1

// kernel: tpu_custom_call.1
$region0: #{tpu_custom_call.1}
  #allocation0 [shape = 'u32[]', space=smem, size = 0x4, offset = 0x4, fixed_abs, tag = 'smem constant byte address 0x4 - core index']
  #allocation1 [shape = 'u32[144,128]{1,0:T(1,128)}', space=vmem, size = 0x12000, scoped, tag = 'internal scratch']
  %s0 = inlined_call_operand.vmem [shape: bf16[4,32,32], index: 0, kind: input, shape index: {}]
  %s1 = inlined_call_operand.vmem [shape: f32[32,4], index: 1, kind: input, shape index: {}]
  %s2 = inlined_call_operand.vmem [shape: bf16[32,128], index: 2, kind: input, shape index: {}]
  %s3 = inlined_call_operand.vmem [shape: s32[32,1], index: 3, kind: input, shape index: {}]
  %s4 = inlined_call_operand.vmem [shape: bf16[32,32], index: 4, kind: input, shape index: {}]
  %s5 = inlined_call_operand.vmem [shape: bf16[32,1], index: 5, kind: input, shape index: {}]
  %s6 = inlined_call_operand.vmem [shape: bf16[128,32], index: 6, kind: input, shape index: {}]
  %s7 = inlined_call_operand.vmem [shape: bf16[32,32], index: 7, kind: input, shape index: {}]
  %s8 = inlined_call_operand.vmem [shape: bf16[32,32], index: 8, kind: input, shape index: {}]
  %s9 = inlined_call_operand.vmem [shape: bf16[32,128], index: 9, kind: input, shape index: {}]
  %s10 = inlined_call_operand.vmem [shape: f32[16,128], index: 10, kind: input, shape index: {}]
  %s11 = inlined_call_operand.hbm [shape: bf16[32,128], index: 11, kind: output, shape index: {0}]
  %s12 = inlined_call_operand.hbm [shape: f32[16,128], index: 12, kind: output, shape index: {1}]
  %13 = xla_tuple %s11, %s12
  %s14 = sld [smem:[#allocation0]]
  $region126: #{tpu_custom_call.1} parent=0
    _
  %s16 = ssub.s32 1, %s14
  %s17 = scalar_select 0, %s16, %s14
  $region1: #{tpu_custom_call.1} parent=0
    #allocation2 [shape = 'u8[32768]{0}', space=vmem, size = 0x8000, scoped, tag = 'input window, operand 0']
    #allocation3 [shape = 'u8[8192]{0}', space=vmem, size = 0x2000, scoped, tag = 'output window, operand 0']
    #allocation4 [shape = 's32[2]{0}', space=sflag, size = 0x8, scoped, tag = 'scoped memory for tpu_custom_call.1']
    #allocation5 [shape = 'u8[8192]{0}', space=vmem, size = 0x2000, scoped, tag = 'output window, operand 1']
    #allocation6 [shape = 's32[2]{0}', space=sflag, size = 0x8, scoped, tag = 'scoped memory for tpu_custom_call.1']
    %18 = vsyncpa [#allocation4], 0
    %s19 = scalar_lea.sflag [#allocation4], 1
    %20 = vsyncpa %s19, 0
    %21 = vsyncpa [#allocation6], 0
    %s22 = scalar_lea.sflag [#allocation6], 1
    %23 = vsyncpa %s22, 0
    loop: start=0, step=1, limit=4
    $region2: #{tpu_custom_call.1} parent=1 // loop_pre_header
      _
    $region3: #{tpu_custom_call.1} parent=1 // loop_header
      %s25 = sphi 0, %s29
      %p26 = scmp.ge.s32.totalorder %s25, 4
      %s35 = sphi 0, %s37
      %s38 = sphi 0, %s35
      %s39 = sphi 0, %s38
      %s55 = sphi 0, %s39
      %s61 = sphi 0, %s63
      %s64 = sphi 0, %s61
      %s65 = sphi 0, %s64
      %s81 = sphi 0, %s65
      %s87 = sphi 0, %s89
      %s90 = sphi 0, %s87
      %s91 = sphi 0, %s90
      %s107 = sphi 0, %s91
      %s113 = sphi 0, %s115
      %s116 = sphi 0, %s113
      %s117 = sphi 0, %s116
      %s133 = sphi 0, %s117
      %s137 = sphi 0, %s137
      %s139 = sphi 0, %s137
      %s140 = sphi 0, %s139
      %s154 = sphi 0, %s140
      %s158 = sphi 0, %s158
      %s160 = sphi 0, %s158
      %s161 = sphi 0, %s160
      %s175 = sphi 0, %s161
      %s179 = sphi 0, %s179
      %s181 = sphi 0, %s179
      %s182 = sphi 0, %s181
      %s196 = sphi 0, %s182
      %s200 = sphi 0, %s200
      %s202 = sphi 0, %s200
      %s203 = sphi 0, %s202
      %s217 = sphi 0, %s203
      %s221 = sphi 0, %s221
      %s223 = sphi 0, %s221
      %s224 = sphi 0, %s223
      %s238 = sphi 0, %s224
      %s242 = sphi 0, %s242
      %s244 = sphi 0, %s242
      %s245 = sphi 0, %s244
      %s259 = sphi 0, %s245
      %s263 = sphi 0, %s263
      %s265 = sphi 0, %s263
      %s266 = sphi 0, %s265
      %s280 = sphi 0, %s266
      %s286 = sphi 0, %s288
      %s289 = sphi 0, %s286
      %s290 = sphi 0, %s289
      %s306 = sphi 0, %s290
      %s312 = sphi 0, %s314
      %s315 = sphi 0, %s312
      %s316 = sphi 0, %s315
      %s332 = sphi 0, %s316
    $region4: #{tpu_custom_call.1} parent=1 // loop_header_branch
      %28 = sbr.rel (%p26) target = $region8
    $region5: #{tpu_custom_call.1} parent=1 // loop_body
      %s30 = ssub.s32 %s25, 1
      %s31 = ssub.s32 %s25, 2
      %s32 = sadd.s32 %s25, 1
      %s33 = ssub.s32 %s25, %s32
      %p34 = scmp.eq.s32.totalorder %s33, 0
      %s36 = sadd.s32 %s35, 1
      %s37 = scalar_select %p34, %s35, %s36
      %p40 = pneg %p34
      %p41 = scmp.eq.s32.totalorder %s25, 1
      %p42 = por %p40, %p41
      %p43 = scmp.ne.s32.totalorder %s35, %s38
      %p44 = scmp.eq.s32.totalorder %s25, 0
      %p45 = por %p43, %p44
      %p46 = scmp.ne.s32.totalorder %s35, %s38
      %p47 = scmp.eq.s32.totalorder %s30, 1
      %p48 = por %p46, %p47
      %p49 = scmp.ne.s32.totalorder %s38, %s39
      %p50 = scmp.eq.s32.totalorder %s30, 0
      %p51 = por %p49, %p50
      %p52 = scmp.ne.s32.totalorder %s38, %s39
      %p53 = scmp.eq.s32.totalorder %s31, 1
      %p54 = por %p52, %p53
      %p56 = scmp.ne.s32.totalorder %s39, %s55
      %p57 = scmp.eq.s32.totalorder %s31, 0
      %p58 = por %p56, %p57
      %s59 = ssub.s32 %s25, %s32
      %p60 = scmp.eq.s32.totalorder %s59, 0
      %s62 = sadd.s32 %s61, 1
      %s63 = scalar_select %p60, %s61, %s62
      %p66 = pneg %p60
      %p67 = scmp.eq.s32.totalorder %s25, 1
      %p68 = por %p66, %p67
      %p69 = scmp.ne.s32.totalorder %s61, %s64
      %p70 = scmp.eq.s32.totalorder %s25, 0
      %p71 = por %p69, %p70
      %p72 = scmp.ne.s32.totalorder %s61, %s64
      %p73 = scmp.eq.s32.totalorder %s30, 1
      %p74 = por %p72, %p73
      %p75 = scmp.ne.s32.totalorder %s64, %s65
      %p76 = scmp.eq.s32.totalorder %s30, 0
      %p77 = por %p75, %p76
      %p78 = scmp.ne.s32.totalorder %s64, %s65
      %p79 = scmp.eq.s32.totalorder %s31, 1
      %p80 = por %p78, %p79
      %p82 = scmp.ne.s32.totalorder %s65, %s81
      %p83 = scmp.eq.s32.totalorder %s31, 0
      %p84 = por %p82, %p83
      %s85 = ssub.s32 %s25, %s32
      %p86 = scmp.eq.s32.totalorder %s85, 0
      %s88 = sadd.s32 %s87, 1
      %s89 = scalar_select %p86, %s87, %s88
      %p92 = pneg %p86
      %p93 = scmp.eq.s32.totalorder %s25, 1
      %p94 = por %p92, %p93
      %p95 = scmp.ne.s32.totalorder %s87, %s90
      %p96 = scmp.eq.s32.totalorder %s25, 0
      %p97 = por %p95, %p96
      %p98 = scmp.ne.s32.totalorder %s87, %s90
      %p99 = scmp.eq.s32.totalorder %s30, 1
      %p100 = por %p98, %p99
      %p101 = scmp.ne.s32.totalorder %s90, %s91
      %p102 = scmp.eq.s32.totalorder %s30, 0
      %p103 = por %p101, %p102
      %p104 = scmp.ne.s32.totalorder %s90, %s91
      %p105 = scmp.eq.s32.totalorder %s31, 1
      %p106 = por %p104, %p105
      %p108 = scmp.ne.s32.totalorder %s91, %s107
      %p109 = scmp.eq.s32.totalorder %s31, 0
      %p110 = por %p108, %p109
      %s111 = ssub.s32 %s25, %s32
      %p112 = scmp.eq.s32.totalorder %s111, 0
      %s114 = sadd.s32 %s113, 1
      %s115 = scalar_select %p112, %s113, %s114
      %p118 = pneg %p112
      %p119 = scmp.eq.s32.totalorder %s25, 1
      %p120 = por %p118, %p119
      %p121 = scmp.ne.s32.totalorder %s113, %s116
      %p122 = scmp.eq.s32.totalorder %s25, 0
      %p123 = por %p121, %p122
      %p124 = scmp.ne.s32.totalorder %s113, %s116
      %p125 = scmp.eq.s32.totalorder %s30, 1
      %p126 = por %p124, %p125
      %p127 = scmp.ne.s32.totalorder %s116, %s117
      %p128 = scmp.eq.s32.totalorder %s30, 0
      %p129 = por %p127, %p128
      %p130 = scmp.ne.s32.totalorder %s116, %s117
      %p131 = scmp.eq.s32.totalorder %s31, 1
      %p132 = por %p130, %p131
      %p134 = scmp.ne.s32.totalorder %s117, %s133
      %p135 = scmp.eq.s32.totalorder %s31, 0
      %p136 = por %p134, %p135
      %s138 = sadd.s32 %s137, 1
      %p141 = scmp.eq.s32.totalorder %s25, 1
      %p142 = scmp.ne.s32.totalorder %s137, %s139
      %p143 = scmp.eq.s32.totalorder %s25, 0
      %p144 = por %p142, %p143
      %p145 = scmp.ne.s32.totalorder %s137, %s139
      %p146 = scmp.eq.s32.totalorder %s30, 1
      %p147 = por %p145, %p146
      %p148 = scmp.ne.s32.totalorder %s139, %s140
      %p149 = scmp.eq.s32.totalorder %s30, 0
      %p150 = por %p148, %p149
      %p151 = scmp.ne.s32.totalorder %s139, %s140
      %p152 = scmp.eq.s32.totalorder %s31, 1
      %p153 = por %p151, %p152
      %p155 = scmp.ne.s32.totalorder %s140, %s154
      %p156 = scmp.eq.s32.totalorder %s31, 0
      %p157 = por %p155, %p156
      %s159 = sadd.s32 %s158, 1
      %p162 = scmp.eq.s32.totalorder %s25, 1
      %p163 = scmp.ne.s32.totalorder %s158, %s160
      %p164 = scmp.eq.s32.totalorder %s25, 0
      %p165 = por %p163, %p164
      %p166 = scmp.ne.s32.totalorder %s158, %s160
      %p167 = scmp.eq.s32.totalorder %s30, 1
      %p168 = por %p166, %p167
      %p169 = scmp.ne.s32.totalorder %s160, %s161
      %p170 = scmp.eq.s32.totalorder %s30, 0
      %p171 = por %p169, %p170
      %p172 = scmp.ne.s32.totalorder %s160, %s161
      %p173 = scmp.eq.s32.totalorder %s31, 1
      %p174 = por %p172, %p173
      %p176 = scmp.ne.s32.totalorder %s161, %s175
      %p177 = scmp.eq.s32.totalorder %s31, 0
      %p178 = por %p176, %p177
      %s180 = sadd.s32 %s179, 1
      %p183 = scmp.eq.s32.totalorder %s25, 1
      %p184 = scmp.ne.s32.totalorder %s179, %s181
      %p185 = scmp.eq.s32.totalorder %s25, 0
      %p186 = por %p184, %p185
      %p187 = scmp.ne.s32.totalorder %s179, %s181
      %p188 = scmp.eq.s32.totalorder %s30, 1
      %p189 = por %p187, %p188
      %p190 = scmp.ne.s32.totalorder %s181, %s182
      %p191 = scmp.eq.s32.totalorder %s30, 0
      %p192 = por %p190, %p191
      %p193 = scmp.ne.s32.totalorder %s181, %s182
      %p194 = scmp.eq.s32.totalorder %s31, 1
      %p195 = por %p193, %p194
      %p197 = scmp.ne.s32.totalorder %s182, %s196
      %p198 = scmp.eq.s32.totalorder %s31, 0
      %p199 = por %p197, %p198
      %s201 = sadd.s32 %s200, 1
      %p204 = scmp.eq.s32.totalorder %s25, 1
      %p205 = scmp.ne.s32.totalorder %s200, %s202
      %p206 = scmp.eq.s32.totalorder %s25, 0
      %p207 = por %p205, %p206
      %p208 = scmp.ne.s32.totalorder %s200, %s202
      %p209 = scmp.eq.s32.totalorder %s30, 1
      %p210 = por %p208, %p209
      %p211 = scmp.ne.s32.totalorder %s202, %s203
      %p212 = scmp.eq.s32.totalorder %s30, 0
      %p213 = por %p211, %p212
      %p214 = scmp.ne.s32.totalorder %s202, %s203
      %p215 = scmp.eq.s32.totalorder %s31, 1
      %p216 = por %p214, %p215
      %p218 = scmp.ne.s32.totalorder %s203, %s217
      %p219 = scmp.eq.s32.totalorder %s31, 0
      %p220 = por %p218, %p219
      %s222 = sadd.s32 %s221, 1
      %p225 = scmp.eq.s32.totalorder %s25, 1
      %p226 = scmp.ne.s32.totalorder %s221, %s223
      %p227 = scmp.eq.s32.totalorder %s25, 0
      %p228 = por %p226, %p227
      %p229 = scmp.ne.s32.totalorder %s221, %s223
      %p230 = scmp.eq.s32.totalorder %s30, 1
      %p231 = por %p229, %p230
      %p232 = scmp.ne.s32.totalorder %s223, %s224
      %p233 = scmp.eq.s32.totalorder %s30, 0
      %p234 = por %p232, %p233
      %p235 = scmp.ne.s32.totalorder %s223, %s224
      %p236 = scmp.eq.s32.totalorder %s31, 1
      %p237 = por %p235, %p236
      %p239 = scmp.ne.s32.totalorder %s224, %s238
      %p240 = scmp.eq.s32.totalorder %s31, 0
      %p241 = por %p239, %p240
      %s243 = sadd.s32 %s242, 1
      %p246 = scmp.eq.s32.totalorder %s25, 1
      %p247 = scmp.ne.s32.totalorder %s242, %s244
      %p248 = scmp.eq.s32.totalorder %s25, 0
      %p249 = por %p247, %p248
      %p250 = scmp.ne.s32.totalorder %s242, %s244
      %p251 = scmp.eq.s32.totalorder %s30, 1
      %p252 = por %p250, %p251
      %p253 = scmp.ne.s32.totalorder %s244, %s245
      %p254 = scmp.eq.s32.totalorder %s30, 0
      %p255 = por %p253, %p254
      %p256 = scmp.ne.s32.totalorder %s244, %s245
      %p257 = scmp.eq.s32.totalorder %s31, 1
      %p258 = por %p256, %p257
      %p260 = scmp.ne.s32.totalorder %s245, %s259
      %p261 = scmp.eq.s32.totalorder %s31, 0
      %p262 = por %p260, %p261
      %s264 = sadd.s32 %s263, 1
      %p267 = scmp.eq.s32.totalorder %s25, 1
      %p268 = scmp.ne.s32.totalorder %s263, %s265
      %p269 = scmp.eq.s32.totalorder %s25, 0
      %p270 = por %p268, %p269
      %p271 = scmp.ne.s32.totalorder %s263, %s265
      %p272 = scmp.eq.s32.totalorder %s30, 1
      %p273 = por %p271, %p272
      %p274 = scmp.ne.s32.totalorder %s265, %s266
      %p275 = scmp.eq.s32.totalorder %s30, 0
      %p276 = por %p274, %p275
      %p277 = scmp.ne.s32.totalorder %s265, %s266
      %p278 = scmp.eq.s32.totalorder %s31, 1
      %p279 = por %p277, %p278
      %p281 = scmp.ne.s32.totalorder %s266, %s280
      %p282 = scmp.eq.s32.totalorder %s31, 0
      %p283 = por %p281, %p282
      %s284 = ssub.s32 %s25, %s32
      %p285 = scmp.eq.s32.totalorder %s284, 0
      %s287 = sadd.s32 %s286, 1
      %s288 = scalar_select %p285, %s286, %s287
      %p291 = pneg %p285
      %p292 = scmp.eq.s32.totalorder %s25, 1
      %p293 = por %p291, %p292
      %p294 = scmp.ne.s32.totalorder %s286, %s289
      %p295 = scmp.eq.s32.totalorder %s25, 0
      %p296 = por %p294, %p295
      %p297 = scmp.ne.s32.totalorder %s286, %s289
      %p298 = scmp.eq.s32.totalorder %s30, 1
      %p299 = por %p297, %p298
      %p300 = scmp.ne.s32.totalorder %s289, %s290
      %p301 = scmp.eq.s32.totalorder %s30, 0
      %p302 = por %p300, %p301
      %p303 = scmp.ne.s32.totalorder %s289, %s290
      %p304 = scmp.eq.s32.totalorder %s31, 1
      %p305 = por %p303, %p304
      %p307 = scmp.ne.s32.totalorder %s290, %s306
      %p308 = scmp.eq.s32.totalorder %s31, 0
      %p309 = por %p307, %p308
      %s310 = ssub.s32 %s25, %s32
      %p311 = scmp.eq.s32.totalorder %s310, 0
      %s313 = sadd.s32 %s312, 1
      %s314 = scalar_select %p311, %s312, %s313
      %p317 = pneg %p311
      %p318 = scmp.eq.s32.totalorder %s25, 1
      %p319 = por %p317, %p318
      %p320 = scmp.ne.s32.totalorder %s312, %s315
      %p321 = scmp.eq.s32.totalorder %s25, 0
      %p322 = por %p320, %p321
      %p323 = scmp.ne.s32.totalorder %s312, %s315
      %p324 = scmp.eq.s32.totalorder %s30, 1
      %p325 = por %p323, %p324
      %p326 = scmp.ne.s32.totalorder %s315, %s316
      %p327 = scmp.eq.s32.totalorder %s30, 0
      %p328 = por %p326, %p327
      %p329 = scmp.ne.s32.totalorder %s315, %s316
      %p330 = scmp.eq.s32.totalorder %s31, 1
      %p331 = por %p329, %p330
      %p333 = scmp.ne.s32.totalorder %s316, %s332
      %p334 = scmp.eq.s32.totalorder %s31, 0
      %p335 = por %p333, %p334
      %p336 = scmp.le.s32.totalorder 1, %s25
      %p337 = scmp.lt.s32.totalorder %s25, 3
      %p338 = pnand %p336, %p337
      %p339 = pneg %p338
      // Predicated region
      $region9: #{tpu_custom_call.1} parent=5 // pred_check
        _
      $region10: #{tpu_custom_call.1} parent=5 // pred_check_branch
        %341 = sbr.rel (%p338) target = $region12
      $region11: #{tpu_custom_call.1} parent=5 // pred_region
        %s342 = ssub.s32 %s25, 1
        // Predicated region
        $region13: #{tpu_custom_call.1} parent=11 // pred_check
          %p343 = pneg %p150
        $region14: #{tpu_custom_call.1} parent=11 // pred_check_branch
          %345 = sbr.rel (%p343) target = $region16
        $region15: #{tpu_custom_call.1} parent=11 // pred_region
          _
        $region16: #{tpu_custom_call.1} parent=11 // pred_fallthru
          _
        // Predicated region
        $region17: #{tpu_custom_call.1} parent=11 // pred_check
          %p346 = pneg %p171
        $region18: #{tpu_custom_call.1} parent=11 // pred_check_branch
          %348 = sbr.rel (%p346) target = $region20
        $region19: #{tpu_custom_call.1} parent=11 // pred_region
          _
        $region20: #{tpu_custom_call.1} parent=11 // pred_fallthru
          _
        // Predicated region
        $region21: #{tpu_custom_call.1} parent=11 // pred_check
          %p349 = pneg %p192
        $region22: #{tpu_custom_call.1} parent=11 // pred_check_branch
          %351 = sbr.rel (%p349) target = $region24
        $region23: #{tpu_custom_call.1} parent=11 // pred_region
          _
        $region24: #{tpu_custom_call.1} parent=11 // pred_fallthru
          _
        // Predicated region
        $region25: #{tpu_custom_call.1} parent=11 // pred_check
          %p352 = pneg %p213
        $region26: #{tpu_custom_call.1} parent=11 // pred_check_branch
          %354 = sbr.rel (%p352) target = $region28
        $region27: #{tpu_custom_call.1} parent=11 // pred_region
          _
        $region28: #{tpu_custom_call.1} parent=11 // pred_fallthru
          _
        // Predicated region
        $region29: #{tpu_custom_call.1} parent=11 // pred_check
          %p355 = pneg %p234
        $region30: #{tpu_custom_call.1} parent=11 // pred_check_branch
          %357 = sbr.rel (%p355) target = $region32
        $region31: #{tpu_custom_call.1} parent=11 // pred_region
          _
        $region32: #{tpu_custom_call.1} parent=11 // pred_fallthru
          _
        // Predicated region
        $region33: #{tpu_custom_call.1} parent=11 // pred_check
          %p358 = pneg %p255
        $region34: #{tpu_custom_call.1} parent=11 // pred_check_branch
          %360 = sbr.rel (%p358) target = $region36
        $region35: #{tpu_custom_call.1} parent=11 // pred_region
          _
        $region36: #{tpu_custom_call.1} parent=11 // pred_fallthru
          _
        // Predicated region
        $region37: #{tpu_custom_call.1} parent=11 // pred_check
          %p361 = pneg %p276
        $region38: #{tpu_custom_call.1} parent=11 // pred_check_branch
          %363 = sbr.rel (%p361) target = $region40
        $region39: #{tpu_custom_call.1} parent=11 // pred_region
          _
        $region40: #{tpu_custom_call.1} parent=11 // pred_fallthru
          _
      $region12: #{tpu_custom_call.1} parent=5 // pred_fallthru
        _
      %p364 = scmp.lt.s32.totalorder %s25, 2
      // Predicated region
      $region41: #{tpu_custom_call.1} parent=5 // pred_check
        %p365 = pneg %p364
      $region42: #{tpu_custom_call.1} parent=5 // pred_check_branch
        %367 = sbr.rel (%p365) target = $region44
      $region43: #{tpu_custom_call.1} parent=5 // pred_region
        // Predicated region
        $region45: #{tpu_custom_call.1} parent=43 // pred_check
          %p368 = pneg %p45
        $region46: #{tpu_custom_call.1} parent=43 // pred_check_branch
          %370 = sbr.rel (%p368) target = $region48
        $region47: #{tpu_custom_call.1} parent=43 // pred_region
          %s371 = sand.u32 %s35, 1
          %s372 = sand.u32 %s35, 1
          %s373 = smul.addr %s372, 32
          %s374 = scalar_lea.vmem [#allocation2], %s373
          %s375 = smul.u32 2, %s25
          %s376 = smul.addr %s375, 4
          %s377 = scalar_lea.vmem %s0, %s376
          // Predicated region
          $region49: #{tpu_custom_call.1} parent=47 // pred_check
            _
          $region50: #{tpu_custom_call.1} parent=47 // pred_check_branch
            %379 = sbr.rel (0) target = $region52
          $region51: #{tpu_custom_call.1} parent=47 // pred_region
            // Predicated region
            $region53: #{tpu_custom_call.1} parent=51 // pred_check
              _
            $region54: #{tpu_custom_call.1} parent=51 // pred_check_branch
              %381 = sbr.rel target = $region56
            $region55: #{tpu_custom_call.1} parent=51 // pred_region
              // Predicated region
              $region68: #{tpu_custom_call.1} parent=55 // pred_check
                _
              $region69: #{tpu_custom_call.1} parent=55 // pred_check_branch
                %410 = sbr.rel (0) target = $region71
              $region70: #{tpu_custom_call.1} parent=55 // pred_region
                loop: start=0, step=1, limit=1
                $region72: #{tpu_custom_call.1} parent=70 // loop_pre_header
                  _
                $region73: #{tpu_custom_call.1} parent=70 // loop_header
                  %s412 = sphi 0, %s416
                  %p413 = scmp.ge.s32.totalorder %s412, 1
                  %s417 = sphi %s377, %s377
                  %s418 = sphi %s374, %s374
                $region74: #{tpu_custom_call.1} parent=70 // loop_header_branch
                  %415 = sbr.rel (%p413) target = $region78
                $region75: #{tpu_custom_call.1} parent=70 // loop_body
                  _
                $region76: #{tpu_custom_call.1} parent=70 // loop_footer
                  %s416 = sadd.s32 1, %s412
                $region77: #{tpu_custom_call.1} parent=70 // loop_footer_branch
                  %411 = sbr.rel target = $region73
                $region78: #{tpu_custom_call.1} parent=70 // loop_exit
                  _
                loop: start=0, step=1, limit=1
                $region79: #{tpu_custom_call.1} parent=70 // loop_pre_header
                  _
                $region80: #{tpu_custom_call.1} parent=70 // loop_header
                  %s421 = sphi 0, %s425
                  %p422 = scmp.ge.s32.totalorder %s421, 1
                  %s426 = sphi %s377, %s377
                  %s427 = sphi %s374, %s374
                $region81: #{tpu_custom_call.1} parent=70 // loop_header_branch
                  %424 = sbr.rel (%p422) target = $region85
                $region82: #{tpu_custom_call.1} parent=70 // loop_body
                  %v428 = vld [vmem:[%s426] sm:$0xf]
                  %429 = vst [vmem:[%s427] sm:$0xf] %v428
                  %v430 = vld [vmem:[%s426 + $0x4] sm:$0xf]
                  %431 = vst [vmem:[%s427 + $0x4] sm:$0xf] %v430
                  %v432 = vld [vmem:[%s426 + $0x10] sm:$0xf]
                  %433 = vst [vmem:[%s427 + $0x8] sm:$0xf] %v432
                  %v434 = vld [vmem:[%s426 + $0x14] sm:$0xf]
                  %435 = vst [vmem:[%s427 + $0xc] sm:$0xf] %v434
                  %v436 = vld [vmem:[%s426 + $0x20] sm:$0xf]
                  %437 = vst [vmem:[%s427 + $0x10] sm:$0xf] %v436
                  %v438 = vld [vmem:[%s426 + $0x24] sm:$0xf]
                  %439 = vst [vmem:[%s427 + $0x14] sm:$0xf] %v438
                  %v440 = vld [vmem:[%s426 + $0x30] sm:$0xf]
                  %441 = vst [vmem:[%s427 + $0x18] sm:$0xf] %v440
                  %v442 = vld [vmem:[%s426 + $0x34] sm:$0xf]
                  %443 = vst [vmem:[%s427 + $0x1c] sm:$0xf] %v442
                $region83: #{tpu_custom_call.1} parent=70 // loop_footer
                  %s425 = sadd.s32 1, %s421
                $region84: #{tpu_custom_call.1} parent=70 // loop_footer_branch
                  %420 = sbr.rel target = $region80
                $region85: #{tpu_custom_call.1} parent=70 // loop_exit
                  _
              $region71: #{tpu_custom_call.1} parent=55 // pred_fallthru
                _
            $region56: #{tpu_custom_call.1} parent=51 // pred_fallthru
              _
            // Predicated region
            $region57: #{tpu_custom_call.1} parent=51 // pred_check
              _
            $region58: #{tpu_custom_call.1} parent=51 // pred_check_branch
              %383 = sbr.rel (0) target = $region60
            $region59: #{tpu_custom_call.1} parent=51 // pred_region
              loop: start=0, step=1, limit=1
              $region61: #{tpu_custom_call.1} parent=59 // loop_pre_header
                _
              $region62: #{tpu_custom_call.1} parent=59 // loop_header
                %s386 = sphi 0, %s390
                %p387 = scmp.ge.s32.totalorder %s386, 1
                %s391 = sphi %s377, %s377
                %s392 = sphi %s374, %s374
              $region63: #{tpu_custom_call.1} parent=59 // loop_header_branch
                %389 = sbr.rel (%p387) target = $region67
              $region64: #{tpu_custom_call.1} parent=59 // loop_body
                %v393 = vld [vmem:[%s391] sm:$0xf]
                %394 = vst [vmem:[%s392] sm:$0xf] %v393
                %v395 = vld [vmem:[%s391 + $0x4] sm:$0xf]
                %396 = vst [vmem:[%s392 + $0x4] sm:$0xf] %v395
                %v397 = vld [vmem:[%s391 + $0x10] sm:$0xf]
                %398 = vst [vmem:[%s392 + $0x8] sm:$0xf] %v397
                %v399 = vld [vmem:[%s391 + $0x14] sm:$0xf]
                %400 = vst [vmem:[%s392 + $0xc] sm:$0xf] %v399
                %v401 = vld [vmem:[%s391 + $0x20] sm:$0xf]
                %402 = vst [vmem:[%s392 + $0x10] sm:$0xf] %v401
                %v403 = vld [vmem:[%s391 + $0x24] sm:$0xf]
                %404 = vst [vmem:[%s392 + $0x14] sm:$0xf] %v403
                %v405 = vld [vmem:[%s391 + $0x30] sm:$0xf]
                %406 = vst [vmem:[%s392 + $0x18] sm:$0xf] %v405
                %v407 = vld [vmem:[%s391 + $0x34] sm:$0xf]
                %408 = vst [vmem:[%s392 + $0x1c] sm:$0xf] %v407
              $region65: #{tpu_custom_call.1} parent=59 // loop_footer
                %s390 = sadd.s32 1, %s386
              $region66: #{tpu_custom_call.1} parent=59 // loop_footer_branch
                %385 = sbr.rel target = $region62
              $region67: #{tpu_custom_call.1} parent=59 // loop_exit
                _
            $region60: #{tpu_custom_call.1} parent=51 // pred_fallthru
              _
          $region52: #{tpu_custom_call.1} parent=47 // pred_fallthru
            _
          %444 = vnop
        $region48: #{tpu_custom_call.1} parent=43 // pred_fallthru
          _
        // Predicated region
        $region86: #{tpu_custom_call.1} parent=43 // pred_check
          %p445 = pneg %p71
        $region87: #{tpu_custom_call.1} parent=43 // pred_check_branch
          %447 = sbr.rel (%p445) target = $region89
        $region88: #{tpu_custom_call.1} parent=43 // pred_region
          %s448 = smul.u32 2, %s25
          %p449 = scmp.lt.s32.totalorder %s448, 3
          %s450 = scalar_select %p449, %s448, 3
          %s451 = smul.addr %s450, 8
          %s452 = scalar_lea.vmem %s1, %s451
          %s453 = smul.u32 2, %s25
        $region89: #{tpu_custom_call.1} parent=43 // pred_fallthru
          _
        // Predicated region
        $region90: #{tpu_custom_call.1} parent=43 // pred_check
          %p454 = pneg %p97
        $region91: #{tpu_custom_call.1} parent=43 // pred_check_branch
          %456 = sbr.rel (%p454) target = $region93
        $region92: #{tpu_custom_call.1} parent=43 // pred_region
          %s457 = smul.u32 2, %s25
          %p458 = scmp.lt.s32.totalorder %s457, 3
          %s459 = scalar_select %p458, %s457, 3
          %s460 = smul.addr %s459, 4
          %s461 = scalar_lea.vmem %s2, %s460
          %s462 = smul.u32 2, %s25
        $region93: #{tpu_custom_call.1} parent=43 // pred_fallthru
          _
        // Predicated region
        $region94: #{tpu_custom_call.1} parent=43 // pred_check
          %p463 = pneg %p123
        $region95: #{tpu_custom_call.1} parent=43 // pred_check_branch
          %465 = sbr.rel (%p463) target = $region97
        $region96: #{tpu_custom_call.1} parent=43 // pred_region
          %s466 = smul.u32 2, %s25
          %p467 = scmp.lt.s32.totalorder %s466, 3
          %s468 = scalar_select %p467, %s466, 3
          %s469 = smul.addr %s468, 8
          %s470 = scalar_lea.vmem %s3, %s469
          %s471 = smul.u32 2, %s25
        $region97: #{tpu_custom_call.1} parent=43 // pred_fallthru
          _
      $region44: #{tpu_custom_call.1} parent=5 // pred_fallthru
        _
      %p472 = scmp.le.s32.totalorder 1, %s25
      %p473 = scmp.lt.s32.totalorder %s25, 3
      %p474 = pnand %p472, %p473
      %p475 = pneg %p474
      // Predicated region
      $region98: #{tpu_custom_call.1} parent=5 // pred_check
        _
      $region99: #{tpu_custom_call.1} parent=5 // pred_check_branch
        %477 = sbr.rel (%p474) target = $region101
      $region100: #{tpu_custom_call.1} parent=5 // pred_region
        %s478 = ssub.s32 %s25, 1
        %s479 = sand.u32 %s38, 1
        %s480 = sand.u32 %s38, 1
        %s481 = smul.addr %s480, 32
        %s482 = scalar_lea.vmem [#allocation2], %s481
        // Predicated region
        $region102: #{tpu_custom_call.1} parent=100 // pred_check
          %p483 = pneg %p51
        $region103: #{tpu_custom_call.1} parent=100 // pred_check_branch
          %485 = sbr.rel (%p483) target = $region105
        $region104: #{tpu_custom_call.1} parent=100 // pred_region
          _
        $region105: #{tpu_custom_call.1} parent=100 // pred_fallthru
          _
        %s486 = sand.u32 %s38, 1
        %s487 = sand.u32 %s38, 1
        %s488 = smul.addr %s487, 32
        %s489 = scalar_lea.vmem [#allocation2], %s488
        %p490 = pneg %p51
        %p491 = pneg %p48
        %s492 = smul.u32 2, %s30
        %p493 = scmp.lt.s32.totalorder %s492, 3
        %s494 = scalar_select %p493, %s492, 3
        %s495 = smul.addr %s494, 8
        %s496 = scalar_lea.vmem %s1, %s495
        %p497 = pneg %p77
        %p498 = pneg %p74
        %s499 = smul.u32 2, %s30
        %p500 = scmp.lt.s32.totalorder %s499, 3
        %s501 = scalar_select %p500, %s499, 3
        %s502 = smul.addr %s501, 4
        %s503 = scalar_lea.vmem %s2, %s502
        %p504 = pneg %p103
        %p505 = pneg %p100
        %s506 = smul.u32 2, %s30
        %p507 = scmp.lt.s32.totalorder %s506, 3
        %s508 = scalar_select %p507, %s506, 3
        %s509 = smul.addr %s508, 8
        %s510 = scalar_lea.vmem %s3, %s509
        %p511 = pneg %p129
        %p512 = pneg %p126
        %p513 = pneg %p150
        %p514 = pneg %p147
        %p515 = pneg %p171
        %p516 = pneg %p168
        %p517 = pneg %p192
        %p518 = pneg %p189
        %p519 = pneg %p213
        %p520 = pneg %p210
        %p521 = pneg %p234
        %p522 = pneg %p231
        %p523 = pneg %p255
        %p524 = pneg %p252
        %p525 = pneg %p276
        %p526 = pneg %p273
        %p527 = pneg %p302
        %p528 = pneg %p299
        %s529 = sand.u32 %s289, 1
        %s530 = scalar_lea.sflag [#allocation4], %s529
        %s531 = sand.u32 %s289, 1
        %s532 = smul.addr %s531, 8
        %s533 = scalar_lea.vmem [#allocation3], %s532
        %p534 = pneg %p328
        %p535 = pneg %p325
        %s536 = sand.u32 %s315, 1
        %s537 = scalar_lea.sflag [#allocation6], %s536
        %s538 = sand.u32 %s315, 1
        %s539 = smul.addr %s538, 8
        %s540 = scalar_lea.vmem [#allocation5], %s539
        %s541 = smul.u32 2, %s30
        %s542 = smul.u32 2, %s30
        %p543 = scmp.lt.s32.totalorder %s542, 3
        %s544 = scalar_select %p543, %s542, 3
        %s545 = smul.addr %s544, 8
        %s546 = scalar_lea.vmem %s1, %s545
        %s547 = smul.u32 2, %s30
        %s548 = smul.u32 2, %s30
        %p549 = scmp.lt.s32.totalorder %s548, 3
        %s550 = scalar_select %p549, %s548, 3
        %s551 = smul.addr %s550, 4
        %s552 = scalar_lea.vmem %s2, %s551
        %s553 = smul.u32 2, %s30
        %s554 = smul.u32 2, %s30
        %p555 = scmp.lt.s32.totalorder %s554, 3
        %s556 = scalar_select %p555, %s554, 3
        %s557 = smul.addr %s556, 8
        %s558 = scalar_lea.vmem %s3, %s557
        %s559 = smul.u32 2, %s30
        %s560 = smul.u32 2, %s30
        %v562 = vld [vmem:[%s10] sm:$0x1]
        %v563 = vld [vmem:[%s10 + $0x1] sm:$0x1]
        %v564 = vld [vmem:[%s10 + $0x2] sm:$0x1]
        %v565 = vld [vmem:[%s10 + $0x3] sm:$0x1]
        %v566 = vld [vmem:[%s10 + $0x4] sm:$0x1]
        %v567 = vld [vmem:[%s10 + $0x5] sm:$0x1]
        %v568 = vld [vmem:[%s10 + $0x6] sm:$0x1]
        %v569 = vld [vmem:[%s10 + $0x7] sm:$0x1]
        %v570 = vld [vmem:[%s10 + $0x8] sm:$0x1]
        %v571 = vld [vmem:[%s10 + $0x9] sm:$0x1]
        %v572 = vld [vmem:[%s10 + $0xa] sm:$0x1]
        %v573 = vld [vmem:[%s10 + $0xb] sm:$0x1]
        %v574 = vld [vmem:[%s482] sm:$0xf]
        %v575 = vld [vmem:[%s482 + $0x4] sm:$0xf]
        %v576 = vld [vmem:[%s482 + $0x8] sm:$0xf]
        %v577 = vld [vmem:[%s482 + $0xc] sm:$0xf]
        %v578 = vld [vmem:[%s482 + $0x10] sm:$0xf]
        %v579 = vld [vmem:[%s482 + $0x14] sm:$0xf]
        %v580 = vld [vmem:[%s482 + $0x18] sm:$0xf]
        %v581 = vld [vmem:[%s482 + $0x1c] sm:$0xf]
        %v582 = vld [vmem:[%s4] sm:$0xf]
        %v583 = vld [vmem:[%s4 + $0x4] sm:$0xf]
        %v584 = vld [vmem:[%s4 + $0x8] sm:$0xf]
        %v585 = vld [vmem:[%s4 + $0xc] sm:$0xf]
        %v586 = vlaneseq
        %v587 = vshrl.u32 %v586, 7
        %v588 = vsub.s32 0, %v587
        %v589 = vrot.slane %v562, %v588
        %v598 = vunpack.c.l.b16 %v574
        %v599 = vunpack.c.l.b16 %v575
        %v600 = vunpack.c.l.b16 %v576
        %v601 = vunpack.c.l.b16 %v577
        %v602 = vunpack.c.l.b16 %v578
        %v603 = vunpack.c.l.b16 %v579
        %v604 = vunpack.c.l.b16 %v580
        %v605 = vunpack.c.l.b16 %v581
        %v606 = vpack.c.b16 %v599, %v598
        %v607 = vpack.c.b16 %v601, %v600
        %v608 = vpack.c.b16 %v603, %v602
        %v609 = vpack.c.b16 %v605, %v604
        %v614 = vunpack.c.l.b16 %v582
        %v615 = vunpack.c.l.b16 %v583
        %v616 = vunpack.c.l.b16 %v584
        %v617 = vunpack.c.l.b16 %v585
        %v618 = vpack.c.b16 %v615, %v614
        %v619 = vpack.c.b16 %v617, %v616
        %vm622 = vcmask 261120
        %v624 = vsel %vm622, %v606, 0
        %v627 = vsel %vm622, %v607, 0
        %v630 = vsel %vm622, %v608, 0
        %v633 = vsel %vm622, %v609, 0
        %635 = vmatprep.subr.bf16.mxu0 0
        %636 = vmatpush1.bf16.msra.mxu0 %v618
        %637 = vmatprep.subr.bf16.mxu0 0
        %638 = vmatpush1.bf16.msra.mxu0 %v619
        %639 = vmatprep.subr.bf16.mxu0 0
        %640 = vmatpush1.bf16.msra.mxu0 0
        %641 = vmatprep.subr.bf16.mxu0 0
        %642 = vmatpush1.bf16.msra.mxu0 0
        %643 = vmatprep.subr.bf16.mxu0 0
        %644 = vmatpush1.bf16.msra.mxu0 0
        %645 = vmatprep.subr.bf16.mxu0 0
        %646 = vmatpush1.bf16.msra.mxu0 0
        %647 = vmatprep.subr.bf16.mxu0 0
        %648 = vmatpush1.bf16.msra.mxu0 0
        %649 = vmatprep.subr.bf16.mxu0 0
        %650 = vmatpush1.bf16.msra.mxu0 0
        %651 = vmatprep.subr.bf16.mxu0 0
        %652 = vmatpush1.bf16.msra.mxu0 0
        %653 = vmatprep.subr.bf16.mxu0 0
        %654 = vmatpush1.bf16.msra.mxu0 0
        %655 = vmatprep.subr.bf16.mxu0 0
        %656 = vmatpush1.bf16.msra.mxu0 0
        %657 = vmatprep.subr.bf16.mxu0 0
        %658 = vmatpush1.bf16.msra.mxu0 0
        %659 = vmatprep.subr.bf16.mxu0 0
        %660 = vmatpush1.bf16.msra.mxu0 0
        %661 = vmatprep.subr.bf16.mxu0 0
        %662 = vmatpush1.bf16.msra.mxu0 0
        %663 = vmatprep.subr.bf16.mxu0 0
        %664 = vmatpush1.bf16.msra.mxu0 0
        %665 = vmatprep.subr.bf16.mxu0 0
        %666 = vmatpush1.bf16.msra.mxu0 0
        %667 = vmatprep.mubr.bf16.mxu0 0
        %668 = vmatmul.mubr.bf16.gmra.mrb[0].mxu0 %v624
        %v669 = vpop.f32.mrb[0].mxu0
        %v670 = vadd.f32 %v589, %v669
        %v671 = vpop.f32.mrb[0].mxu0
        %v672 = vpop.f32.mrb[0].mxu0
        %v673 = vadd.f32 %v589, %v672
        %v674 = vpop.f32.mrb[0].mxu0
        %675 = vmatprep.mubr.bf16.mxu0 0
        %676 = vmatmul.mubr.bf16.gmra.mrb[0].mxu0 %v627
        %v677 = vpop.f32.mrb[0].mxu0
        %v678 = vadd.f32 %v589, %v677
        %v679 = vpop.f32.mrb[0].mxu0
        %v680 = vpop.f32.mrb[0].mxu0
        %v681 = vadd.f32 %v589, %v680
        %v682 = vpop.f32.mrb[0].mxu0
        %683 = vmatprep.mubr.bf16.mxu0 0
        %684 = vmatmul.mubr.bf16.gmra.mrb[0].mxu0 %v630
        %v685 = vpop.f32.mrb[0].mxu0
        %v686 = vadd.f32 %v589, %v685
        %v687 = vpop.f32.mrb[0].mxu0
        %v688 = vpop.f32.mrb[0].mxu0
        %v689 = vadd.f32 %v589, %v688
        %v690 = vpop.f32.mrb[0].mxu0
        %691 = vmatprep.mubr.bf16.mxu0 0
        %692 = vmatmul.mubr.bf16.gmra.mrb[0].mxu0 %v633
        %v693 = vpop.f32.mrb[0].mxu0
        %v694 = vadd.f32 %v589, %v693
        %v695 = vpop.f32.mrb[0].mxu0
        %v696 = vpop.f32.mrb[0].mxu0
        %v697 = vadd.f32 %v589, %v696
        %v698 = vpop.f32.mrb[0].mxu0
        %699 = vdwg.mxu0
        %v700 = vsel %vm622, %v670, 0.0
        %701 = vadd.xlane.f32.xlu0 %v700
        %v702 = vpop.xlane.xlu0 %701
        %v703 = vsel %vm622, %v673, 0.0
        %704 = vadd.xlane.f32.xlu0 %v703
        %v705 = vpop.xlane.xlu0 %704
        %v706 = vsel %vm622, %v678, 0.0
        %707 = vadd.xlane.f32.xlu0 %v706
        %v708 = vpop.xlane.xlu0 %707
        %v709 = vsel %vm622, %v681, 0.0
        %710 = vadd.xlane.f32.xlu0 %v709
        %v711 = vpop.xlane.xlu0 %710
        %v712 = vsel %vm622, %v686, 0.0
        %713 = vadd.xlane.f32.xlu0 %v712
        %v714 = vpop.xlane.xlu0 %713
        %v715 = vsel %vm622, %v689, 0.0
        %716 = vadd.xlane.f32.xlu0 %v715
        %v717 = vpop.xlane.xlu0 %716
        %v718 = vsel %vm622, %v694, 0.0
        %719 = vadd.xlane.f32.xlu0 %v718
        %v720 = vpop.xlane.xlu0 %719
        %v721 = vsel %vm622, %v697, 0.0
        %722 = vadd.xlane.f32.xlu0 %v721
        %v723 = vpop.xlane.xlu0 %722
        %v724 = vrcp.pop 32.0
        %v725 = vmul.f32 %v702, %v724
        %v726 = vmul.f32 %v705, %v724
        %v727 = vmul.f32 %v708, %v724
        %v728 = vmul.f32 %v711, %v724
        %v729 = vmul.f32 %v714, %v724
        %v730 = vmul.f32 %v717, %v724
        %v731 = vmul.f32 %v720, %v724
        %v732 = vmul.f32 %v723, %v724
        %v733 = vsub.f32 %v670, %v725
        %v734 = vsub.f32 %v673, %v726
        %v735 = vsub.f32 %v678, %v727
        %v736 = vsub.f32 %v681, %v728
        %v737 = vsub.f32 %v686, %v729
        %v738 = vsub.f32 %v689, %v730
        %v739 = vsub.f32 %v694, %v731
        %v740 = vsub.f32 %v697, %v732
        %v741 = vmul.f32 %v733, %v733
        %v742 = vmul.f32 %v734, %v734
        %v743 = vmul.f32 %v735, %v735
        %v744 = vmul.f32 %v736, %v736
        %v745 = vmul.f32 %v737, %v737
        %v746 = vmul.f32 %v738, %v738
        %v747 = vmul.f32 %v739, %v739
        %v748 = vmul.f32 %v740, %v740
        %v749 = vsel %vm622, %v741, 0.0
        %750 = vadd.xlane.f32.xlu0 %v749
        %v751 = vpop.xlane.xlu0 %750
        %v752 = vsel %vm622, %v742, 0.0
        %753 = vadd.xlane.f32.xlu0 %v752
        %v754 = vpop.xlane.xlu0 %753
        %v755 = vsel %vm622, %v743, 0.0
        %756 = vadd.xlane.f32.xlu0 %v755
        %v757 = vpop.xlane.xlu0 %756
        %v758 = vsel %vm622, %v744, 0.0
        %759 = vadd.xlane.f32.xlu0 %v758
        %v760 = vpop.xlane.xlu0 %759
        %v761 = vsel %vm622, %v745, 0.0
        %762 = vadd.xlane.f32.xlu0 %v761
        %v763 = vpop.xlane.xlu0 %762
        %v764 = vsel %vm622, %v746, 0.0
        %765 = vadd.xlane.f32.xlu0 %v764
        %v766 = vpop.xlane.xlu0 %765
        %v767 = vsel %vm622, %v747, 0.0
        %768 = vadd.xlane.f32.xlu0 %v767
        %v769 = vpop.xlane.xlu0 %768
        %v770 = vsel %vm622, %v748, 0.0
        %771 = vadd.xlane.f32.xlu0 %v770
        %v772 = vpop.xlane.xlu0 %771
        %v773 = vmul.f32 %v751, %v724
        %v774 = vmul.f32 %v754, %v724
        %v775 = vmul.f32 %v757, %v724
        %v776 = vmul.f32 %v760, %v724
        %v777 = vmul.f32 %v763, %v724
        %v778 = vmul.f32 %v766, %v724
        %v779 = vmul.f32 %v769, %v724
        %v780 = vmul.f32 %v772, %v724
        %v781 = vadd.f32 %v773, 1e-05
        %v782 = vadd.f32 %v774, 1e-05
        %v783 = vadd.f32 %v775, 1e-05
        %v784 = vadd.f32 %v776, 1e-05
        %v785 = vadd.f32 %v777, 1e-05
        %v786 = vadd.f32 %v778, 1e-05
        %v787 = vadd.f32 %v779, 1e-05
        %v788 = vadd.f32 %v780, 1e-05
        %v789 = vrsqrt.pop %v781
        %v790 = vrsqrt.pop %v782
        %v791 = vrsqrt.pop %v783
        %v792 = vrsqrt.pop %v784
        %v793 = vrsqrt.pop %v785
        %v794 = vrsqrt.pop %v786
        %v795 = vrsqrt.pop %v787
        %v796 = vrsqrt.pop %v788
        %v797 = vmul.f32 %v733, %v789
        %v798 = vmul.f32 %v734, %v790
        %v799 = vmul.f32 %v735, %v791
        %v800 = vmul.f32 %v736, %v792
        %v801 = vmul.f32 %v737, %v793
        %v802 = vmul.f32 %v738, %v794
        %v803 = vmul.f32 %v739, %v795
        %v804 = vmul.f32 %v740, %v796
        %v805 = vlaneseq
        %v806 = vshrl.u32 %v805, 7
        %v807 = vsub.s32 0, %v806
        %v808 = vrot.slane %v563, %v807
        %v809 = vmul.f32 %v797, %v808
        %v810 = vmul.f32 %v798, %v808
        %v811 = vmul.f32 %v799, %v808
        %v812 = vmul.f32 %v800, %v808
        %v813 = vmul.f32 %v801, %v808
        %v814 = vmul.f32 %v802, %v808
        %v815 = vmul.f32 %v803, %v808
        %v816 = vmul.f32 %v804, %v808
        %v817 = vlaneseq
        %v818 = vshrl.u32 %v817, 7
        %v819 = vsub.s32 0, %v818
        %v820 = vrot.slane %v564, %v819
        %v821 = vadd.f32 %v809, %v820
        %v822 = vadd.f32 %v810, %v820
        %v823 = vadd.f32 %v811, %v820
        %v824 = vadd.f32 %v812, %v820
        %v825 = vadd.f32 %v813, %v820
        %v826 = vadd.f32 %v814, %v820
        %v827 = vadd.f32 %v815, %v820
        %v828 = vadd.f32 %v816, %v820
        %v829 = vmul.f32 %v821, %v821
        %v830 = vmul.f32 %v822, %v822
        %v831 = vmul.f32 %v823, %v823
        %v832 = vmul.f32 %v824, %v824
        %v833 = vmul.f32 %v825, %v825
        %v834 = vmul.f32 %v826, %v826
        %v835 = vmul.f32 %v827, %v827
        %v836 = vmul.f32 %v828, %v828
        %v837 = vmul.f32 %v821, %v829
        %v838 = vmul.f32 %v822, %v830
        %v839 = vmul.f32 %v823, %v831
        %v840 = vmul.f32 %v824, %v832
        %v841 = vmul.f32 %v825, %v833
        %v842 = vmul.f32 %v826, %v834
        %v843 = vmul.f32 %v827, %v835
        %v844 = vmul.f32 %v828, %v836
        %v845 = vmul.f32 %v837, 0.044715
        %v846 = vmul.f32 %v838, 0.044715
        %v847 = vmul.f32 %v839, 0.044715
        %v848 = vmul.f32 %v840, 0.044715
        %v849 = vmul.f32 %v841, 0.044715
        %v850 = vmul.f32 %v842, 0.044715
        %v851 = vmul.f32 %v843, 0.044715
        %v852 = vmul.f32 %v844, 0.044715
        %v853 = vadd.f32 %v821, %v845
        %v854 = vadd.f32 %v822, %v846
        %v855 = vadd.f32 %v823, %v847
        %v856 = vadd.f32 %v824, %v848
        %v857 = vadd.f32 %v825, %v849
        %v858 = vadd.f32 %v826, %v850
        %v859 = vadd.f32 %v827, %v851
        %v860 = vadd.f32 %v828, %v852
        %v861 = vmul.f32 %v853, 0.7978846
        %v862 = vmul.f32 %v854, 0.7978846
        %v863 = vmul.f32 %v855, 0.7978846
        %v864 = vmul.f32 %v856, 0.7978846
        %v865 = vmul.f32 %v857, 0.7978846
        %v866 = vmul.f32 %v858, 0.7978846
        %v867 = vmul.f32 %v859, 0.7978846
        %v868 = vmul.f32 %v860, 0.7978846
        %v869 = vtanh.pop %v861
        %v870 = vtanh.pop %v862
        %v871 = vtanh.pop %v863
        %v872 = vtanh.pop %v864
        %v873 = vtanh.pop %v865
        %v874 = vtanh.pop %v866
        %v875 = vtanh.pop %v867
        %v876 = vtanh.pop %v868
        %v877 = vadd.f32 %v869, 1.0
        %v878 = vadd.f32 %v870, 1.0
        %v879 = vadd.f32 %v871, 1.0
        %v880 = vadd.f32 %v872, 1.0
        %v881 = vadd.f32 %v873, 1.0
        %v882 = vadd.f32 %v874, 1.0
        %v883 = vadd.f32 %v875, 1.0
        %v884 = vadd.f32 %v876, 1.0
        %v885 = vmul.f32 %v877, 0.5
        %v886 = vmul.f32 %v878, 0.5
        %v887 = vmul.f32 %v879, 0.5
        %v888 = vmul.f32 %v880, 0.5
        %v889 = vmul.f32 %v881, 0.5
        %v890 = vmul.f32 %v882, 0.5
        %v891 = vmul.f32 %v883, 0.5
        %v892 = vmul.f32 %v884, 0.5
        %v893 = vmul.f32 %v821, %v885
        %v894 = vmul.f32 %v822, %v886
        %v895 = vmul.f32 %v823, %v887
        %v896 = vmul.f32 %v824, %v888
        %v897 = vmul.f32 %v825, %v889
        %v898 = vmul.f32 %v826, %v890
        %v899 = vmul.f32 %v827, %v891
        %v900 = vmul.f32 %v828, %v892
        %v901 = vpack.c.bf16 %v894, %v893
        %v902 = vpack.c.bf16 %v896, %v895
        %v903 = vpack.c.bf16 %v898, %v897
        %v904 = vpack.c.bf16 %v900, %v899
        %v905 = vld [vmem:[%s5] sm:$0xf]
        %v906 = vld [vmem:[%s5 + $0x4] sm:$0xf]
        %v907 = vld [vmem:[%s5 + $0x8] sm:$0xf]
        %v908 = vld [vmem:[%s5 + $0xc] sm:$0xf]
        %v909 = vlaneseq
        %v910 = vshrl.u32 %v909, 7
        %v911 = vsub.s32 0, %v910
        %v912 = vrot.slane %v565, %v911
        %v917 = vunpack.c.l.b16 %v905
        %v918 = vunpack.c.l.b16 %v906
        %v919 = vunpack.c.l.b16 %v907
        %v920 = vunpack.c.l.b16 %v908
        %v921 = vpack.c.b16 %v918, %v917
        %v922 = vpack.c.b16 %v920, %v919
        %v926 = vsel %vm622, %v901, 0
        %v929 = vsel %vm622, %v902, 0
        %v932 = vsel %vm622, %v903, 0
        %v935 = vsel %vm622, %v904, 0
        %937 = vmatprep.subr.bf16.mxu0 0
        %938 = vmatpush1.bf16.msra.mxu0 %v921
        %939 = vmatprep.subr.bf16.mxu0 0
        %940 = vmatpush1.bf16.msra.mxu0 %v922
        %941 = vmatprep.subr.bf16.mxu0 0
        %942 = vmatpush1.bf16.msra.mxu0 0
        %943 = vmatprep.subr.bf16.mxu0 0
        %944 = vmatpush1.bf16.msra.mxu0 0
        %945 = vmatprep.subr.bf16.mxu0 0
        %946 = vmatpush1.bf16.msra.mxu0 0
        %947 = vmatprep.subr.bf16.mxu0 0
        %948 = vmatpush1.bf16.msra.mxu0 0
        %949 = vmatprep.subr.bf16.mxu0 0
        %950 = vmatpush1.bf16.msra.mxu0 0
        %951 = vmatprep.subr.bf16.mxu0 0
        %952 = vmatpush1.bf16.msra.mxu0 0
        %953 = vmatprep.subr.bf16.mxu0 0
        %954 = vmatpush1.bf16.msra.mxu0 0
        %955 = vmatprep.subr.bf16.mxu0 0
        %956 = vmatpush1.bf16.msra.mxu0 0
        %957 = vmatprep.subr.bf16.mxu0 0
        %958 = vmatpush1.bf16.msra.mxu0 0
        %959 = vmatprep.subr.bf16.mxu0 0
        %960 = vmatpush1.bf16.msra.mxu0 0
        %961 = vmatprep.subr.bf16.mxu0 0
        %962 = vmatpush1.bf16.msra.mxu0 0
        %963 = vmatprep.subr.bf16.mxu0 0
        %964 = vmatpush1.bf16.msra.mxu0 0
        %965 = vmatprep.subr.bf16.mxu0 0
        %966 = vmatpush1.bf16.msra.mxu0 0
        %967 = vmatprep.subr.bf16.mxu0 0
        %968 = vmatpush1.bf16.msra.mxu0 0
        %969 = vmatprep.mubr.bf16.mxu0 0
        %970 = vmatmul.mubr.bf16.gmra.mrb[0].mxu0 %v926
        %v971 = vpop.f32.mrb[0].mxu0
        %v972 = vadd.f32 %v912, %v971
        %v973 = vpop.f32.mrb[0].mxu0
        %v974 = vpop.f32.mrb[0].mxu0
        %v975 = vadd.f32 %v912, %v974
        %v976 = vpop.f32.mrb[0].mxu0
        %977 = vmatprep.mubr.bf16.mxu0 0
        %978 = vmatmul.mubr.bf16.gmra.mrb[0].mxu0 %v929
        %v979 = vpop.f32.mrb[0].mxu0
        %v980 = vadd.f32 %v912, %v979
        %v981 = vpop.f32.mrb[0].mxu0
        %v982 = vpop.f32.mrb[0].mxu0
        %v983 = vadd.f32 %v912, %v982
        %v984 = vpop.f32.mrb[0].mxu0
        %985 = vmatprep.mubr.bf16.mxu0 0
        %986 = vmatmul.mubr.bf16.gmra.mrb[0].mxu0 %v932
        %v987 = vpop.f32.mrb[0].mxu0
        %v988 = vadd.f32 %v912, %v987
        %v989 = vpop.f32.mrb[0].mxu0
        %v990 = vpop.f32.mrb[0].mxu0
        %v991 = vadd.f32 %v912, %v990
        %v992 = vpop.f32.mrb[0].mxu0
        %993 = vmatprep.mubr.bf16.mxu0 0
        %994 = vmatmul.mubr.bf16.gmra.mrb[0].mxu0 %v935
        %v995 = vpop.f32.mrb[0].mxu0
        %v996 = vadd.f32 %v912, %v995
        %v997 = vpop.f32.mrb[0].mxu0
        %v998 = vpop.f32.mrb[0].mxu0
        %v999 = vadd.f32 %v912, %v998
        %v1000 = vpop.f32.mrb[0].mxu0
        %1001 = vdwg.mxu0
        %v1002 = vld [vmem:[%s546] sm:$0xff]
        %v1003 = vld [vmem:[%s546 + $0x8] sm:$0xff]
        %vm1004 = vcmp.gt.f32.partialorder %v1002, 0.5
        %vm1005 = vcmp.gt.f32.partialorder %v1003, 0.5
        %v1006 = vsel %vm1004, %v972, -100000.0
        %v1007 = vsel %vm1005, %v975, -100000.0
        %1010 = vrot.lane.b32.xlu0 %v980, 1
        %v1011 = vpop.permute.xlu0 %1010
        %1012 = vrot.lane.b32.xlu0 %v983, 1
        %v1013 = vpop.permute.xlu0 %1012
        %v1016 = vsel %vm1004, %v1011, -100000.0
        %v1017 = vsel %vm1005, %v1013, -100000.0
        %1020 = vrot.lane.b32.xlu0 %v988, 2
        %v1021 = vpop.permute.xlu0 %1020
        %1022 = vrot.lane.b32.xlu0 %v991, 2
        %v1023 = vpop.permute.xlu0 %1022
        %v1026 = vsel %vm1004, %v1021, -100000.0
        %v1027 = vsel %vm1005, %v1023, -100000.0
        %1030 = vrot.lane.b32.xlu0 %v996, 3
        %v1031 = vpop.permute.xlu0 %1030
        %1032 = vrot.lane.b32.xlu0 %v999, 3
        %v1033 = vpop.permute.xlu0 %1032
        %v1036 = vsel %vm1004, %v1031, -100000.0
        %v1037 = vsel %vm1005, %v1033, -100000.0
        %1040 = vrot.lane.b32.xlu0 %v1016, 127
        %v1041 = vpop.permute.xlu0 %1040
        %1042 = vrot.lane.b32.xlu0 %v1017, 127
        %v1043 = vpop.permute.xlu0 %1042
        %v1046 = vmax.f32 %v1006, %v1041
        %v1047 = vmax.f32 %v1007, %v1043
        %1050 = vrot.lane.b32.xlu0 %v1026, 126
        %v1051 = vpop.permute.xlu0 %1050
        %1052 = vrot.lane.b32.xlu0 %v1027, 126
        %v1053 = vpop.permute.xlu0 %1052
        %v1056 = vmax.f32 %v1046, %v1051
        %v1057 = vmax.f32 %v1047, %v1053
        %1060 = vrot.lane.b32.xlu0 %v1036, 125
        %v1061 = vpop.permute.xlu0 %1060
        %1062 = vrot.lane.b32.xlu0 %v1037, 125
        %v1063 = vpop.permute.xlu0 %1062
        %v1066 = vmax.f32 %v1056, %v1061
        %v1067 = vmax.f32 %v1057, %v1063
        %v1068 = vsub.f32 %v1006, %v1066
        %v1069 = vsub.f32 %v1007, %v1067
        %v1070 = vmul.f32 %v1068, 1.442695
        %v1071 = vpow.pop %v1070
        %v1072 = vmul.f32 %v1069, 1.442695
        %v1073 = vpow.pop %v1072
        %1076 = vrot.lane.b32.xlu0 %v1066, 1
        %v1077 = vpop.permute.xlu0 %1076
        %1078 = vrot.lane.b32.xlu0 %v1067, 1
        %v1079 = vpop.permute.xlu0 %1078
        %v1082 = vsub.f32 %v1016, %v1077
        %v1083 = vsub.f32 %v1017, %v1079
        %v1084 = vmul.f32 %v1082, 1.442695
        %v1085 = vpow.pop %v1084
        %v1086 = vmul.f32 %v1083, 1.442695
        %v1087 = vpow.pop %v1086
        %1088 = vrot.lane.b32.xlu0 %v1066, 2
        %v1089 = vpop.permute.xlu0 %1088
        %1090 = vrot.lane.b32.xlu0 %v1067, 2
        %v1091 = vpop.permute.xlu0 %1090
        %v1094 = vsub.f32 %v1026, %v1089
        %v1095 = vsub.f32 %v1027, %v1091
        %v1096 = vmul.f32 %v1094, 1.442695
        %v1097 = vpow.pop %v1096
        %v1098 = vmul.f32 %v1095, 1.442695
        %v1099 = vpow.pop %v1098
        %1100 = vrot.lane.b32.xlu0 %v1066, 3
        %v1101 = vpop.permute.xlu0 %1100
        %1102 = vrot.lane.b32.xlu0 %v1067, 3
        %v1103 = vpop.permute.xlu0 %1102
        %v1106 = vsub.f32 %v1036, %v1101
        %v1107 = vsub.f32 %v1037, %v1103
        %v1108 = vmul.f32 %v1106, 1.442695
        %v1109 = vpow.pop %v1108
        %v1110 = vmul.f32 %v1107, 1.442695
        %v1111 = vpow.pop %v1110
        %1114 = vrot.lane.b32.xlu0 %v1085, 127
        %v1115 = vpop.permute.xlu0 %1114
        %1116 = vrot.lane.b32.xlu0 %v1087, 127
        %v1117 = vpop.permute.xlu0 %1116
        %v1120 = vadd.f32 %v1071, %v1115
        %v1121 = vadd.f32 %v1073, %v1117
        %1124 = vrot.lane.b32.xlu0 %v1097, 126
        %v1125 = vpop.permute.xlu0 %1124
        %1126 = vrot.lane.b32.xlu0 %v1099, 126
        %v1127 = vpop.permute.xlu0 %1126
        %v1130 = vadd.f32 %v1120, %v1125
        %v1131 = vadd.f32 %v1121, %v1127
        %1134 = vrot.lane.b32.xlu0 %v1109, 125
        %v1135 = vpop.permute.xlu0 %1134
        %1136 = vrot.lane.b32.xlu0 %v1111, 125
        %v1137 = vpop.permute.xlu0 %1136
        %v1140 = vadd.f32 %v1130, %v1135
        %v1141 = vadd.f32 %v1131, %v1137
        %v1142 = vrcp.pop %v1140
        %v1143 = vrcp.pop %v1141
        %v1144 = vmul.f32 %v1071, %v1142
        %v1145 = vmul.f32 %v1073, %v1143
        %v1146 = vunpack.c.l.bf16 %v574
        %v1147 = vunpack.c.l.bf16 %v575
        %1149 = vset.pattern.permute.xlu0 0
        %1150 = vperm.xlu0 %1149, %v1144
        %v1151 = vpop.permute.xlu0 %1150
        %1154 = vset.pattern.permute.xlu0 0
        %1155 = vperm.xlu0 %1154, %v1145
        %v1156 = vpop.permute.xlu0 %1155
        %v1158 = vmul.f32 %v1151, %v1146
        %v1159 = vmul.f32 %v1156, %v1147
        %1162 = vrot.lane.b32.xlu0 %v1142, 1
        %v1163 = vpop.permute.xlu0 %1162
        %1164 = vrot.lane.b32.xlu0 %v1143, 1
        %v1165 = vpop.permute.xlu0 %1164
        %v1168 = vmul.f32 %v1085, %v1163
        %v1169 = vmul.f32 %v1087, %v1165
        %v1170 = vunpack.c.l.bf16 %v576
        %v1171 = vunpack.c.l.bf16 %v577
        %1173 = vset.pattern.permute.xlu0 1
        %1174 = vperm.xlu0 %1173, %v1168
        %v1175 = vpop.permute.xlu0 %1174
        %1178 = vset.pattern.permute.xlu0 1
        %1179 = vperm.xlu0 %1178, %v1169
        %v1180 = vpop.permute.xlu0 %1179
        %v1182 = vmul.f32 %v1175, %v1170
        %v1183 = vmul.f32 %v1180, %v1171
        %v1184 = vadd.f32 %v1158, %v1182
        %v1185 = vadd.f32 %v1159, %v1183
        %1186 = vrot.lane.b32.xlu0 %v1142, 2
        %v1187 = vpop.permute.xlu0 %1186
        %1188 = vrot.lane.b32.xlu0 %v1143, 2
        %v1189 = vpop.permute.xlu0 %1188
        %v1192 = vmul.f32 %v1097, %v1187
        %v1193 = vmul.f32 %v1099, %v1189
        %v1194 = vunpack.c.l.bf16 %v578
        %v1195 = vunpack.c.l.bf16 %v579
        %1197 = vset.pattern.permute.xlu0 2
        %1198 = vperm.xlu0 %1197, %v1192
        %v1199 = vpop.permute.xlu0 %1198
        %1202 = vset.pattern.permute.xlu0 2
        %1203 = vperm.xlu0 %1202, %v1193
        %v1204 = vpop.permute.xlu0 %1203
        %v1206 = vmul.f32 %v1199, %v1194
        %v1207 = vmul.f32 %v1204, %v1195
        %v1208 = vadd.f32 %v1184, %v1206
        %v1209 = vadd.f32 %v1185, %v1207
        %1210 = vrot.lane.b32.xlu0 %v1142, 3
        %v1211 = vpop.permute.xlu0 %1210
        %1212 = vrot.lane.b32.xlu0 %v1143, 3
        %v1213 = vpop.permute.xlu0 %1212
        %v1216 = vmul.f32 %v1109, %v1211
        %v1217 = vmul.f32 %v1111, %v1213
        %v1218 = vunpack.c.l.bf16 %v580
        %v1219 = vunpack.c.l.bf16 %v581
        %1221 = vset.pattern.permute.xlu0 3
        %1222 = vperm.xlu0 %1221, %v1216
        %v1223 = vpop.permute.xlu0 %1222
        %1226 = vset.pattern.permute.xlu0 3
        %1227 = vperm.xlu0 %1226, %v1217
        %v1228 = vpop.permute.xlu0 %1227
        %v1230 = vmul.f32 %v1223, %v1218
        %v1231 = vmul.f32 %v1228, %v1219
        %v1232 = vadd.f32 %v1208, %v1230
        %v1233 = vadd.f32 %v1209, %v1231
        %v1234 = vld [vmem:[%s552] sm:$0xf]
        %v1235 = vld [vmem:[%s552 + $0x4] sm:$0xf]
        %v1236 = vld [vmem:[%s6] sm:$0xf]
        %v1237 = vld [vmem:[%s6 + $0x4] sm:$0xf]
        %v1238 = vld [vmem:[%s6 + $0x8] sm:$0xf]
        %v1239 = vld [vmem:[%s6 + $0xc] sm:$0xf]
        %v1240 = vld [vmem:[%s6 + $0x10] sm:$0xf]
        %v1241 = vld [vmem:[%s6 + $0x14] sm:$0xf]
        %v1242 = vld [vmem:[%s6 + $0x18] sm:$0xf]
        %v1243 = vld [vmem:[%s6 + $0x1c] sm:$0xf]
        %v1244 = vld [vmem:[%s6 + $0x20] sm:$0xf]
        %v1245 = vld [vmem:[%s6 + $0x24] sm:$0xf]
        %v1246 = vld [vmem:[%s6 + $0x28] sm:$0xf]
        %v1247 = vld [vmem:[%s6 + $0x2c] sm:$0xf]
        %v1248 = vld [vmem:[%s6 + $0x30] sm:$0xf]
        %v1249 = vld [vmem:[%s6 + $0x34] sm:$0xf]
        %v1250 = vld [vmem:[%s6 + $0x38] sm:$0xf]
        %v1251 = vld [vmem:[%s6 + $0x3c] sm:$0xf]
        %v1252 = vpack.c.bf16 %v1233, %v1232
        %v1253 = vld [vmem:[%s7] sm:$0xf]
        %v1254 = vld [vmem:[%s7 + $0x4] sm:$0xf]
        %v1255 = vld [vmem:[%s7 + $0x8] sm:$0xf]
        %v1256 = vld [vmem:[%s7 + $0xc] sm:$0xf]
        %v1261 = vunpack.c.l.b16 %v1253
        %v1262 = vunpack.c.l.b16 %v1254
        %v1263 = vunpack.c.l.b16 %v1255
        %v1264 = vunpack.c.l.b16 %v1256
        %v1265 = vpack.c.b16 %v1262, %v1261
        %v1266 = vpack.c.b16 %v1264, %v1263
        %v1270 = vsel %vm622, %v1252, 0
        %1272 = vmatprep.subr.bf16.mxu0 0
        %1273 = vmatpush1.bf16.msra.mxu0 %v1265
        %1274 = vmatprep.subr.bf16.mxu0 0
        %1275 = vmatpush1.bf16.msra.mxu0 %v1266
        %1276 = vmatprep.subr.bf16.mxu0 0
        %1277 = vmatpush1.bf16.msra.mxu0 0
        %1278 = vmatprep.subr.bf16.mxu0 0
        %1279 = vmatpush1.bf16.msra.mxu0 0
        %1280 = vmatprep.subr.bf16.mxu0 0
        %1281 = vmatpush1.bf16.msra.mxu0 0
        %1282 = vmatprep.subr.bf16.mxu0 0
        %1283 = vmatpush1.bf16.msra.mxu0 0
        %1284 = vmatprep.subr.bf16.mxu0 0
        %1285 = vmatpush1.bf16.msra.mxu0 0
        %1286 = vmatprep.subr.bf16.mxu0 0
        %1287 = vmatpush1.bf16.msra.mxu0 0
        %1288 = vmatprep.subr.bf16.mxu0 0
        %1289 = vmatpush1.bf16.msra.mxu0 0
        %1290 = vmatprep.subr.bf16.mxu0 0
        %1291 = vmatpush1.bf16.msra.mxu0 0
        %1292 = vmatprep.subr.bf16.mxu0 0
        %1293 = vmatpush1.bf16.msra.mxu0 0
        %1294 = vmatprep.subr.bf16.mxu0 0
        %1295 = vmatpush1.bf16.msra.mxu0 0
        %1296 = vmatprep.subr.bf16.mxu0 0
        %1297 = vmatpush1.bf16.msra.mxu0 0
        %1298 = vmatprep.subr.bf16.mxu0 0
        %1299 = vmatpush1.bf16.msra.mxu0 0
        %1300 = vmatprep.subr.bf16.mxu0 0
        %1301 = vmatpush1.bf16.msra.mxu0 0
        %1302 = vmatprep.subr.bf16.mxu0 0
        %1303 = vmatpush1.bf16.msra.mxu0 0
        %1304 = vmatprep.mubr.bf16.mxu0 0
        %1305 = vmatmul.mubr.bf16.gmra.mrb[0].mxu0 %v1270
        %v1306 = vpop.f32.mrb[0].mxu0
        %v1307 = vadd.f32 0.0, %v1306
        %v1308 = vpop.f32.mrb[0].mxu0
        %v1309 = vpop.f32.mrb[0].mxu0
        %v1310 = vadd.f32 0.0, %v1309
        %v1311 = vpop.f32.mrb[0].mxu0
        %1312 = vdwg.mxu0
        %v1315 = vunpack.c.l.b16 %v1234
        %v1316 = vunpack.c.l.b16 %v1235
        %v1317 = vpack.c.b16 %v1316, %v1315
        %v1335 = vunpack.c.l.b16 %v1236
        %v1336 = vunpack.c.l.b16 %v1237
        %v1337 = vunpack.c.l.b16 %v1238
        %v1338 = vunpack.c.l.b16 %v1239
        %v1339 = vunpack.c.l.b16 %v1240
        %v1340 = vunpack.c.l.b16 %v1241
        %v1341 = vunpack.c.l.b16 %v1242
        %v1342 = vunpack.c.l.b16 %v1243
        %v1343 = vunpack.c.l.b16 %v1244
        %v1344 = vunpack.c.l.b16 %v1245
        %v1345 = vunpack.c.l.b16 %v1246
        %v1346 = vunpack.c.l.b16 %v1247
        %v1347 = vunpack.c.l.b16 %v1248
        %v1348 = vunpack.c.l.b16 %v1249
        %v1349 = vunpack.c.l.b16 %v1250
        %v1350 = vunpack.c.l.b16 %v1251
        %v1351 = vpack.c.b16 %v1336, %v1335
        %v1352 = vpack.c.b16 %v1338, %v1337
        %v1353 = vpack.c.b16 %v1340, %v1339
        %v1354 = vpack.c.b16 %v1342, %v1341
        %v1355 = vpack.c.b16 %v1344, %v1343
        %v1356 = vpack.c.b16 %v1346, %v1345
        %v1357 = vpack.c.b16 %v1348, %v1347
        %v1358 = vpack.c.b16 %v1350, %v1349
        %1367 = vmatprep.subr.bf16.mxu0 0
        %1368 = vmatpush1.bf16.msra.mxu0 %v1351
        %1369 = vmatprep.subr.bf16.mxu0 0
        %1370 = vmatpush1.bf16.msra.mxu0 %v1352
        %1371 = vmatprep.subr.bf16.mxu0 0
        %1372 = vmatpush1.bf16.msra.mxu0 %v1353
        %1373 = vmatprep.subr.bf16.mxu0 0
        %1374 = vmatpush1.bf16.msra.mxu0 %v1354
        %1375 = vmatprep.subr.bf16.mxu0 0
        %1376 = vmatpush1.bf16.msra.mxu0 %v1355
        %1377 = vmatprep.subr.bf16.mxu0 0
        %1378 = vmatpush1.bf16.msra.mxu0 %v1356
        %1379 = vmatprep.subr.bf16.mxu0 0
        %1380 = vmatpush1.bf16.msra.mxu0 %v1357
        %1381 = vmatprep.subr.bf16.mxu0 0
        %1382 = vmatpush1.bf16.msra.mxu0 %v1358
        %1383 = vmatprep.subr.bf16.mxu0 0
        %1384 = vmatpush1.bf16.msra.mxu0 0
        %1385 = vmatprep.subr.bf16.mxu0 0
        %1386 = vmatpush1.bf16.msra.mxu0 0
        %1387 = vmatprep.subr.bf16.mxu0 0
        %1388 = vmatpush1.bf16.msra.mxu0 0
        %1389 = vmatprep.subr.bf16.mxu0 0
        %1390 = vmatpush1.bf16.msra.mxu0 0
        %1391 = vmatprep.subr.bf16.mxu0 0
        %1392 = vmatpush1.bf16.msra.mxu0 0
        %1393 = vmatprep.subr.bf16.mxu0 0
        %1394 = vmatpush1.bf16.msra.mxu0 0
        %1395 = vmatprep.subr.bf16.mxu0 0
        %1396 = vmatpush1.bf16.msra.mxu0 0
        %1397 = vmatprep.subr.bf16.mxu0 0
        %1398 = vmatpush1.bf16.msra.mxu0 0
        %1399 = vmatprep.mubr.bf16.mxu0 0
        %1400 = vmatmul.mubr.bf16.gmra.mrb[0].mxu0 %v1317
        %v1401 = vpop.f32.mrb[0].mxu0
        %v1402 = vadd.f32 %v1307, %v1401
        %v1403 = vpop.f32.mrb[0].mxu0
        %v1404 = vpop.f32.mrb[0].mxu0
        %v1405 = vadd.f32 %v1310, %v1404
        %v1406 = vpop.f32.mrb[0].mxu0
        %1407 = vdwg.mxu0
        %v1408 = vlaneseq
        %v1409 = vshrl.u32 %v1408, 7
        %v1410 = vsub.s32 0, %v1409
        %v1411 = vrot.slane %v566, %v1410
        %v1412 = vadd.f32 %v1402, %v1411
        %v1413 = vadd.f32 %v1405, %v1411
        %v1414 = vsel %vm622, %v1412, 0.0
        %1415 = vadd.xlane.f32.xlu0 %v1414
        %v1416 = vpop.xlane.xlu0 %1415
        %v1417 = vsel %vm622, %v1413, 0.0
        %1418 = vadd.xlane.f32.xlu0 %v1417
        %v1419 = vpop.xlane.xlu0 %1418
        %v1420 = vmul.f32 %v1416, %v724
        %v1421 = vmul.f32 %v1419, %v724
        %v1422 = vsub.f32 %v1412, %v1420
        %v1423 = vsub.f32 %v1413, %v1421
        %v1424 = vmul.f32 %v1422, %v1422
        %v1425 = vmul.f32 %v1423, %v1423
        %v1426 = vsel %vm622, %v1424, 0.0
        %1427 = vadd.xlane.f32.xlu0 %v1426
        %v1428 = vpop.xlane.xlu0 %1427
        %v1429 = vsel %vm622, %v1425, 0.0
        %1430 = vadd.xlane.f32.xlu0 %v1429
        %v1431 = vpop.xlane.xlu0 %1430
        %v1432 = vmul.f32 %v1428, %v724
        %v1433 = vmul.f32 %v1431, %v724
        %v1434 = vadd.f32 %v1432, 1e-05
        %v1435 = vadd.f32 %v1433, 1e-05
        %v1436 = vrsqrt.pop %v1434
        %v1437 = vrsqrt.pop %v1435
        %v1438 = vmul.f32 %v1422, %v1436
        %v1439 = vmul.f32 %v1423, %v1437
        %v1440 = vlaneseq
        %v1441 = vshrl.u32 %v1440, 7
        %v1442 = vsub.s32 0, %v1441
        %v1443 = vrot.slane %v567, %v1442
        %v1444 = vmul.f32 %v1438, %v1443
        %v1445 = vmul.f32 %v1439, %v1443
        %v1446 = vlaneseq
        %v1447 = vshrl.u32 %v1446, 7
        %v1448 = vsub.s32 0, %v1447
        %v1449 = vrot.slane %v568, %v1448
        %v1450 = vadd.f32 %v1444, %v1449
        %v1451 = vadd.f32 %v1445, %v1449
        %v1452 = vmul.f32 %v1450, %v1450
        %v1453 = vmul.f32 %v1451, %v1451
        %v1454 = vmul.f32 %v1450, %v1452
        %v1455 = vmul.f32 %v1451, %v1453
        %v1456 = vmul.f32 %v1454, 0.044715
        %v1457 = vmul.f32 %v1455, 0.044715
        %v1458 = vadd.f32 %v1450, %v1456
        %v1459 = vadd.f32 %v1451, %v1457
        %v1460 = vmul.f32 %v1458, 0.7978846
        %v1461 = vmul.f32 %v1459, 0.7978846
        %v1462 = vtanh.pop %v1460
        %v1463 = vtanh.pop %v1461
        %v1464 = vadd.f32 %v1462, 1.0
        %v1465 = vadd.f32 %v1463, 1.0
        %v1466 = vmul.f32 %v1464, 0.5
        %v1467 = vmul.f32 %v1465, 0.5
        %v1468 = vmul.f32 %v1450, %v1466
        %v1469 = vmul.f32 %v1451, %v1467
        %v1470 = vpack.c.bf16 %v1469, %v1468
        %v1471 = vld [vmem:[%s8] sm:$0xf]
        %v1472 = vld [vmem:[%s8 + $0x4] sm:$0xf]
        %v1473 = vld [vmem:[%s8 + $0x8] sm:$0xf]
        %v1474 = vld [vmem:[%s8 + $0xc] sm:$0xf]
        %v1475 = vlaneseq
        %v1476 = vshrl.u32 %v1475, 7
        %v1477 = vsub.s32 0, %v1476
        %v1478 = vrot.slane %v569, %v1477
        %v1483 = vunpack.c.l.b16 %v1471
        %v1484 = vunpack.c.l.b16 %v1472
        %v1485 = vunpack.c.l.b16 %v1473
        %v1486 = vunpack.c.l.b16 %v1474
        %v1487 = vpack.c.b16 %v1484, %v1483
        %v1488 = vpack.c.b16 %v1486, %v1485
        %v1492 = vsel %vm622, %v1470, 0
        %1494 = vmatprep.subr.bf16.mxu0 0
        %1495 = vmatpush1.bf16.msra.mxu0 %v1487
        %1496 = vmatprep.subr.bf16.mxu0 0
        %1497 = vmatpush1.bf16.msra.mxu0 %v1488
        %1498 = vmatprep.subr.bf16.mxu0 0
        %1499 = vmatpush1.bf16.msra.mxu0 0
        %1500 = vmatprep.subr.bf16.mxu0 0
        %1501 = vmatpush1.bf16.msra.mxu0 0
        %1502 = vmatprep.subr.bf16.mxu0 0
        %1503 = vmatpush1.bf16.msra.mxu0 0
        %1504 = vmatprep.subr.bf16.mxu0 0
        %1505 = vmatpush1.bf16.msra.mxu0 0
        %1506 = vmatprep.subr.bf16.mxu0 0
        %1507 = vmatpush1.bf16.msra.mxu0 0
        %1508 = vmatprep.subr.bf16.mxu0 0
        %1509 = vmatpush1.bf16.msra.mxu0 0
        %1510 = vmatprep.subr.bf16.mxu0 0
        %1511 = vmatpush1.bf16.msra.mxu0 0
        %1512 = vmatprep.subr.bf16.mxu0 0
        %1513 = vmatpush1.bf16.msra.mxu0 0
        %1514 = vmatprep.subr.bf16.mxu0 0
        %1515 = vmatpush1.bf16.msra.mxu0 0
        %1516 = vmatprep.subr.bf16.mxu0 0
        %1517 = vmatpush1.bf16.msra.mxu0 0
        %1518 = vmatprep.subr.bf16.mxu0 0
        %1519 = vmatpush1.bf16.msra.mxu0 0
        %1520 = vmatprep.subr.bf16.mxu0 0
        %1521 = vmatpush1.bf16.msra.mxu0 0
        %1522 = vmatprep.subr.bf16.mxu0 0
        %1523 = vmatpush1.bf16.msra.mxu0 0
        %1524 = vmatprep.subr.bf16.mxu0 0
        %1525 = vmatpush1.bf16.msra.mxu0 0
        %1526 = vmatprep.mubr.bf16.mxu0 0
        %1527 = vmatmul.mubr.bf16.gmra.mrb[0].mxu0 %v1492
        %v1528 = vpop.f32.mrb[0].mxu0
        %v1529 = vadd.f32 %v1478, %v1528
        %v1530 = vpop.f32.mrb[0].mxu0
        %v1531 = vpop.f32.mrb[0].mxu0
        %v1532 = vadd.f32 %v1478, %v1531
        %v1533 = vpop.f32.mrb[0].mxu0
        %1534 = vdwg.mxu0
        %v1535 = vsel %vm622, %v1529, 0.0
        %1536 = vadd.xlane.f32.xlu0 %v1535
        %v1537 = vpop.xlane.xlu0 %1536
        %v1538 = vsel %vm622, %v1532, 0.0
        %1539 = vadd.xlane.f32.xlu0 %v1538
        %v1540 = vpop.xlane.xlu0 %1539
        %v1541 = vmul.f32 %v1537, %v724
        %v1542 = vmul.f32 %v1540, %v724
        %v1543 = vsub.f32 %v1529, %v1541
        %v1544 = vsub.f32 %v1532, %v1542
        %v1545 = vmul.f32 %v1543, %v1543
        %v1546 = vmul.f32 %v1544, %v1544
        %v1547 = vsel %vm622, %v1545, 0.0
        %1548 = vadd.xlane.f32.xlu0 %v1547
        %v1549 = vpop.xlane.xlu0 %1548
        %v1550 = vsel %vm622, %v1546, 0.0
        %1551 = vadd.xlane.f32.xlu0 %v1550
        %v1552 = vpop.xlane.xlu0 %1551
        %v1553 = vmul.f32 %v1549, %v724
        %v1554 = vmul.f32 %v1552, %v724
        %v1555 = vadd.f32 %v1553, 1e-05
        %v1556 = vadd.f32 %v1554, 1e-05
        %v1557 = vrsqrt.pop %v1555
        %v1558 = vrsqrt.pop %v1556
        %v1559 = vmul.f32 %v1543, %v1557
        %v1560 = vmul.f32 %v1544, %v1558
        %v1561 = vlaneseq
        %v1562 = vshrl.u32 %v1561, 7
        %v1563 = vsub.s32 0, %v1562
        %v1564 = vrot.slane %v570, %v1563
        %v1565 = vmul.f32 %v1559, %v1564
        %v1566 = vmul.f32 %v1560, %v1564
        %v1567 = vlaneseq
        %v1568 = vshrl.u32 %v1567, 7
        %v1569 = vsub.s32 0, %v1568
        %v1570 = vrot.slane %v571, %v1569
        %v1571 = vadd.f32 %v1565, %v1570
        %v1572 = vadd.f32 %v1566, %v1570
        %v1573 = vmul.f32 %v1571, %v1571
        %v1574 = vmul.f32 %v1572, %v1572
        %v1575 = vmul.f32 %v1571, %v1573
        %v1576 = vmul.f32 %v1572, %v1574
        %v1577 = vmul.f32 %v1575, 0.044715
        %v1578 = vmul.f32 %v1576, 0.044715
        %v1579 = vadd.f32 %v1571, %v1577
        %v1580 = vadd.f32 %v1572, %v1578
        %v1581 = vmul.f32 %v1579, 0.7978846
        %v1582 = vmul.f32 %v1580, 0.7978846
        %v1583 = vtanh.pop %v1581
        %v1584 = vtanh.pop %v1582
        %v1585 = vadd.f32 %v1583, 1.0
        %v1586 = vadd.f32 %v1584, 1.0
        %v1587 = vmul.f32 %v1585, 0.5
        %v1588 = vmul.f32 %v1586, 0.5
        %v1589 = vmul.f32 %v1571, %v1587
        %v1590 = vmul.f32 %v1572, %v1588
        %v1591 = vpack.c.bf16 %v1590, %v1589
        %v1592 = vld [vmem:[%s9] sm:$0xf]
        %v1593 = vld [vmem:[%s9 + $0x4] sm:$0xf]
        %v1594 = vld [vmem:[%s9 + $0x8] sm:$0xf]
        %v1595 = vld [vmem:[%s9 + $0xc] sm:$0xf]
        %v1596 = vlaneseq
        %v1597 = vshrl.u32 %v1596, 7
        %v1598 = vsub.s32 0, %v1597
        %v1599 = vrot.slane %v572, %v1598
        %v1604 = vunpack.c.l.b16 %v1592
        %v1605 = vunpack.c.l.b16 %v1593
        %v1606 = vunpack.c.l.b16 %v1594
        %v1607 = vunpack.c.l.b16 %v1595
        %v1608 = vpack.c.b16 %v1605, %v1604
        %v1609 = vpack.c.b16 %v1607, %v1606
        %v1613 = vsel %vm622, %v1591, 0
        %1615 = vmatprep.subr.bf16.mxu0 0
        %1616 = vmatpush1.bf16.msra.mxu0 %v1608
        %1617 = vmatprep.subr.bf16.mxu0 0
        %1618 = vmatpush1.bf16.msra.mxu0 %v1609
        %1619 = vmatprep.subr.bf16.mxu0 0
        %1620 = vmatpush1.bf16.msra.mxu0 0
        %1621 = vmatprep.subr.bf16.mxu0 0
        %1622 = vmatpush1.bf16.msra.mxu0 0
        %1623 = vmatprep.subr.bf16.mxu0 0
        %1624 = vmatpush1.bf16.msra.mxu0 0
        %1625 = vmatprep.subr.bf16.mxu0 0
        %1626 = vmatpush1.bf16.msra.mxu0 0
        %1627 = vmatprep.subr.bf16.mxu0 0
        %1628 = vmatpush1.bf16.msra.mxu0 0
        %1629 = vmatprep.subr.bf16.mxu0 0
        %1630 = vmatpush1.bf16.msra.mxu0 0
        %1631 = vmatprep.subr.bf16.mxu0 0
        %1632 = vmatpush1.bf16.msra.mxu0 0
        %1633 = vmatprep.subr.bf16.mxu0 0
        %1634 = vmatpush1.bf16.msra.mxu0 0
        %1635 = vmatprep.subr.bf16.mxu0 0
        %1636 = vmatpush1.bf16.msra.mxu0 0
        %1637 = vmatprep.subr.bf16.mxu0 0
        %1638 = vmatpush1.bf16.msra.mxu0 0
        %1639 = vmatprep.subr.bf16.mxu0 0
        %1640 = vmatpush1.bf16.msra.mxu0 0
        %1641 = vmatprep.subr.bf16.mxu0 0
        %1642 = vmatpush1.bf16.msra.mxu0 0
        %1643 = vmatprep.subr.bf16.mxu0 0
        %1644 = vmatpush1.bf16.msra.mxu0 0
        %1645 = vmatprep.subr.bf16.mxu0 0
        %1646 = vmatpush1.bf16.msra.mxu0 0
        %1647 = vmatprep.mubr.bf16.mxu0 0
        %1648 = vmatmul.mubr.bf16.gmra.mrb[0].mxu0 %v1613
        %v1649 = vpop.f32.mrb[0].mxu0
        %v1650 = vadd.f32 %v1599, %v1649
        %v1651 = vpop.f32.mrb[0].mxu0
        %v1652 = vpop.f32.mrb[0].mxu0
        %v1653 = vadd.f32 %v1599, %v1652
        %v1654 = vpop.f32.mrb[0].mxu0
        %1655 = vdwg.mxu0
        %v1656 = vpack.c.bf16 %v1653, %v1650
        %v1658 = vunpack.c.l.b16 %v1656
        %v1659 = vunpack.c.h.b16 %v1656
        %v1660 = vpack.c.b16 %v1658, %v1658
        %v1661 = vpack.c.b16 %v1659, %v1659
        %1664 = vst [vmem:[%s533] sm:$0xf] %v1660
        %1665 = vst [vmem:[%s533 + $0x4] sm:$0xf] %v1661
        %v1666 = vlaneseq
        %v1667 = vand.u32 %v1666, 127
        %v1668 = vld [vmem:[%s558] sm:$0xff]
        %v1669 = vld [vmem:[%s558 + $0x8] sm:$0xff]
        %1670 = vset.pattern.permute.xlu0 0
        %1671 = vperm.xlu0 %1670, %v1668
        %v1672 = vpop.permute.xlu0 %1671
        %1673 = vset.pattern.permute.xlu0 0
        %1674 = vperm.xlu0 %1673, %v1669
        %v1675 = vpop.permute.xlu0 %1674
        %vm1676 = vcmp.eq.s32.totalorder %v1667, %v1672
        %vm1677 = vcmp.eq.s32.totalorder %v1667, %v1675
        %v1678 = vsel %vm1676, 1, 0
        %v1679 = vsel %vm1677, 1, 0
        %v1680 = vcvt.s32.f32 %v1678
        %v1681 = vcvt.s32.f32 %v1679
        %vm1682 = vcmp.lt.s32.totalorder %v1667, 4
        %v1683 = vsel %vm1682, %v1650, -1e+30
        %v1684 = vsel %vm1682, %v1653, -1e+30
        %1685 = vmax.xlane.f32.xlu0 %v1683
        %v1686 = vpop.xlane.xlu0 %1685
        %1687 = vmax.xlane.f32.xlu0 %v1684
        %v1688 = vpop.xlane.xlu0 %1687
        %v1689 = vsub.f32 %v1683, %v1686
        %v1690 = vsub.f32 %v1684, %v1688
        %v1691 = vmul.f32 %v1689, 1.442695
        %v1692 = vpow.pop %v1691
        %v1693 = vmul.f32 %v1690, 1.442695
        %v1694 = vpow.pop %v1693
        %1695 = vadd.xlane.f32.xlu0 %v1692
        %v1696 = vpop.xlane.xlu0 %1695
        %1697 = vadd.xlane.f32.xlu0 %v1694
        %v1698 = vpop.xlane.xlu0 %1697
        %v1699 = vlog2.pop %v1696
        %v1700 = vmul.f32 %v1699, 0.6931472
        %v1701 = vlog2.pop %v1698
        %v1702 = vmul.f32 %v1701, 0.6931472
        %v1703 = vadd.f32 %v1686, %v1700
        %v1704 = vadd.f32 %v1688, %v1702
        %v1705 = vmul.f32 %v1680, %v1650
        %v1706 = vmul.f32 %v1681, %v1653
        %1707 = vadd.xlane.f32.xlu0 %v1705
        %v1708 = vpop.xlane.xlu0 %1707
        %1709 = vadd.xlane.f32.xlu0 %v1706
        %v1710 = vpop.xlane.xlu0 %1709
        %v1711 = vsub.f32 %v1703, %v1708
        %v1712 = vsub.f32 %v1704, %v1710
        %v1713 = vlaneseq
        %v1714 = vshrl.u32 %v1713, 7
        %v1715 = vsub.s32 0, %v1714
        %v1716 = vrot.slane %v573, %v1715
        %v1717 = vmul.f32 %v1680, %v1716
        %v1718 = vmul.f32 %v1681, %v1716
        %1719 = vadd.xlane.f32.xlu0 %v1717
        %v1720 = vpop.xlane.xlu0 %1719
        %1721 = vadd.xlane.f32.xlu0 %v1718
        %v1722 = vpop.xlane.xlu0 %1721
        %v1723 = vmul.f32 %v1720, %v1711
        %v1724 = vmul.f32 %v1722, %v1712
        %v1725 = vadd.f32 %v1723, %v1724
        %v1726 = vrot.slane %v1725, 4
        %v1727 = vadd.f32 %v1725, %v1726
        %v1728 = vrot.slane %v1727, 2
        %v1729 = vadd.f32 %v1727, %v1728
        %v1730 = vrot.slane %v1729, 1
        %v1731 = vadd.f32 %v1729, %v1730
        %v1732 = vadd.f32 %v1720, %v1722
        %v1733 = vrot.slane %v1732, 4
        %v1734 = vadd.f32 %v1732, %v1733
        %v1735 = vrot.slane %v1734, 2
        %v1736 = vadd.f32 %v1734, %v1735
        %v1737 = vrot.slane %v1736, 1
        %v1738 = vadd.f32 %v1736, %v1737
        %v1739 = vlaneseq
        %v1740 = vshrl.u32 %v1739, 7
        %vm1741 = vcmp.eq.s32.totalorder %v1740, 0
        %vm1742 = vcmp.eq.s32.totalorder %v1667, 0
        %vm1743 = vmand %vm1741, %vm1742
        %vm1744 = vcmp.eq.s32.totalorder %v1667, 1
        %vm1745 = vmand %vm1741, %vm1744
        %v1746 = vsel %vm1745, %v1738, 0.0
        %v1747 = vsel %vm1743, %v1731, %v1746
        %1748 = vst [vmem:[%s540] sm:$0xff] %v1747
        %s1749 = sand.u32 %s289, 1
        %s1750 = scalar_lea.sflag [#allocation4], %s1749
        %s1751 = sand.u32 %s289, 1
        %s1752 = smul.addr %s1751, 8
        %s1753 = scalar_lea.vmem [#allocation3], %s1752
        %s1754 = sand.u32 %s315, 1
        %s1755 = scalar_lea.sflag [#allocation6], %s1754
        %s1756 = sand.u32 %s315, 1
        %s1757 = smul.addr %s1756, 8
        %s1758 = scalar_lea.vmem [#allocation5], %s1757
        // Predicated region
        $region106: #{tpu_custom_call.1} parent=100 // pred_check
          %p1759 = pneg %p299
        $region107: #{tpu_custom_call.1} parent=100 // pred_check_branch
          %1761 = sbr.rel (%p1759) target = $region109
        $region108: #{tpu_custom_call.1} parent=100 // pred_region
          %s1762 = smul.u32 2, %s30
          %s1764 = ssub.s32 128, 128
          %1765 = vsyncadd %s1750, %s1764
          %s1766 = smul.addr %s1762, 64
          %s1767 = scalar_lea.hbm %s11, %s1766
          %s1768 = sshll.u32 %s1753, 4
          %s1769 = int_to_ptr.vmem [resolvable:$true] %s1768
          %1774 = dma.vmem_to_hbm [thread:$0]  %s1769, 128, %s1767, %s1750, 64, 64, 4
        $region109: #{tpu_custom_call.1} parent=100 // pred_fallthru
          _
        // Predicated region
        $region110: #{tpu_custom_call.1} parent=100 // pred_check
          %p1775 = pneg %p325
        $region111: #{tpu_custom_call.1} parent=100 // pred_check_branch
          %1777 = sbr.rel (%p1775) target = $region113
        $region112: #{tpu_custom_call.1} parent=100 // pred_region
          %s1779 = ssub.s32 128, 128
          %1780 = vsyncadd %s1755, %s1779
          %s1781 = smul.addr %s30, 128
          %s1782 = scalar_lea.hbm %s12, %s1781
          %s1784 = sshll.u32 %s1758, 4
          %s1785 = int_to_ptr.vmem [resolvable:$true] %s1784
          %1787 = dma.vmem_to_hbm [thread:$0]  %s1785, 128, %s1782, %s1755
        $region113: #{tpu_custom_call.1} parent=100 // pred_fallthru
          _
      $region101: #{tpu_custom_call.1} parent=5 // pred_fallthru
        _
      %p1788 = scmp.le.s32.totalorder 2, %s25
      // Predicated region
      $region114: #{tpu_custom_call.1} parent=5 // pred_check
        %p1789 = pneg %p1788
      $region115: #{tpu_custom_call.1} parent=5 // pred_check_branch
        %1791 = sbr.rel (%p1789) target = $region117
      $region116: #{tpu_custom_call.1} parent=5 // pred_region
        %s1792 = ssub.s32 %s25, 2
        // Predicated region
        $region118: #{tpu_custom_call.1} parent=116 // pred_check
          %p1793 = pneg %p305
        $region119: #{tpu_custom_call.1} parent=116 // pred_check_branch
          %1795 = sbr.rel (%p1793) target = $region121
        $region120: #{tpu_custom_call.1} parent=116 // pred_region
          %s1796 = sand.u32 %s290, 1
          %s1797 = scalar_lea.sflag [#allocation4], %s1796
          %s1798 = sand.u32 %s290, 1
          %s1799 = smul.addr %s1798, 8
          %s1800 = scalar_lea.vmem [#allocation3], %s1799
          %1801 = dma.done %s1797, 128
        $region121: #{tpu_custom_call.1} parent=116 // pred_fallthru
          _
        // Predicated region
        $region122: #{tpu_custom_call.1} parent=116 // pred_check
          %p1802 = pneg %p331
        $region123: #{tpu_custom_call.1} parent=116 // pred_check_branch
          %1804 = sbr.rel (%p1802) target = $region125
        $region124: #{tpu_custom_call.1} parent=116 // pred_region
          %s1805 = sand.u32 %s316, 1
          %s1806 = scalar_lea.sflag [#allocation6], %s1805
          %s1807 = sand.u32 %s316, 1
          %s1808 = smul.addr %s1807, 8
          %s1809 = scalar_lea.vmem [#allocation5], %s1808
          %1810 = dma.done %s1806, 128
        $region125: #{tpu_custom_call.1} parent=116 // pred_fallthru
          _
      $region117: #{tpu_custom_call.1} parent=5 // pred_fallthru
        _
    $region6: #{tpu_custom_call.1} parent=1 // loop_footer
      %s29 = sadd.s32 1, %s25
    $region7: #{tpu_custom_call.1} parent=1 // loop_footer_branch
      %24 = sbr.rel target = $region3
    $region8: #{tpu_custom_call.1} parent=1 // loop_exit
      _
    %1811 = vsyncpa [#allocation4], 1
    %s1812 = scalar_lea.sflag [#allocation4], 1
    %1813 = vsyncpa %s1812, 1
    %1814 = vsyncpa [#allocation6], 1
    %s1815 = scalar_lea.sflag [#allocation6], 1
    %1816 = vsyncpa %s1815, 1

</llo_original>
